<compile_context>
chip_gen: v7x
topology: tpu7x:2x2x1
jax: 0.10.0
libtpu: 0.0.40
codegen_flags: <defaults>
</compile_context>

<pallas_src>
import jax
import jax.numpy as jnp
from jax import lax
from jax.experimental import pallas as pl
from jax.experimental.pallas import tpu as pltpu

HEADS = 2        # attention_heads
F1 = 32          # conv1 out_channels (per head)
F2 = 16          # conv2 out_channels
NEG_SLOPE = 0.2
_MASK_BIG = 1e30   # finite additive-mask magnitude (no -inf intermediates)


def _round_up(v, m):
    return ((v + m - 1) // m) * m


def _cdiv(a, b):
    return -(-a // b)


def _safe_inv(v):
    # exact 1/v for v > 0 else 0.  v is a degree count (>= 1 when nonzero).
    return jnp.where(v > 0.0, pl.reciprocal(jnp.maximum(v, 1.0), approx=False), 0.0)


def _leaky_relu(x):
    return jnp.maximum(x, NEG_SLOPE * x)     # valid for 0 < slope < 1 (2 VPU ops)


def hypergraph_kernel(x_ref, an_ref, ae_ref, hT_ref, nmask_ref,
                      w1_ref, b1_ref, w2_ref, b2_ref,
                      out_ref,
                      x1_buf, acc1, deg_acc, x2_buf, acc2):
    p = pl.program_id(0)          # phase: 0 = conv1 (attention), 1 = conv2
    t = pl.program_id(1)          # hyperedge tile
    nt = pl.num_programs(1)

    incid = hT_ref[...]                                    # [tM, Np] bf16 0/1 (never widened)
    tm, npad = incid.shape

    # hyperedge degree of this tile on the MXU (bf16 x bf16, f32 acc -> exact)
    ones_col = jnp.ones((npad, 1), jnp.bfloat16)
    deg_e = jnp.dot(incid, ones_col, preferred_element_type=jnp.float32)   # [tM, 1]
    binv = _safe_inv(deg_e)

    # ------------------------------ one-time init -------------------------------
    @pl.when((p == 0) & (t == 0))
    def _init():
        xv = x_ref[...]                                            # [Np, Fin] f32
        for h in range(HEADS):                                     # static, 2 iters
            x1_buf[h] = jnp.dot(xv, w1_ref[h],
                                preferred_element_type=jnp.float32
                                ).astype(jnp.bfloat16)             # [Np, F1]
        acc1[...] = jnp.zeros_like(acc1)
        deg_acc[...] = jnp.zeros_like(deg_acc)

    # --------------- phase 0: HypergraphConv #1 (node-mode attention) -----------
    @pl.when(p == 0)
    def _conv1():
        ones_row = jnp.ones((1, tm), jnp.bfloat16)
        deg_acc[...] += jnp.dot(ones_row, incid,
                                preferred_element_type=jnp.float32)   # node degrees

        # one additive mask per tile, shared by both heads (0 incident, -1e30 otherwise)
        mask_add = (incid - 1.0) * _MASK_BIG                          # bf16 [tM, Np]

        a_e = ae_ref[...]                                             # [tM, HEADS] f32
        for h in range(HEADS):                                        # static, 2 iters
            s = _leaky_relu(a_e[:, h:h + 1] + an_ref[h:h + 1, :]) + mask_add   # f32 [tM, Np]
            mmax = jnp.max(s, axis=1, keepdims=True)                  # [tM, 1]
            ex = jnp.exp(s - mmax)       # non-incident -> exp(~-1e30) == 0 exactly
            denom = jnp.sum(ex, axis=1, keepdims=True)                # >= 1 always
            dinv_e = pl.reciprocal(denom, approx=False)               # [tM, 1]
            exb = ex.astype(jnp.bfloat16)                             # MXU operand

            # node -> hyperedge: 1/denom and B^-1 folded into the tiny [tM, F1] rows;
            # empty / padded hyperedge rows are zeroed here by binv == 0.
            raw_e = jnp.dot(exb, x1_buf[h],
                            preferred_element_type=jnp.float32)       # [tM, F1]
            lhs = (raw_e * (binv * dinv_e * dinv_e)).astype(jnp.bfloat16)
            # hyperedge -> node, accumulated feature-major [F1, Np]
            acc1[h] += lax.dot_general(lhs, exb, (((0,), (0,)), ((), ())),
                                       preferred_element_type=jnp.float32)

    # ---------- phase boundary: finish conv1 + relu, precompute conv2 input -----
    @pl.when((p == 0) & (t == nt - 1))
    def _mid():
        dinv = _safe_inv(deg_acc[...])                                # [1, Np]
        x2t = jnp.zeros((F2, npad), jnp.float32)
        for h in range(HEADS):
            out1_h = jnp.maximum(acc1[h] * dinv + b1_ref[h], 0.0)     # relu, [F1, Np]
            x2t = x2t + jnp.dot(w2_ref[h], out1_h,
                                preferred_element_type=jnp.float32)   # [F2, Np]
        x2_buf[...] = jnp.transpose(x2t).astype(jnp.bfloat16)         # one small transpose
        acc2[...] = jnp.zeros_like(acc2)

    # ------------------- phase 1: HypergraphConv #2 (no attention) --------------
    @pl.when(p == 1)
    def _conv2():
        out_e2 = jnp.dot(incid, x2_buf[...],
                         preferred_element_type=jnp.float32)          # [tM, F2]
        lhs2 = (out_e2 * binv).astype(jnp.bfloat16)
        acc2[...] += lax.dot_general(lhs2, incid, (((0,), (0,)), ((), ())),
                                     preferred_element_type=jnp.float32)   # [F2, Np]

    # -------------------- finalize: bias + global_add_pool ----------------------
    @pl.when((p == 1) & (t == nt - 1))
    def _fin():
        dinv = _safe_inv(deg_acc[...])
        out2 = (acc2[...] * dinv + b2_ref[...]) * nmask_ref[...]      # [F2, Np]
        out_ref[...] = jnp.sum(out2, axis=1, keepdims=True)           # [F2, 1]


def _vmem_capacity_bytes():
    try:
        return int(pltpu.get_tpu_info().vmem_capacity_bytes)
    except Exception:
        return 64 * 1024 * 1024      # conservative (v7x per-core size)


def init_params(key, num_features):
    k1, k2, k3, k4, k5 = jax.random.split(key, 5)
    glorot = lambda k, shape: (jax.random.normal(k, shape, jnp.float32)
                               * jnp.sqrt(2.0 / (shape[0] + shape[1])))
    w1 = glorot(k1, (num_features, HEADS * F1))      # conv1.lin
    att = glorot(k2, (HEADS, 2 * F1))                # conv1.att
    b1 = 0.1 * jax.random.normal(k3, (1, HEADS * F1), jnp.float32)   # conv1.bias
    w2 = glorot(k4, (HEADS * F1, F2))                # conv2.lin
    b2 = 0.1 * jax.random.normal(k5, (1, F2), jnp.float32)           # conv2.bias
    return w1, att, b1, w2, b2


def hypergraph_forward(x, edge_index, hyper_attr, params, *, block_m=None):
    w1, att, b1, w2, b2 = params
    n_nodes, fin = x.shape
    n_edges = hyper_attr.shape[0]
    vmem_cap = _vmem_capacity_bytes()

    # ---- generation-aware hyperedge tiling, minimizing padded rows ----
    if block_m is None:
        block_m = 256 if vmem_cap <= (64 << 20) else 512
    n_tiles = _cdiv(max(n_edges, 1), block_m)
    tile_m = _round_up(_cdiv(max(n_edges, 1), n_tiles), 128)
    m_pad = tile_m * n_tiles
    n_pad = _round_up(max(n_nodes, 1), 128)

    # ---- padded, lane/sublane-friendly operands (wrapper glue) ----
    x_p = jnp.pad(x.astype(jnp.float32), ((0, n_pad - n_nodes), (0, 0)))       # [Np, Fin]
    # hyperedge-major 0/1 incidence, exact in bf16 (half the HBM/VMEM of f32)
    h_t = (jnp.zeros((m_pad, n_pad), jnp.float32)
           .at[edge_index[1], edge_index[0]].set(1.0)
           .astype(jnp.bfloat16))
    node_mask = (jnp.arange(n_pad) < n_nodes).astype(jnp.float32)[None, :]     # [1, Np]

    # ---- fold per-head attention vectors into tiny wrapper matmuls ----
    w1r = w1.reshape(fin, HEADS, F1)
    nw = jnp.einsum('ihf,hf->ih', w1r, att[:, :F1])          # [Fin, HEADS] node side
    ew = jnp.einsum('ihf,hf->ih', w1r, att[:, F1:])          # [Fin, HEADS] edge side
    a_n = (x_p @ nw).T                                       # [HEADS, Np]
    hea_p = jnp.pad(hyper_attr.astype(jnp.float32), ((0, m_pad - n_edges), (0, 0)))
    a_e = hea_p @ ew                                         # [Mp, HEADS]

    w1_hd = jnp.transpose(w1r, (1, 0, 2))                    # [HEADS, Fin, F1]
    b1_hd = b1.reshape(HEADS, F1, 1)
    w2_hd = jnp.transpose(w2.T.reshape(F2, HEADS, F1), (1, 0, 2))   # [HEADS, F2, F1]
    b2_col = b2.reshape(F2, 1)

    # ---- explicit VMEM budget (incidence double-buffer + softmax temps + O(Np) scratch) ----
    per_node = (2 * fin * 4 + 2 * HEADS * 4 + 2 * 4          # x, a_n, nmask streams
                + HEADS * 128 * 2 + HEADS * F1 * 4           # x1 (lane-padded bf16), acc1
                + 4 + 128 * 2 + F2 * 4)                      # deg_acc, x2 (lane-padded), acc2
    vmem_est = (2 * 2 * tile_m * n_pad                       # bf16 incidence double buffer
                + 12 * tile_m * n_pad                        # softmax temporaries (s/ex/exb/mask)
                + per_node * n_pad
                + (4 << 20))                                 # headroom / small operands
    vmem_limit = min(max(int(vmem_est * 1.2), 32 << 20), int(vmem_cap * 0.9))

    const2 = lambda p_, t_: (0, 0)
    const3 = lambda p_, t_: (0, 0, 0)

    out = pl.pallas_call(
        hypergraph_kernel,
        out_shape=jax.ShapeDtypeStruct((F2, 1), jnp.float32),
        grid_spec=pltpu.PrefetchScalarGridSpec(
            num_scalar_prefetch=0,
            grid=(2, n_tiles),
            in_specs=[
                pl.BlockSpec((n_pad, fin), const2),                              # x (resident)
                pl.BlockSpec((HEADS, n_pad), const2),                            # a_n
                pl.BlockSpec((tile_m, HEADS), lambda p_, t_: ((1 - p_) * t_, 0)),  # a_e (phase 0 stream)
                pl.BlockSpec((tile_m, n_pad), lambda p_, t_: (t_, 0)),           # incidence bf16
                pl.BlockSpec((1, n_pad), const2),                                # node-validity mask
                pl.BlockSpec((HEADS, fin, F1), const3),                          # w1 per head
                pl.BlockSpec((HEADS, F1, 1), const3),                            # b1 per head (col)
                pl.BlockSpec((HEADS, F2, F1), const3),                           # w2^T per head
                pl.BlockSpec((F2, 1), const2),                                   # b2 (col)
            ],
            out_specs=pl.BlockSpec((F2, 1), const2),
            scratch_shapes=[
                pltpu.VMEM((HEADS, n_pad, F1), jnp.bfloat16),   # x1 per head (node-major)
                pltpu.VMEM((HEADS, F1, n_pad), jnp.float32),    # conv1 accumulator
                pltpu.VMEM((1, n_pad), jnp.float32),            # node degrees
                pltpu.VMEM((n_pad, F2), jnp.bfloat16),          # conv2 input (node-major)
                pltpu.VMEM((F2, n_pad), jnp.float32),           # conv2 accumulator
            ],
        ),
        compiler_params=pltpu.CompilerParams(
            dimension_semantics=("arbitrary", "arbitrary"),
            vmem_limit_bytes=vmem_limit),
    )(x_p, a_n, a_e, h_t, node_mask, w1_hd, b1_hd, w2_hd, b2_col)
    return out.reshape(1, F2)


def reference_forward(x, edge_index, hyper_attr, params):
    # Pure-JAX dense reference mirroring PyG HypergraphConv semantics.
    w1, att, b1, w2, b2 = params
    n_nodes = x.shape[0]
    n_edges = hyper_attr.shape[0]
    hinc = jnp.zeros((n_nodes, n_edges), jnp.float32).at[edge_index[0], edge_index[1]].set(1.0)
    deg_n = hinc.sum(1, keepdims=True)
    deg_e = hinc.sum(0, keepdims=True)
    dinv = jnp.where(deg_n > 0, 1.0 / deg_n, 0.0)
    binv = jnp.where(deg_e > 0, 1.0 / deg_e, 0.0)

    x1 = (x @ w1).reshape(n_nodes, HEADS, F1)
    he1 = (hyper_attr @ w1).reshape(n_edges, HEADS, F1)
    a_n = jnp.einsum('nhf,hf->nh', x1, att[:, :F1])
    a_e = jnp.einsum('mhf,hf->mh', he1, att[:, F1:])
    raw = a_n[:, None, :] + a_e[None, :, :]                        # [N, M, H]
    raw = jnp.where(raw >= 0, raw, NEG_SLOPE * raw)
    mask = (hinc > 0)[:, :, None]
    masked = jnp.where(mask, raw, -jnp.inf)
    mmax = jnp.max(masked, axis=0, keepdims=True)
    ex = jnp.where(mask, jnp.exp(raw - mmax), 0.0)
    den = ex.sum(0, keepdims=True)
    alpha = ex / jnp.where(den > 0, den, 1.0)

    out_e = jnp.einsum('nmh,nhf->mhf', alpha * binv[:, :, None], x1)
    out_n = dinv[:, :, None] * jnp.einsum('nmh,mhf->nhf', alpha, out_e)
    out1 = jnp.maximum(out_n.reshape(n_nodes, HEADS * F1) + b1, 0.0)

    x2 = out1 @ w2
    out_e2 = (hinc * binv).T @ x2
    out2 = dinv * (hinc @ out_e2) + b2
    return jnp.sum(out2, axis=0, keepdims=True)


if __name__ == "__main__":
    key = jax.random.PRNGKey(0)
    kx, ke, ki, kp = jax.random.split(key, 4)
    Fin = 16
    params = init_params(kp, Fin)

    # ---- test 1: tiny graph (single hyperedge tile) ----
    N, M = 8, 4
    x = jax.random.normal(kx, (N, Fin), jnp.float32)
    hyper_attr = jax.random.normal(ke, (M, Fin), jnp.float32)
    src = jnp.repeat(jnp.arange(N, dtype=jnp.int32), 2)            # node indices
    dst = jnp.stack([jnp.arange(N, dtype=jnp.int32) % M,
                     (jnp.arange(N, dtype=jnp.int32) + 1) % M], axis=1).reshape(-1)
    edge_index = jnp.stack([src, dst], axis=0)                     # [2, 16]

    out = jax.block_until_ready(hypergraph_forward(x, edge_index, hyper_attr, params))
    ref = reference_forward(x, edge_index, hyper_attr, params)
    assert out.shape == (1, F2)
    assert jnp.allclose(out, ref, rtol=2e-2, atol=2e-2), (out, ref)

    # ---- test 2: multi-tile path (3 hyperedge tiles, padded rows & padded nodes) ----
    N2, M2 = 50, 300
    x2 = jax.random.normal(kx, (N2, Fin), jnp.float32)
    hyper_attr2 = jax.random.normal(ke, (M2, Fin), jnp.float32)
    dst2 = jnp.repeat(jnp.arange(M2, dtype=jnp.int32), 3)          # each hyperedge: 3 nodes
    src2 = jax.random.randint(ki, (M2 * 3,), 0, N2, dtype=jnp.int32)
    edge_index2 = jnp.stack([src2, dst2], axis=0)

    out2 = jax.block_until_ready(
        hypergraph_forward(x2, edge_index2, hyper_attr2, params, block_m=128))
    ref2 = reference_forward(x2, edge_index2, hyper_attr2, params)
    assert out2.shape == (1, F2)
    assert jnp.allclose(out2, ref2, rtol=2e-2, atol=1e-1), (out2, ref2)

    print("KERNEL_OK")
</pallas_src>

<mosaic_0001>
module attributes {stable_mosaic.version = 11 : i64} {
  func.func @hypergraph_kernel(%arg0: i32, %arg1: i32, %arg2: memref<128x16xf32, #tpu.memory_space<vmem>>, %arg3: memref<2x128xf32, #tpu.memory_space<vmem>>, %arg4: memref<128x2xf32, #tpu.memory_space<vmem>>, %arg5: memref<128x128xbf16, #tpu.memory_space<vmem>>, %arg6: memref<1x128xf32, #tpu.memory_space<vmem>>, %arg7: memref<2x16x32xf32, #tpu.memory_space<vmem>>, %arg8: memref<2x32x1xf32, #tpu.memory_space<vmem>>, %arg9: memref<2x16x32xf32, #tpu.memory_space<vmem>>, %arg10: memref<16x1xf32, #tpu.memory_space<vmem>>, %arg11: memref<16x1xf32, #tpu.memory_space<vmem>>, %arg12: memref<2x128x32xbf16, #tpu.memory_space<vmem>>, %arg13: memref<2x32x128xf32, #tpu.memory_space<vmem>>, %arg14: memref<1x128xf32, #tpu.memory_space<vmem>>, %arg15: memref<128x16xbf16, #tpu.memory_space<vmem>>, %arg16: memref<16x128xf32, #tpu.memory_space<vmem>>) attributes {dimension_semantics = [#tpu.dimension_semantics<arbitrary>, #tpu.dimension_semantics<arbitrary>], iteration_bounds = array<i64: 2, 1>, scalar_prefetch = 0 : i64, scratch_operands = 5 : i64, tpu.core_type = #tpu.core_type<tc>, window_params = [{pipeline_mode = #tpu.pipeline_mode<synchronous>, transform_indices = @transform_0, window_bounds = array<i64: 128, 16>}, {pipeline_mode = #tpu.pipeline_mode<synchronous>, transform_indices = @transform_1, window_bounds = array<i64: 2, 128>}, {transform_indices = @transform_2, window_bounds = array<i64: 128, 2>}, {transform_indices = @transform_3, window_bounds = array<i64: 128, 128>}, {pipeline_mode = #tpu.pipeline_mode<synchronous>, transform_indices = @transform_4, window_bounds = array<i64: 1, 128>}, {pipeline_mode = #tpu.pipeline_mode<synchronous>, transform_indices = @transform_5, window_bounds = array<i64: 2, 16, 32>}, {pipeline_mode = #tpu.pipeline_mode<synchronous>, transform_indices = @transform_6, window_bounds = array<i64: 2, 32, 1>}, {pipeline_mode = #tpu.pipeline_mode<synchronous>, transform_indices = @transform_7, window_bounds = array<i64: 2, 16, 32>}, {pipeline_mode = #tpu.pipeline_mode<synchronous>, transform_indices = @transform_8, window_bounds = array<i64: 16, 1>}, {pipeline_mode = #tpu.pipeline_mode<synchronous>, transform_indices = @transform_9, window_bounds = array<i64: 16, 1>}]} {
    %c0 = arith.constant 0 : index
    %c0_0 = arith.constant 0 : index
    %0 = vector.load %arg5[%c0, %c0_0] : memref<128x128xbf16, #tpu.memory_space<vmem>>, vector<128x128xbf16>
    %cst = arith.constant 1.000000e+00 : bf16
    %1 = vector.broadcast %cst : bf16 to vector<128x1xbf16>
    %cst_1 = arith.constant dense<0.000000e+00> : vector<128x1xf32>
    %2 = tpu.matmul %0, %1, %cst_1 {dimension_numbers = #tpu.dot_dimension_numbers<[1], [0], [0], [1], [0, 0, 1, 1], [], []>} : vector<128x128xbf16>, vector<128x1xbf16>, vector<128x1xf32> -> vector<128x1xf32>
    %cst_2 = arith.constant 0.000000e+00 : f32
    %3 = vector.broadcast %cst_2 : f32 to vector<128x1xf32>
    %4 = arith.cmpf ogt, %2, %3 : vector<128x1xf32>
    %cst_3 = arith.constant 1.000000e+00 : f32
    %5 = vector.broadcast %cst_3 : f32 to vector<128x1xf32>
    %6 = arith.maximumf %2, %5 : vector<128x1xf32>
    %7 = tpu.reciprocal %6 : vector<128x1xf32> -> vector<128x1xf32>
    %cst_4 = arith.constant 0.000000e+00 : f32
    %8 = vector.broadcast %cst_4 : f32 to vector<128x1xf32>
    %9 = arith.select %4, %7, %8 : vector<128x1xi1>, vector<128x1xf32>
    %c0_i32 = arith.constant 0 : i32
    %10 = arith.cmpi eq, %arg0, %c0_i32 : i32
    %c0_i32_5 = arith.constant 0 : i32
    %11 = arith.cmpi eq, %arg1, %c0_i32_5 : i32
    %12 = arith.andi %10, %11 : i1
    %13 = arith.extui %12 : i1 to i32
    %c0_i32_6 = arith.constant 0 : i32
    %14 = arith.cmpi ne, %13, %c0_i32_6 : i32
    scf.if %14 {
      %c0_16 = arith.constant 0 : index
      %c0_17 = arith.constant 0 : index
      %31 = vector.load %arg2[%c0_16, %c0_17] : memref<128x16xf32, #tpu.memory_space<vmem>>, vector<128x16xf32>
      %c0_18 = arith.constant 0 : index
      %c0_19 = arith.constant 0 : index
      %c0_20 = arith.constant 0 : index
      %32 = vector.load %arg7[%c0_18, %c0_19, %c0_20] : memref<2x16x32xf32, #tpu.memory_space<vmem>>, vector<1x16x32xf32>
      %33 = vector.shape_cast %32 : vector<1x16x32xf32> to vector<16x32xf32>
      %cst_21 = arith.constant dense<0.000000e+00> : vector<128x32xf32>
      %34 = tpu.matmul %31, %33, %cst_21 {dimension_numbers = #tpu.dot_dimension_numbers<[1], [0], [0], [1], [0, 0, 1, 1], [], []>} : vector<128x16xf32>, vector<16x32xf32>, vector<128x32xf32> -> vector<128x32xf32>
      %35 = arith.truncf %34 : vector<128x32xf32> to vector<128x32xbf16>
      %c0_22 = arith.constant 0 : index
      %c0_23 = arith.constant 0 : index
      %c0_24 = arith.constant 0 : index
      %36 = vector.load %arg12[%c0_22, %c0_23, %c0_24] : memref<2x128x32xbf16, #tpu.memory_space<vmem>>, vector<1x128x32xbf16>
      %37 = vector.shape_cast %36 : vector<1x128x32xbf16> to vector<128x32xbf16>
      %38 = vector.shape_cast %35 : vector<128x32xbf16> to vector<1x128x32xbf16>
      tpu.vector_store %arg12[%c0_22, %c0_23, %c0_24], %38 {strides = array<i32>} : memref<2x128x32xbf16, #tpu.memory_space<vmem>>, vector<1x128x32xbf16>,
      %c1 = arith.constant 1 : index
      %c0_25 = arith.constant 0 : index
      %c0_26 = arith.constant 0 : index
      %39 = vector.load %arg7[%c1, %c0_25, %c0_26] : memref<2x16x32xf32, #tpu.memory_space<vmem>>, vector<1x16x32xf32>
      %40 = vector.shape_cast %39 : vector<1x16x32xf32> to vector<16x32xf32>
      %cst_27 = arith.constant dense<0.000000e+00> : vector<128x32xf32>
      %41 = tpu.matmul %31, %40, %cst_27 {dimension_numbers = #tpu.dot_dimension_numbers<[1], [0], [0], [1], [0, 0, 1, 1], [], []>} : vector<128x16xf32>, vector<16x32xf32>, vector<128x32xf32> -> vector<128x32xf32>
      %42 = arith.truncf %41 : vector<128x32xf32> to vector<128x32xbf16>
      %c1_28 = arith.constant 1 : index
      %c0_29 = arith.constant 0 : index
      %c0_30 = arith.constant 0 : index
      %43 = vector.load %arg12[%c1_28, %c0_29, %c0_30] : memref<2x128x32xbf16, #tpu.memory_space<vmem>>, vector<1x128x32xbf16>
      %44 = vector.shape_cast %43 : vector<1x128x32xbf16> to vector<128x32xbf16>
      %45 = vector.shape_cast %42 : vector<128x32xbf16> to vector<1x128x32xbf16>
      tpu.vector_store %arg12[%c1_28, %c0_29, %c0_30], %45 {strides = array<i32>} : memref<2x128x32xbf16, #tpu.memory_space<vmem>>, vector<1x128x32xbf16>,
      %cst_31 = arith.constant 0.000000e+00 : f32
      %46 = vector.broadcast %cst_31 : f32 to vector<2x32x128xf32>
      %c0_32 = arith.constant 0 : index
      %c0_33 = arith.constant 0 : index
      %c0_34 = arith.constant 0 : index
      %47 = vector.load %arg13[%c0_32, %c0_33, %c0_34] : memref<2x32x128xf32, #tpu.memory_space<vmem>>, vector<2x32x128xf32>
      tpu.vector_store %arg13[%c0_32, %c0_33, %c0_34], %46 {strides = array<i32>} : memref<2x32x128xf32, #tpu.memory_space<vmem>>, vector<2x32x128xf32>,
      %cst_35 = arith.constant 0.000000e+00 : f32
      %48 = vector.broadcast %cst_35 : f32 to vector<1x128xf32>
      %c0_36 = arith.constant 0 : index
      %c0_37 = arith.constant 0 : index
      %49 = vector.load %arg14[%c0_36, %c0_37] : memref<1x128xf32, #tpu.memory_space<vmem>>, vector<1x128xf32>
      tpu.vector_store %arg14[%c0_36, %c0_37], %48 {strides = array<i32>} : memref<1x128xf32, #tpu.memory_space<vmem>>, vector<1x128xf32>,
    } else {
    }
    %c0_i32_7 = arith.constant 0 : i32
    %15 = arith.cmpi eq, %arg0, %c0_i32_7 : i32
    %16 = arith.extui %15 : i1 to i32
    %c0_i32_8 = arith.constant 0 : i32
    %17 = arith.cmpi ne, %16, %c0_i32_8 : i32
    scf.if %17 {
      %cst_16 = arith.constant 1.000000e+00 : bf16
      %31 = vector.broadcast %cst_16 : bf16 to vector<1x128xbf16>
      %c0_17 = arith.constant 0 : index
      %c0_18 = arith.constant 0 : index
      %32 = vector.load %arg14[%c0_17, %c0_18] : memref<1x128xf32, #tpu.memory_space<vmem>>, vector<1x128xf32>
      %cst_19 = arith.constant dense<0.000000e+00> : vector<1x128xf32>
      %33 = tpu.matmul %31, %0, %cst_19 {dimension_numbers = #tpu.dot_dimension_numbers<[1], [0], [0], [1], [0, 0, 1, 1], [], []>} : vector<1x128xbf16>, vector<128x128xbf16>, vector<1x128xf32> -> vector<1x128xf32>
      %34 = arith.addf %32, %33 : vector<1x128xf32>
      %c0_20 = arith.constant 0 : index
      %c0_21 = arith.constant 0 : index
      %35 = vector.load %arg14[%c0_20, %c0_21] : memref<1x128xf32, #tpu.memory_space<vmem>>, vector<1x128xf32>
      tpu.vector_store %arg14[%c0_20, %c0_21], %34 {strides = array<i32>} : memref<1x128xf32, #tpu.memory_space<vmem>>, vector<1x128xf32>,
      %cst_22 = arith.constant 1.000000e+00 : bf16
      %36 = vector.broadcast %cst_22 : bf16 to vector<128x128xbf16>
      %37 = arith.subf %0, %36 : vector<128x128xbf16>
      %cst_23 = arith.constant 1.000260e+30 : bf16
      %38 = vector.broadcast %cst_23 : bf16 to vector<128x128xbf16>
      %39 = arith.mulf %37, %38 : vector<128x128xbf16>
      %c0_24 = arith.constant 0 : index
      %c0_25 = arith.constant 0 : index
      %40 = vector.load %arg4[%c0_24, %c0_25] : memref<128x2xf32, #tpu.memory_space<vmem>>, vector<128x2xf32>
      %41 = vector.extract_strided_slice %40 {offsets = [0, 0], sizes = [128, 1], strides = [1, 1]} : vector<128x2xf32> to vector<128x1xf32>
      %c0_26 = arith.constant 0 : index
      %c0_27 = arith.constant 0 : index
      %42 = vector.load %arg3[%c0_26, %c0_27] : memref<2x128xf32, #tpu.memory_space<vmem>>, vector<1x128xf32>
      %43 = vector.broadcast %41 : vector<128x1xf32> to vector<128x128xf32>
      %44 = vector.broadcast %42 : vector<1x128xf32> to vector<128x128xf32>
      %45 = arith.addf %43, %44 : vector<128x128xf32>
      %cst_28 = arith.constant 2.000000e-01 : f32
      %46 = vector.broadcast %cst_28 : f32 to vector<128x128xf32>
      %47 = arith.mulf %46, %45 : vector<128x128xf32>
      %48 = arith.maximumf %45, %47 : vector<128x128xf32>
      %49 = arith.extf %39 : vector<128x128xbf16> to vector<128x128xf32>
      %50 = arith.addf %48, %49 : vector<128x128xf32>
      %cst_29 = arith.constant dense<0xFF800000> : vector<128xf32>
      %51 = vector.multi_reduction <maximumf>, %50, %cst_29 [1] : vector<128x128xf32> to vector<128xf32>
      %52 = vector.shape_cast %51 : vector<128xf32> to vector<128x1xf32>
      %53 = vector.broadcast %52 : vector<128x1xf32> to vector<128x128xf32>
      %54 = arith.subf %50, %53 : vector<128x128xf32>
      %55 = math.exp %54 : vector<128x128xf32>
      %cst_30 = arith.constant dense<0.000000e+00> : vector<128xf32>
      %56 = vector.multi_reduction <add>, %55, %cst_30 [1] : vector<128x128xf32> to vector<128xf32>
      %57 = vector.shape_cast %56 : vector<128xf32> to vector<128x1xf32>
      %58 = tpu.reciprocal %57 : vector<128x1xf32> -> vector<128x1xf32>
      %59 = arith.truncf %55 : vector<128x128xf32> to vector<128x128xbf16>
      %c0_31 = arith.constant 0 : index
      %c0_32 = arith.constant 0 : index
      %c0_33 = arith.constant 0 : index
      %60 = vector.load %arg12[%c0_31, %c0_32, %c0_33] : memref<2x128x32xbf16, #tpu.memory_space<vmem>>, vector<1x128x32xbf16>
      %61 = vector.shape_cast %60 : vector<1x128x32xbf16> to vector<128x32xbf16>
      %cst_34 = arith.constant dense<0.000000e+00> : vector<128x32xf32>
      %62 = tpu.matmul %59, %61, %cst_34 {dimension_numbers = #tpu.dot_dimension_numbers<[1], [0], [0], [1], [0, 0, 1, 1], [], []>} : vector<128x128xbf16>, vector<128x32xbf16>, vector<128x32xf32> -> vector<128x32xf32>
      %63 = arith.mulf %9, %58 : vector<128x1xf32>
      %64 = arith.mulf %63, %58 : vector<128x1xf32>
      %65 = vector.broadcast %64 : vector<128x1xf32> to vector<128x32xf32>
      %66 = arith.mulf %62, %65 : vector<128x32xf32>
      %67 = arith.truncf %66 : vector<128x32xf32> to vector<128x32xbf16>
      %c0_35 = arith.constant 0 : index
      %c0_36 = arith.constant 0 : index
      %c0_37 = arith.constant 0 : index
      %68 = vector.load %arg13[%c0_35, %c0_36, %c0_37] : memref<2x32x128xf32, #tpu.memory_space<vmem>>, vector<1x32x128xf32>
      %69 = vector.shape_cast %68 : vector<1x32x128xf32> to vector<32x128xf32>
      %cst_38 = arith.constant dense<0.000000e+00> : vector<32x128xf32>
      %70 = tpu.matmul %67, %59, %cst_38 {dimension_numbers = #tpu.dot_dimension_numbers<[0], [0], [1], [1], [0, 1, 1, 1], [], []>} : vector<128x32xbf16>, vector<128x128xbf16>, vector<32x128xf32> -> vector<32x128xf32>
      %71 = arith.addf %69, %70 : vector<32x128xf32>
      %c0_39 = arith.constant 0 : index
      %c0_40 = arith.constant 0 : index
      %c0_41 = arith.constant 0 : index
      %72 = vector.load %arg13[%c0_39, %c0_40, %c0_41] : memref<2x32x128xf32, #tpu.memory_space<vmem>>, vector<1x32x128xf32>
      %73 = vector.shape_cast %72 : vector<1x32x128xf32> to vector<32x128xf32>
      %74 = vector.shape_cast %71 : vector<32x128xf32> to vector<1x32x128xf32>
      tpu.vector_store %arg13[%c0_39, %c0_40, %c0_41], %74 {strides = array<i32>} : memref<2x32x128xf32, #tpu.memory_space<vmem>>, vector<1x32x128xf32>,
      %75 = vector.extract_strided_slice %40 {offsets = [0, 1], sizes = [128, 1], strides = [1, 1]} : vector<128x2xf32> to vector<128x1xf32>
      %c1 = arith.constant 1 : index
      %c0_42 = arith.constant 0 : index
      %76 = vector.load %arg3[%c1, %c0_42] : memref<2x128xf32, #tpu.memory_space<vmem>>, vector<1x128xf32>
      %77 = vector.broadcast %75 : vector<128x1xf32> to vector<128x128xf32>
      %78 = vector.broadcast %76 : vector<1x128xf32> to vector<128x128xf32>
      %79 = arith.addf %77, %78 : vector<128x128xf32>
      %cst_43 = arith.constant 2.000000e-01 : f32
      %80 = vector.broadcast %cst_43 : f32 to vector<128x128xf32>
      %81 = arith.mulf %80, %79 : vector<128x128xf32>
      %82 = arith.maximumf %79, %81 : vector<128x128xf32>
      %83 = arith.extf %39 : vector<128x128xbf16> to vector<128x128xf32>
      %84 = arith.addf %82, %83 : vector<128x128xf32>
      %cst_44 = arith.constant dense<0xFF800000> : vector<128xf32>
      %85 = vector.multi_reduction <maximumf>, %84, %cst_44 [1] : vector<128x128xf32> to vector<128xf32>
      %86 = vector.shape_cast %85 : vector<128xf32> to vector<128x1xf32>
      %87 = vector.broadcast %86 : vector<128x1xf32> to vector<128x128xf32>
      %88 = arith.subf %84, %87 : vector<128x128xf32>
      %89 = math.exp %88 : vector<128x128xf32>
      %cst_45 = arith.constant dense<0.000000e+00> : vector<128xf32>
      %90 = vector.multi_reduction <add>, %89, %cst_45 [1] : vector<128x128xf32> to vector<128xf32>
      %91 = vector.shape_cast %90 : vector<128xf32> to vector<128x1xf32>
      %92 = tpu.reciprocal %91 : vector<128x1xf32> -> vector<128x1xf32>
      %93 = arith.truncf %89 : vector<128x128xf32> to vector<128x128xbf16>
      %c1_46 = arith.constant 1 : index
      %c0_47 = arith.constant 0 : index
      %c0_48 = arith.constant 0 : index
      %94 = vector.load %arg12[%c1_46, %c0_47, %c0_48] : memref<2x128x32xbf16, #tpu.memory_space<vmem>>, vector<1x128x32xbf16>
      %95 = vector.shape_cast %94 : vector<1x128x32xbf16> to vector<128x32xbf16>
      %cst_49 = arith.constant dense<0.000000e+00> : vector<128x32xf32>
      %96 = tpu.matmul %93, %95, %cst_49 {dimension_numbers = #tpu.dot_dimension_numbers<[1], [0], [0], [1], [0, 0, 1, 1], [], []>} : vector<128x128xbf16>, vector<128x32xbf16>, vector<128x32xf32> -> vector<128x32xf32>
      %97 = arith.mulf %9, %92 : vector<128x1xf32>
      %98 = arith.mulf %97, %92 : vector<128x1xf32>
      %99 = vector.broadcast %98 : vector<128x1xf32> to vector<128x32xf32>
      %100 = arith.mulf %96, %99 : vector<128x32xf32>
      %101 = arith.truncf %100 : vector<128x32xf32> to vector<128x32xbf16>
      %c1_50 = arith.constant 1 : index
      %c0_51 = arith.constant 0 : index
      %c0_52 = arith.constant 0 : index
      %102 = vector.load %arg13[%c1_50, %c0_51, %c0_52] : memref<2x32x128xf32, #tpu.memory_space<vmem>>, vector<1x32x128xf32>
      %103 = vector.shape_cast %102 : vector<1x32x128xf32> to vector<32x128xf32>
      %cst_53 = arith.constant dense<0.000000e+00> : vector<32x128xf32>
      %104 = tpu.matmul %101, %93, %cst_53 {dimension_numbers = #tpu.dot_dimension_numbers<[0], [0], [1], [1], [0, 1, 1, 1], [], []>} : vector<128x32xbf16>, vector<128x128xbf16>, vector<32x128xf32> -> vector<32x128xf32>
      %105 = arith.addf %103, %104 : vector<32x128xf32>
      %c1_54 = arith.constant 1 : index
      %c0_55 = arith.constant 0 : index
      %c0_56 = arith.constant 0 : index
      %106 = vector.load %arg13[%c1_54, %c0_55, %c0_56] : memref<2x32x128xf32, #tpu.memory_space<vmem>>, vector<1x32x128xf32>
      %107 = vector.shape_cast %106 : vector<1x32x128xf32> to vector<32x128xf32>
      %108 = vector.shape_cast %105 : vector<32x128xf32> to vector<1x32x128xf32>
      tpu.vector_store %arg13[%c1_54, %c0_55, %c0_56], %108 {strides = array<i32>} : memref<2x32x128xf32, #tpu.memory_space<vmem>>, vector<1x32x128xf32>,
    } else {
    }
    %c0_i32_9 = arith.constant 0 : i32
    %18 = arith.cmpi eq, %arg0, %c0_i32_9 : i32
    %c0_i32_10 = arith.constant 0 : i32
    %19 = arith.cmpi eq, %arg1, %c0_i32_10 : i32
    %20 = arith.andi %18, %19 : i1
    %21 = arith.extui %20 : i1 to i32
    %c0_i32_11 = arith.constant 0 : i32
    %22 = arith.cmpi ne, %21, %c0_i32_11 : i32
    scf.if %22 {
      %c0_16 = arith.constant 0 : index
      %c0_17 = arith.constant 0 : index
      %31 = vector.load %arg14[%c0_16, %c0_17] : memref<1x128xf32, #tpu.memory_space<vmem>>, vector<1x128xf32>
      %cst_18 = arith.constant 0.000000e+00 : f32
      %32 = vector.broadcast %cst_18 : f32 to vector<1x128xf32>
      %33 = arith.cmpf ogt, %31, %32 : vector<1x128xf32>
      %cst_19 = arith.constant 1.000000e+00 : f32
      %34 = vector.broadcast %cst_19 : f32 to vector<1x128xf32>
      %35 = arith.maximumf %31, %34 : vector<1x128xf32>
      %36 = tpu.reciprocal %35 : vector<1x128xf32> -> vector<1x128xf32>
      %cst_20 = arith.constant 0.000000e+00 : f32
      %37 = vector.broadcast %cst_20 : f32 to vector<1x128xf32>
      %38 = arith.select %33, %36, %37 : vector<1x128xi1>, vector<1x128xf32>
      %cst_21 = arith.constant 0.000000e+00 : f32
      %39 = vector.broadcast %cst_21 : f32 to vector<16x128xf32>
      %c0_22 = arith.constant 0 : index
      %c0_23 = arith.constant 0 : index
      %c0_24 = arith.constant 0 : index
      %40 = vector.load %arg13[%c0_22, %c0_23, %c0_24] : memref<2x32x128xf32, #tpu.memory_space<vmem>>, vector<1x32x128xf32>
      %41 = vector.shape_cast %40 : vector<1x32x128xf32> to vector<32x128xf32>
      %42 = vector.broadcast %38 : vector<1x128xf32> to vector<32x128xf32>
      %43 = arith.mulf %41, %42 : vector<32x128xf32>
      %c0_25 = arith.constant 0 : index
      %c0_26 = arith.constant 0 : index
      %c0_27 = arith.constant 0 : index
      %44 = vector.load %arg8[%c0_25, %c0_26, %c0_27] : memref<2x32x1xf32, #tpu.memory_space<vmem>>, vector<1x32x1xf32>
      %45 = vector.shape_cast %44 : vector<1x32x1xf32> to vector<32x1xf32>
      %46 = vector.broadcast %45 : vector<32x1xf32> to vector<32x128xf32>
      %47 = arith.addf %43, %46 : vector<32x128xf32>
      %cst_28 = arith.constant 0.000000e+00 : f32
      %48 = vector.broadcast %cst_28 : f32 to vector<32x128xf32>
      %49 = arith.maximumf %47, %48 : vector<32x128xf32>
      %c0_29 = arith.constant 0 : index
      %c0_30 = arith.constant 0 : index
      %c0_31 = arith.constant 0 : index
      %50 = vector.load %arg9[%c0_29, %c0_30, %c0_31] : memref<2x16x32xf32, #tpu.memory_space<vmem>>, vector<1x16x32xf32>
      %51 = vector.shape_cast %50 : vector<1x16x32xf32> to vector<16x32xf32>
      %cst_32 = arith.constant dense<0.000000e+00> : vector<16x128xf32>
      %52 = tpu.matmul %51, %49, %cst_32 {dimension_numbers = #tpu.dot_dimension_numbers<[1], [0], [0], [1], [0, 0, 1, 1], [], []>} : vector<16x32xf32>, vector<32x128xf32>, vector<16x128xf32> -> vector<16x128xf32>
      %53 = arith.addf %39, %52 : vector<16x128xf32>
      %c1 = arith.constant 1 : index
      %c0_33 = arith.constant 0 : index
      %c0_34 = arith.constant 0 : index
      %54 = vector.load %arg13[%c1, %c0_33, %c0_34] : memref<2x32x128xf32, #tpu.memory_space<vmem>>, vector<1x32x128xf32>
      %55 = vector.shape_cast %54 : vector<1x32x128xf32> to vector<32x128xf32>
      %56 = vector.broadcast %38 : vector<1x128xf32> to vector<32x128xf32>
      %57 = arith.mulf %55, %56 : vector<32x128xf32>
      %c1_35 = arith.constant 1 : index
      %c0_36 = arith.constant 0 : index
      %c0_37 = arith.constant 0 : index
      %58 = vector.load %arg8[%c1_35, %c0_36, %c0_37] : memref<2x32x1xf32, #tpu.memory_space<vmem>>, vector<1x32x1xf32>
      %59 = vector.shape_cast %58 : vector<1x32x1xf32> to vector<32x1xf32>
      %60 = vector.broadcast %59 : vector<32x1xf32> to vector<32x128xf32>
      %61 = arith.addf %57, %60 : vector<32x128xf32>
      %cst_38 = arith.constant 0.000000e+00 : f32
      %62 = vector.broadcast %cst_38 : f32 to vector<32x128xf32>
      %63 = arith.maximumf %61, %62 : vector<32x128xf32>
      %c1_39 = arith.constant 1 : index
      %c0_40 = arith.constant 0 : index
      %c0_41 = arith.constant 0 : index
      %64 = vector.load %arg9[%c1_39, %c0_40, %c0_41] : memref<2x16x32xf32, #tpu.memory_space<vmem>>, vector<1x16x32xf32>
      %65 = vector.shape_cast %64 : vector<1x16x32xf32> to vector<16x32xf32>
      %cst_42 = arith.constant dense<0.000000e+00> : vector<16x128xf32>
      %66 = tpu.matmul %65, %63, %cst_42 {dimension_numbers = #tpu.dot_dimension_numbers<[1], [0], [0], [1], [0, 0, 1, 1], [], []>} : vector<16x32xf32>, vector<32x128xf32>, vector<16x128xf32> -> vector<16x128xf32>
      %67 = arith.addf %53, %66 : vector<16x128xf32>
      %68 = tpu.transpose %67, [1, 0] : vector<16x128xf32> -> vector<128x16xf32>
      %69 = arith.truncf %68 : vector<128x16xf32> to vector<128x16xbf16>
      %c0_43 = arith.constant 0 : index
      %c0_44 = arith.constant 0 : index
      %70 = vector.load %arg15[%c0_43, %c0_44] : memref<128x16xbf16, #tpu.memory_space<vmem>>, vector<128x16xbf16>
      tpu.vector_store %arg15[%c0_43, %c0_44], %69 {strides = array<i32>} : memref<128x16xbf16, #tpu.memory_space<vmem>>, vector<128x16xbf16>,
      %cst_45 = arith.constant 0.000000e+00 : f32
      %71 = vector.broadcast %cst_45 : f32 to vector<16x128xf32>
      %c0_46 = arith.constant 0 : index
      %c0_47 = arith.constant 0 : index
      %72 = vector.load %arg16[%c0_46, %c0_47] : memref<16x128xf32, #tpu.memory_space<vmem>>, vector<16x128xf32>
      tpu.vector_store %arg16[%c0_46, %c0_47], %71 {strides = array<i32>} : memref<16x128xf32, #tpu.memory_space<vmem>>, vector<16x128xf32>,
    } else {
    }
    %c1_i32 = arith.constant 1 : i32
    %23 = arith.cmpi eq, %arg0, %c1_i32 : i32
    %24 = arith.extui %23 : i1 to i32
    %c0_i32_12 = arith.constant 0 : i32
    %25 = arith.cmpi ne, %24, %c0_i32_12 : i32
    scf.if %25 {
      %c0_16 = arith.constant 0 : index
      %c0_17 = arith.constant 0 : index
      %31 = vector.load %arg15[%c0_16, %c0_17] : memref<128x16xbf16, #tpu.memory_space<vmem>>, vector<128x16xbf16>
      %cst_18 = arith.constant dense<0.000000e+00> : vector<128x16xf32>
      %32 = tpu.matmul %0, %31, %cst_18 {dimension_numbers = #tpu.dot_dimension_numbers<[1], [0], [0], [1], [0, 0, 1, 1], [], []>} : vector<128x128xbf16>, vector<128x16xbf16>, vector<128x16xf32> -> vector<128x16xf32>
      %33 = vector.broadcast %9 : vector<128x1xf32> to vector<128x16xf32>
      %34 = arith.mulf %32, %33 : vector<128x16xf32>
      %35 = arith.truncf %34 : vector<128x16xf32> to vector<128x16xbf16>
      %c0_19 = arith.constant 0 : index
      %c0_20 = arith.constant 0 : index
      %36 = vector.load %arg16[%c0_19, %c0_20] : memref<16x128xf32, #tpu.memory_space<vmem>>, vector<16x128xf32>
      %cst_21 = arith.constant dense<0.000000e+00> : vector<16x128xf32>
      %37 = tpu.matmul %35, %0, %cst_21 {dimension_numbers = #tpu.dot_dimension_numbers<[0], [0], [1], [1], [0, 1, 1, 1], [], []>} : vector<128x16xbf16>, vector<128x128xbf16>, vector<16x128xf32> -> vector<16x128xf32>
      %38 = arith.addf %36, %37 : vector<16x128xf32>
      %c0_22 = arith.constant 0 : index
      %c0_23 = arith.constant 0 : index
      %39 = vector.load %arg16[%c0_22, %c0_23] : memref<16x128xf32, #tpu.memory_space<vmem>>, vector<16x128xf32>
      tpu.vector_store %arg16[%c0_22, %c0_23], %38 {strides = array<i32>} : memref<16x128xf32, #tpu.memory_space<vmem>>, vector<16x128xf32>,
    } else {
    }
    %c1_i32_13 = arith.constant 1 : i32
    %26 = arith.cmpi eq, %arg0, %c1_i32_13 : i32
    %c0_i32_14 = arith.constant 0 : i32
    %27 = arith.cmpi eq, %arg1, %c0_i32_14 : i32
    %28 = arith.andi %26, %27 : i1
    %29 = arith.extui %28 : i1 to i32
    %c0_i32_15 = arith.constant 0 : i32
    %30 = arith.cmpi ne, %29, %c0_i32_15 : i32
    scf.if %30 {
      %c0_16 = arith.constant 0 : index
      %c0_17 = arith.constant 0 : index
      %31 = vector.load %arg14[%c0_16, %c0_17] : memref<1x128xf32, #tpu.memory_space<vmem>>, vector<1x128xf32>
      %cst_18 = arith.constant 0.000000e+00 : f32
      %32 = vector.broadcast %cst_18 : f32 to vector<1x128xf32>
      %33 = arith.cmpf ogt, %31, %32 : vector<1x128xf32>
      %cst_19 = arith.constant 1.000000e+00 : f32
      %34 = vector.broadcast %cst_19 : f32 to vector<1x128xf32>
      %35 = arith.maximumf %31, %34 : vector<1x128xf32>
      %36 = tpu.reciprocal %35 : vector<1x128xf32> -> vector<1x128xf32>
      %cst_20 = arith.constant 0.000000e+00 : f32
      %37 = vector.broadcast %cst_20 : f32 to vector<1x128xf32>
      %38 = arith.select %33, %36, %37 : vector<1x128xi1>, vector<1x128xf32>
      %c0_21 = arith.constant 0 : index
      %c0_22 = arith.constant 0 : index
      %39 = vector.load %arg16[%c0_21, %c0_22] : memref<16x128xf32, #tpu.memory_space<vmem>>, vector<16x128xf32>
      %40 = vector.broadcast %38 : vector<1x128xf32> to vector<16x128xf32>
      %41 = arith.mulf %39, %40 : vector<16x128xf32>
      %c0_23 = arith.constant 0 : index
      %c0_24 = arith.constant 0 : index
      %42 = vector.load %arg10[%c0_23, %c0_24] : memref<16x1xf32, #tpu.memory_space<vmem>>, vector<16x1xf32>
      %43 = vector.broadcast %42 : vector<16x1xf32> to vector<16x128xf32>
      %44 = arith.addf %41, %43 : vector<16x128xf32>
      %c0_25 = arith.constant 0 : index
      %c0_26 = arith.constant 0 : index
      %45 = vector.load %arg6[%c0_25, %c0_26] : memref<1x128xf32, #tpu.memory_space<vmem>>, vector<1x128xf32>
      %46 = vector.broadcast %45 : vector<1x128xf32> to vector<16x128xf32>
      %47 = arith.mulf %44, %46 : vector<16x128xf32>
      %cst_27 = arith.constant dense<0.000000e+00> : vector<16xf32>
      %48 = vector.multi_reduction <add>, %47, %cst_27 [1] : vector<16x128xf32> to vector<16xf32>
      %49 = vector.shape_cast %48 : vector<16xf32> to vector<16x1xf32>
      %c0_28 = arith.constant 0 : index
      %c0_29 = arith.constant 0 : index
      %50 = vector.load %arg11[%c0_28, %c0_29] : memref<16x1xf32, #tpu.memory_space<vmem>>, vector<16x1xf32>
      tpu.vector_store %arg11[%c0_28, %c0_29], %49 {strides = array<i32>} : memref<16x1xf32, #tpu.memory_space<vmem>>, vector<16x1xf32>,
    } else {
    }
    return
  }
  func.func @transform_0(%arg0: i32, %arg1: i32) -> (i32, i32) {
    %c0_i32 = arith.constant 0 : i32
    %c0_i32_0 = arith.constant 0 : i32
    %c0_i32_1 = arith.constant 0 : i32
    return %c0_i32, %c0_i32_0 : i32, i32
  }
  func.func @transform_1(%arg0: i32, %arg1: i32) -> (i32, i32) {
    %c0_i32 = arith.constant 0 : i32
    %c0_i32_0 = arith.constant 0 : i32
    %c0_i32_1 = arith.constant 0 : i32
    return %c0_i32, %c0_i32_0 : i32, i32
  }
  func.func @transform_2(%arg0: i32, %arg1: i32) -> (i32, i32) {
    %c1_i32 = arith.constant 1 : i32
    %0 = arith.subi %c1_i32, %arg0 : i32
    %1 = arith.muli %0, %arg1 : i32
    %c0_i32 = arith.constant 0 : i32
    %c0_i32_0 = arith.constant 0 : i32
    return %1, %c0_i32 : i32, i32
  }
  func.func @transform_3(%arg0: i32, %arg1: i32) -> (i32, i32) {
    %c0_i32 = arith.constant 0 : i32
    %c0_i32_0 = arith.constant 0 : i32
    return %arg1, %c0_i32 : i32, i32
  }
  func.func @transform_4(%arg0: i32, %arg1: i32) -> (i32, i32) {
    %c0_i32 = arith.constant 0 : i32
    %c0_i32_0 = arith.constant 0 : i32
    %c0_i32_1 = arith.constant 0 : i32
    return %c0_i32, %c0_i32_0 : i32, i32
  }
  func.func @transform_5(%arg0: i32, %arg1: i32) -> (i32, i32, i32) {
    %c0_i32 = arith.constant 0 : i32
    %c0_i32_0 = arith.constant 0 : i32
    %c0_i32_1 = arith.constant 0 : i32
    %c0_i32_2 = arith.constant 0 : i32
    return %c0_i32, %c0_i32_0, %c0_i32_1 : i32, i32, i32
  }
  func.func @transform_6(%arg0: i32, %arg1: i32) -> (i32, i32, i32) {
    %c0_i32 = arith.constant 0 : i32
    %c0_i32_0 = arith.constant 0 : i32
    %c0_i32_1 = arith.constant 0 : i32
    %c0_i32_2 = arith.constant 0 : i32
    return %c0_i32, %c0_i32_0, %c0_i32_1 : i32, i32, i32
  }
  func.func @transform_7(%arg0: i32, %arg1: i32) -> (i32, i32, i32) {
    %c0_i32 = arith.constant 0 : i32
    %c0_i32_0 = arith.constant 0 : i32
    %c0_i32_1 = arith.constant 0 : i32
    %c0_i32_2 = arith.constant 0 : i32
    return %c0_i32, %c0_i32_0, %c0_i32_1 : i32, i32, i32
  }
  func.func @transform_8(%arg0: i32, %arg1: i32) -> (i32, i32) {
    %c0_i32 = arith.constant 0 : i32
    %c0_i32_0 = arith.constant 0 : i32
    %c0_i32_1 = arith.constant 0 : i32
    return %c0_i32, %c0_i32_0 : i32, i32
  }
  func.func @transform_9(%arg0: i32, %arg1: i32) -> (i32, i32) {
    %c0_i32 = arith.constant 0 : i32
    %c0_i32_0 = arith.constant 0 : i32
    %c0_i32_1 = arith.constant 0 : i32
    return %c0_i32, %c0_i32_0 : i32, i32
  }
}

</mosaic_0001>

<llo_original>
// kernel: tpu_custom_call.1
$region0: #{tpu_custom_call.1}
  #allocation0 [shape = 'u32[]', space=smem, size = 0x4, offset = 0x4, fixed_abs, tag = 'smem constant byte address 0x4 - core index']
  #allocation1 [shape = 'u32[144,128]{1,0:T(1,128)}', space=vmem, size = 0x12000, scoped, tag = 'internal scratch']
  #allocation2 [shape = 'bf16[2,128,32]{2,1,0:T(16,128)(2,1)}', space=vmem, size = 0x10000, scoped, tag = 'scratch operand']
  #allocation3 [shape = 'f32[2,32,128]{2,1,0:T(8,128)}', space=vmem, size = 0x8000, scoped, tag = 'scratch operand']
  #allocation4 [shape = 'f32[1,128]{1,0:T(1,128)}', space=vmem, size = 0x200, scoped, tag = 'scratch operand']
  #allocation5 [shape = 'bf16[128,16]{1,0:T(16,128)(2,1)}', space=vmem, size = 0x8000, scoped, tag = 'scratch operand']
  #allocation6 [shape = 'f32[16,128]{1,0:T(8,128)}', space=vmem, size = 0x2000, scoped, tag = 'scratch operand']
  %s0 = inlined_call_operand.vmem [shape: f32[128,16], index: 0, kind: input, shape index: {}]
  %s1 = inlined_call_operand.vmem [shape: f32[2,128], index: 1, kind: input, shape index: {}]
  %s2 = inlined_call_operand.vmem [shape: f32[128,2], index: 2, kind: input, shape index: {}]
  %s3 = inlined_call_operand.vmem [shape: bf16[128,128], index: 3, kind: input, shape index: {}]
  %s4 = inlined_call_operand.vmem [shape: f32[1,128], index: 4, kind: input, shape index: {}]
  %s5 = inlined_call_operand.vmem [shape: f32[2,16,32], index: 5, kind: input, shape index: {}]
  %s6 = inlined_call_operand.vmem [shape: f32[2,32,1], index: 6, kind: input, shape index: {}]
  %s7 = inlined_call_operand.vmem [shape: f32[2,16,32], index: 7, kind: input, shape index: {}]
  %s8 = inlined_call_operand.vmem [shape: f32[16,1], index: 8, kind: input, shape index: {}]
  %s9 = inlined_call_operand.vmem [shape: f32[16,1], index: 9, kind: output, shape index: {}]
  %s10 = sld [smem:[#allocation0]]
  $region89: #{tpu_custom_call.1} parent=0
    _
  %s12 = ssub.s32 1, %s10
  %s13 = scalar_select 0, %s12, %s10
  loop: start=0, step=1, limit=4
  $region2: #{tpu_custom_call.1} parent=0 // loop_pre_header
    _
  $region3: #{tpu_custom_call.1} parent=0 // loop_header
    %s15 = sphi 0, %s19
    %p16 = scmp.ge.s32.totalorder %s15, 4
    %s22 = sphi 0, %s34
    %s23 = sphi 0, %s30
    %s24 = sphi 0, %s22
    %s25 = sphi 0, %s23
    %s26 = sphi 0, %s24
    %s27 = sphi 0, %s25
    %s35 = sphi 0, %s35
    %s37 = sphi 0, %s35
    %s38 = sphi 0, %s37
    %s52 = sphi 0, %s38
    %s56 = sphi 0, %s56
    %s58 = sphi 0, %s56
    %s59 = sphi 0, %s58
    %s73 = sphi 0, %s59
    %s83 = sphi 0, %s85
    %s86 = sphi 0, %s83
    %s87 = sphi 0, %s86
    %s103 = sphi 0, %s87
    %s109 = sphi 0, %s111
    %s112 = sphi 0, %s109
    %s113 = sphi 0, %s112
    %s129 = sphi 0, %s113
    %s133 = sphi 0, %s133
    %s135 = sphi 0, %s133
    %s136 = sphi 0, %s135
    %s150 = sphi 0, %s136
    %s154 = sphi 0, %s154
    %s156 = sphi 0, %s154
    %s157 = sphi 0, %s156
    %s171 = sphi 0, %s157
    %s175 = sphi 0, %s175
    %s177 = sphi 0, %s175
    %s178 = sphi 0, %s177
    %s192 = sphi 0, %s178
    %s196 = sphi 0, %s196
    %s198 = sphi 0, %s196
    %s199 = sphi 0, %s198
    %s213 = sphi 0, %s199
    %s217 = sphi 0, %s217
    %s219 = sphi 0, %s217
    %s220 = sphi 0, %s219
    %s234 = sphi 0, %s220
    %s238 = sphi 0, %s238
    %s240 = sphi 0, %s238
    %s241 = sphi 0, %s240
    %s255 = sphi 0, %s241
  $region4: #{tpu_custom_call.1} parent=0 // loop_header_branch
    %18 = sbr.rel (%p16) target = $region8
  $region5: #{tpu_custom_call.1} parent=0 // loop_body
    %s20 = ssub.s32 %s15, 1
    %s21 = ssub.s32 %s15, 2
    %s28 = sadd.s32 1, %s23
    %p29 = scmp.ge.s32.totalorder %s28, 1
    %s30 = scalar_select %p29, 0, %s28
    %s31 = sadd.s32 1, %s22
    %s32 = scalar_select %p29, %s31, %s22
    %p33 = scmp.ge.s32.totalorder %s32, 2
    %s34 = scalar_select %p33, 0, %s32
    %s36 = sadd.s32 %s35, 1
    %p39 = scmp.eq.s32.totalorder %s15, 1
    %p40 = scmp.ne.s32.totalorder %s35, %s37
    %p41 = scmp.eq.s32.totalorder %s15, 0
    %p42 = por %p40, %p41
    %p43 = scmp.ne.s32.totalorder %s35, %s37
    %p44 = scmp.eq.s32.totalorder %s20, 1
    %p45 = por %p43, %p44
    %p46 = scmp.ne.s32.totalorder %s37, %s38
    %p47 = scmp.eq.s32.totalorder %s20, 0
    %p48 = por %p46, %p47
    %p49 = scmp.ne.s32.totalorder %s37, %s38
    %p50 = scmp.eq.s32.totalorder %s21, 1
    %p51 = por %p49, %p50
    %p53 = scmp.ne.s32.totalorder %s38, %s52
    %p54 = scmp.eq.s32.totalorder %s21, 0
    %p55 = por %p53, %p54
    %s57 = sadd.s32 %s56, 1
    %p60 = scmp.eq.s32.totalorder %s15, 1
    %p61 = scmp.ne.s32.totalorder %s56, %s58
    %p62 = scmp.eq.s32.totalorder %s15, 0
    %p63 = por %p61, %p62
    %p64 = scmp.ne.s32.totalorder %s56, %s58
    %p65 = scmp.eq.s32.totalorder %s20, 1
    %p66 = por %p64, %p65
    %p67 = scmp.ne.s32.totalorder %s58, %s59
    %p68 = scmp.eq.s32.totalorder %s20, 0
    %p69 = por %p67, %p68
    %p70 = scmp.ne.s32.totalorder %s58, %s59
    %p71 = scmp.eq.s32.totalorder %s21, 1
    %p72 = por %p70, %p71
    %p74 = scmp.ne.s32.totalorder %s59, %s73
    %p75 = scmp.eq.s32.totalorder %s21, 0
    %p76 = por %p74, %p75
    %s77 = ssub.s32 1, %s22
    %s78 = smul.u32 %s77, %s23
    %s79 = ssub.s32 1, %s34
    %s80 = smul.u32 %s79, %s30
    %s81 = ssub.s32 %s78, %s80
    %p82 = scmp.eq.s32.totalorder %s81, 0
    %s84 = sadd.s32 %s83, 1
    %s85 = scalar_select %p82, %s83, %s84
    %p88 = pneg %p82
    %p89 = scmp.eq.s32.totalorder %s15, 1
    %p90 = por %p88, %p89
    %p91 = scmp.ne.s32.totalorder %s83, %s86
    %p92 = scmp.eq.s32.totalorder %s15, 0
    %p93 = por %p91, %p92
    %p94 = scmp.ne.s32.totalorder %s83, %s86
    %p95 = scmp.eq.s32.totalorder %s20, 1
    %p96 = por %p94, %p95
    %p97 = scmp.ne.s32.totalorder %s86, %s87
    %p98 = scmp.eq.s32.totalorder %s20, 0
    %p99 = por %p97, %p98
    %p100 = scmp.ne.s32.totalorder %s86, %s87
    %p101 = scmp.eq.s32.totalorder %s21, 1
    %p102 = por %p100, %p101
    %p104 = scmp.ne.s32.totalorder %s87, %s103
    %p105 = scmp.eq.s32.totalorder %s21, 0
    %p106 = por %p104, %p105
    %s107 = ssub.s32 %s23, %s30
    %p108 = scmp.eq.s32.totalorder %s107, 0
    %s110 = sadd.s32 %s109, 1
    %s111 = scalar_select %p108, %s109, %s110
    %p114 = pneg %p108
    %p115 = scmp.eq.s32.totalorder %s15, 1
    %p116 = por %p114, %p115
    %p117 = scmp.ne.s32.totalorder %s109, %s112
    %p118 = scmp.eq.s32.totalorder %s15, 0
    %p119 = por %p117, %p118
    %p120 = scmp.ne.s32.totalorder %s109, %s112
    %p121 = scmp.eq.s32.totalorder %s20, 1
    %p122 = por %p120, %p121
    %p123 = scmp.ne.s32.totalorder %s112, %s113
    %p124 = scmp.eq.s32.totalorder %s20, 0
    %p125 = por %p123, %p124
    %p126 = scmp.ne.s32.totalorder %s112, %s113
    %p127 = scmp.eq.s32.totalorder %s21, 1
    %p128 = por %p126, %p127
    %p130 = scmp.ne.s32.totalorder %s113, %s129
    %p131 = scmp.eq.s32.totalorder %s21, 0
    %p132 = por %p130, %p131
    %s134 = sadd.s32 %s133, 1
    %p137 = scmp.eq.s32.totalorder %s15, 1
    %p138 = scmp.ne.s32.totalorder %s133, %s135
    %p139 = scmp.eq.s32.totalorder %s15, 0
    %p140 = por %p138, %p139
    %p141 = scmp.ne.s32.totalorder %s133, %s135
    %p142 = scmp.eq.s32.totalorder %s20, 1
    %p143 = por %p141, %p142
    %p144 = scmp.ne.s32.totalorder %s135, %s136
    %p145 = scmp.eq.s32.totalorder %s20, 0
    %p146 = por %p144, %p145
    %p147 = scmp.ne.s32.totalorder %s135, %s136
    %p148 = scmp.eq.s32.totalorder %s21, 1
    %p149 = por %p147, %p148
    %p151 = scmp.ne.s32.totalorder %s136, %s150
    %p152 = scmp.eq.s32.totalorder %s21, 0
    %p153 = por %p151, %p152
    %s155 = sadd.s32 %s154, 1
    %p158 = scmp.eq.s32.totalorder %s15, 1
    %p159 = scmp.ne.s32.totalorder %s154, %s156
    %p160 = scmp.eq.s32.totalorder %s15, 0
    %p161 = por %p159, %p160
    %p162 = scmp.ne.s32.totalorder %s154, %s156
    %p163 = scmp.eq.s32.totalorder %s20, 1
    %p164 = por %p162, %p163
    %p165 = scmp.ne.s32.totalorder %s156, %s157
    %p166 = scmp.eq.s32.totalorder %s20, 0
    %p167 = por %p165, %p166
    %p168 = scmp.ne.s32.totalorder %s156, %s157
    %p169 = scmp.eq.s32.totalorder %s21, 1
    %p170 = por %p168, %p169
    %p172 = scmp.ne.s32.totalorder %s157, %s171
    %p173 = scmp.eq.s32.totalorder %s21, 0
    %p174 = por %p172, %p173
    %s176 = sadd.s32 %s175, 1
    %p179 = scmp.eq.s32.totalorder %s15, 1
    %p180 = scmp.ne.s32.totalorder %s175, %s177
    %p181 = scmp.eq.s32.totalorder %s15, 0
    %p182 = por %p180, %p181
    %p183 = scmp.ne.s32.totalorder %s175, %s177
    %p184 = scmp.eq.s32.totalorder %s20, 1
    %p185 = por %p183, %p184
    %p186 = scmp.ne.s32.totalorder %s177, %s178
    %p187 = scmp.eq.s32.totalorder %s20, 0
    %p188 = por %p186, %p187
    %p189 = scmp.ne.s32.totalorder %s177, %s178
    %p190 = scmp.eq.s32.totalorder %s21, 1
    %p191 = por %p189, %p190
    %p193 = scmp.ne.s32.totalorder %s178, %s192
    %p194 = scmp.eq.s32.totalorder %s21, 0
    %p195 = por %p193, %p194
    %s197 = sadd.s32 %s196, 1
    %p200 = scmp.eq.s32.totalorder %s15, 1
    %p201 = scmp.ne.s32.totalorder %s196, %s198
    %p202 = scmp.eq.s32.totalorder %s15, 0
    %p203 = por %p201, %p202
    %p204 = scmp.ne.s32.totalorder %s196, %s198
    %p205 = scmp.eq.s32.totalorder %s20, 1
    %p206 = por %p204, %p205
    %p207 = scmp.ne.s32.totalorder %s198, %s199
    %p208 = scmp.eq.s32.totalorder %s20, 0
    %p209 = por %p207, %p208
    %p210 = scmp.ne.s32.totalorder %s198, %s199
    %p211 = scmp.eq.s32.totalorder %s21, 1
    %p212 = por %p210, %p211
    %p214 = scmp.ne.s32.totalorder %s199, %s213
    %p215 = scmp.eq.s32.totalorder %s21, 0
    %p216 = por %p214, %p215
    %s218 = sadd.s32 %s217, 1
    %p221 = scmp.eq.s32.totalorder %s15, 1
    %p222 = scmp.ne.s32.totalorder %s217, %s219
    %p223 = scmp.eq.s32.totalorder %s15, 0
    %p224 = por %p222, %p223
    %p225 = scmp.ne.s32.totalorder %s217, %s219
    %p226 = scmp.eq.s32.totalorder %s20, 1
    %p227 = por %p225, %p226
    %p228 = scmp.ne.s32.totalorder %s219, %s220
    %p229 = scmp.eq.s32.totalorder %s20, 0
    %p230 = por %p228, %p229
    %p231 = scmp.ne.s32.totalorder %s219, %s220
    %p232 = scmp.eq.s32.totalorder %s21, 1
    %p233 = por %p231, %p232
    %p235 = scmp.ne.s32.totalorder %s220, %s234
    %p236 = scmp.eq.s32.totalorder %s21, 0
    %p237 = por %p235, %p236
    %s239 = sadd.s32 %s238, 1
    %p242 = scmp.eq.s32.totalorder %s15, 1
    %p243 = scmp.ne.s32.totalorder %s238, %s240
    %p244 = scmp.eq.s32.totalorder %s15, 0
    %p245 = por %p243, %p244
    %p246 = scmp.ne.s32.totalorder %s238, %s240
    %p247 = scmp.eq.s32.totalorder %s20, 1
    %p248 = por %p246, %p247
    %p249 = scmp.ne.s32.totalorder %s240, %s241
    %p250 = scmp.eq.s32.totalorder %s20, 0
    %p251 = por %p249, %p250
    %p252 = scmp.ne.s32.totalorder %s240, %s241
    %p253 = scmp.eq.s32.totalorder %s21, 1
    %p254 = por %p252, %p253
    %p256 = scmp.ne.s32.totalorder %s241, %s255
    %p257 = scmp.eq.s32.totalorder %s21, 0
    %p258 = por %p256, %p257
    %p259 = scmp.le.s32.totalorder 1, %s15
    %p260 = scmp.lt.s32.totalorder %s15, 3
    %p261 = pnand %p259, %p260
    %p262 = pneg %p261
    // Predicated region
    $region9: #{tpu_custom_call.1} parent=5 // pred_check
      _
    $region10: #{tpu_custom_call.1} parent=5 // pred_check_branch
      %264 = sbr.rel (%p261) target = $region12
    $region11: #{tpu_custom_call.1} parent=5 // pred_region
      %s265 = ssub.s32 %s15, 1
      // Predicated region
      $region13: #{tpu_custom_call.1} parent=11 // pred_check
        %p266 = pneg %p48
      $region14: #{tpu_custom_call.1} parent=11 // pred_check_branch
        %268 = sbr.rel (%p266) target = $region16
      $region15: #{tpu_custom_call.1} parent=11 // pred_region
        _
      $region16: #{tpu_custom_call.1} parent=11 // pred_fallthru
        _
      // Predicated region
      $region17: #{tpu_custom_call.1} parent=11 // pred_check
        %p269 = pneg %p69
      $region18: #{tpu_custom_call.1} parent=11 // pred_check_branch
        %271 = sbr.rel (%p269) target = $region20
      $region19: #{tpu_custom_call.1} parent=11 // pred_region
        _
      $region20: #{tpu_custom_call.1} parent=11 // pred_fallthru
        _
      // Predicated region
      $region21: #{tpu_custom_call.1} parent=11 // pred_check
        %p272 = pneg %p125
      $region22: #{tpu_custom_call.1} parent=11 // pred_check_branch
        %274 = sbr.rel (%p272) target = $region24
      $region23: #{tpu_custom_call.1} parent=11 // pred_region
        %s275 = smul.u32 16, %s25
        %p276 = scmp.lt.s32.totalorder %s275, 15
        %s277 = scalar_select %p276, %s275, 15
        %s278 = smul.addr %s277, 4
        %s279 = scalar_lea.vmem %s3, %s278
        %s280 = smul.u32 16, %s25
      $region24: #{tpu_custom_call.1} parent=11 // pred_fallthru
        _
      // Predicated region
      $region25: #{tpu_custom_call.1} parent=11 // pred_check
        %p281 = pneg %p146
      $region26: #{tpu_custom_call.1} parent=11 // pred_check_branch
        %283 = sbr.rel (%p281) target = $region28
      $region27: #{tpu_custom_call.1} parent=11 // pred_region
        _
      $region28: #{tpu_custom_call.1} parent=11 // pred_fallthru
        _
      // Predicated region
      $region29: #{tpu_custom_call.1} parent=11 // pred_check
        %p284 = pneg %p167
      $region30: #{tpu_custom_call.1} parent=11 // pred_check_branch
        %286 = sbr.rel (%p284) target = $region32
      $region31: #{tpu_custom_call.1} parent=11 // pred_region
        _
      $region32: #{tpu_custom_call.1} parent=11 // pred_fallthru
        _
      // Predicated region
      $region33: #{tpu_custom_call.1} parent=11 // pred_check
        %p287 = pneg %p188
      $region34: #{tpu_custom_call.1} parent=11 // pred_check_branch
        %289 = sbr.rel (%p287) target = $region36
      $region35: #{tpu_custom_call.1} parent=11 // pred_region
        _
      $region36: #{tpu_custom_call.1} parent=11 // pred_fallthru
        _
      // Predicated region
      $region37: #{tpu_custom_call.1} parent=11 // pred_check
        %p290 = pneg %p209
      $region38: #{tpu_custom_call.1} parent=11 // pred_check_branch
        %292 = sbr.rel (%p290) target = $region40
      $region39: #{tpu_custom_call.1} parent=11 // pred_region
        _
      $region40: #{tpu_custom_call.1} parent=11 // pred_fallthru
        _
      // Predicated region
      $region41: #{tpu_custom_call.1} parent=11 // pred_check
        %p293 = pneg %p230
      $region42: #{tpu_custom_call.1} parent=11 // pred_check_branch
        %295 = sbr.rel (%p293) target = $region44
      $region43: #{tpu_custom_call.1} parent=11 // pred_region
        _
      $region44: #{tpu_custom_call.1} parent=11 // pred_fallthru
        _
    $region12: #{tpu_custom_call.1} parent=5 // pred_fallthru
      _
    %p296 = scmp.lt.s32.totalorder %s15, 2
    // Predicated region
    $region45: #{tpu_custom_call.1} parent=5 // pred_check
      %p297 = pneg %p296
    $region46: #{tpu_custom_call.1} parent=5 // pred_check_branch
      %299 = sbr.rel (%p297) target = $region48
    $region47: #{tpu_custom_call.1} parent=5 // pred_region
      // Predicated region
      $region49: #{tpu_custom_call.1} parent=47 // pred_check
        %p300 = pneg %p93
      $region50: #{tpu_custom_call.1} parent=47 // pred_check_branch
        %302 = sbr.rel (%p300) target = $region52
      $region51: #{tpu_custom_call.1} parent=47 // pred_region
        %s303 = ssub.s32 1, %s22
        %s304 = smul.u32 %s303, %s23
        %s305 = smul.u32 16, %s304
        %p306 = scmp.lt.s32.totalorder %s305, 15
        %s307 = scalar_select %p306, %s305, 15
        %s308 = smul.addr %s307, 8
        %s309 = scalar_lea.vmem %s2, %s308
        %s310 = ssub.s32 1, %s22
        %s311 = smul.u32 %s310, %s23
        %s312 = smul.u32 16, %s311
      $region52: #{tpu_custom_call.1} parent=47 // pred_fallthru
        _
    $region48: #{tpu_custom_call.1} parent=5 // pred_fallthru
      _
    %p313 = scmp.le.s32.totalorder 1, %s15
    %p314 = scmp.lt.s32.totalorder %s15, 3
    %p315 = pnand %p313, %p314
    %p316 = pneg %p315
    // Predicated region
    $region53: #{tpu_custom_call.1} parent=5 // pred_check
      _
    $region54: #{tpu_custom_call.1} parent=5 // pred_check_branch
      %318 = sbr.rel (%p315) target = $region56
    $region55: #{tpu_custom_call.1} parent=5 // pred_region
      %s319 = ssub.s32 %s15, 1
      %p320 = pneg %p48
      %p321 = pneg %p45
      %p322 = pneg %p69
      %p323 = pneg %p66
      %s324 = ssub.s32 1, %s24
      %s325 = smul.u32 %s324, %s25
      %s326 = smul.u32 16, %s325
      %p327 = scmp.lt.s32.totalorder %s326, 15
      %s328 = scalar_select %p327, %s326, 15
      %s329 = smul.addr %s328, 8
      %s330 = scalar_lea.vmem %s2, %s329
      %p331 = pneg %p99
      %p332 = pneg %p96
      %s333 = smul.u32 16, %s25
      %p334 = scmp.lt.s32.totalorder %s333, 15
      %s335 = scalar_select %p334, %s333, 15
      %s336 = smul.addr %s335, 4
      %s337 = scalar_lea.vmem %s3, %s336
      %p338 = pneg %p125
      %p339 = pneg %p122
      %p340 = pneg %p146
      %p341 = pneg %p143
      %p342 = pneg %p167
      %p343 = pneg %p164
      %p344 = pneg %p188
      %p345 = pneg %p185
      %p346 = pneg %p209
      %p347 = pneg %p206
      %p348 = pneg %p230
      %p349 = pneg %p227
      %p350 = pneg %p251
      %p351 = pneg %p248
      %s352 = ssub.s32 1, %s24
      %s353 = smul.u32 %s352, %s25
      %s354 = smul.u32 16, %s353
      %p355 = scmp.lt.s32.totalorder %s354, 15
      %s356 = scalar_select %p355, %s354, 15
      %s357 = smul.addr %s356, 8
      %s358 = scalar_lea.vmem %s2, %s357
      %s359 = ssub.s32 1, %s24
      %s360 = smul.u32 %s359, %s25
      %s361 = smul.u32 16, %s360
      %s362 = smul.u32 16, %s25
      %p363 = scmp.lt.s32.totalorder %s362, 15
      %s364 = scalar_select %p363, %s362, 15
      %s365 = smul.addr %s364, 4
      %s366 = scalar_lea.vmem %s3, %s365
      %s367 = smul.u32 16, %s25
      %v371 = vld [vmem:[%s366] sm:$0xf]
      %v372 = vld [vmem:[%s366 + $0x4] sm:$0xf]
      %v373 = vld [vmem:[%s366 + $0x8] sm:$0xf]
      %v374 = vld [vmem:[%s366 + $0xc] sm:$0xf]
      %v375 = vld [vmem:[%s366 + $0x10] sm:$0xf]
      %v376 = vld [vmem:[%s366 + $0x14] sm:$0xf]
      %v377 = vld [vmem:[%s366 + $0x18] sm:$0xf]
      %v378 = vld [vmem:[%s366 + $0x1c] sm:$0xf]
      %v379 = vld [vmem:[%s366 + $0x20] sm:$0xf]
      %v380 = vld [vmem:[%s366 + $0x24] sm:$0xf]
      %v381 = vld [vmem:[%s366 + $0x28] sm:$0xf]
      %v382 = vld [vmem:[%s366 + $0x2c] sm:$0xf]
      %v383 = vld [vmem:[%s366 + $0x30] sm:$0xf]
      %v384 = vld [vmem:[%s366 + $0x34] sm:$0xf]
      %v385 = vld [vmem:[%s366 + $0x38] sm:$0xf]
      %v386 = vld [vmem:[%s366 + $0x3c] sm:$0xf]
      %v403 = vunpack.c.l.b16 %v371
      %v404 = vunpack.c.l.b16 %v372
      %v405 = vunpack.c.l.b16 %v373
      %v406 = vunpack.c.l.b16 %v374
      %v407 = vunpack.c.l.b16 %v375
      %v408 = vunpack.c.l.b16 %v376
      %v409 = vunpack.c.l.b16 %v377
      %v410 = vunpack.c.l.b16 %v378
      %v411 = vunpack.c.l.b16 %v379
      %v412 = vunpack.c.l.b16 %v380
      %v413 = vunpack.c.l.b16 %v381
      %v414 = vunpack.c.l.b16 %v382
      %v415 = vunpack.c.l.b16 %v383
      %v416 = vunpack.c.l.b16 %v384
      %v417 = vunpack.c.l.b16 %v385
      %v418 = vunpack.c.l.b16 %v386
      %v419 = vpack.c.b16 %v404, %v403
      %v420 = vpack.c.b16 %v406, %v405
      %v421 = vpack.c.b16 %v408, %v407
      %v422 = vpack.c.b16 %v410, %v409
      %v423 = vpack.c.b16 %v412, %v411
      %v424 = vpack.c.b16 %v414, %v413
      %v425 = vpack.c.b16 %v416, %v415
      %v426 = vpack.c.b16 %v418, %v417
      %435 = vmatprep.subr.bf16.mxu0 0
      %436 = vmatpush1.bf16.msra.mxu0 1065369472
      %437 = vmatprep.subr.bf16.mxu0 0
      %438 = vmatpush1.bf16.msra.mxu0 1065369472
      %439 = vmatprep.subr.bf16.mxu0 0
      %440 = vmatpush1.bf16.msra.mxu0 1065369472
      %441 = vmatprep.subr.bf16.mxu0 0
      %442 = vmatpush1.bf16.msra.mxu0 1065369472
      %443 = vmatprep.subr.bf16.mxu0 0
      %444 = vmatpush1.bf16.msra.mxu0 1065369472
      %445 = vmatprep.subr.bf16.mxu0 0
      %446 = vmatpush1.bf16.msra.mxu0 1065369472
      %447 = vmatprep.subr.bf16.mxu0 0
      %448 = vmatpush1.bf16.msra.mxu0 1065369472
      %449 = vmatprep.subr.bf16.mxu0 0
      %450 = vmatpush1.bf16.msra.mxu0 1065369472
      %451 = vmatprep.subr.bf16.mxu0 0
      %452 = vmatpush1.bf16.msra.mxu0 0
      %453 = vmatprep.subr.bf16.mxu0 0
      %454 = vmatpush1.bf16.msra.mxu0 0
      %455 = vmatprep.subr.bf16.mxu0 0
      %456 = vmatpush1.bf16.msra.mxu0 0
      %457 = vmatprep.subr.bf16.mxu0 0
      %458 = vmatpush1.bf16.msra.mxu0 0
      %459 = vmatprep.subr.bf16.mxu0 0
      %460 = vmatpush1.bf16.msra.mxu0 0
      %461 = vmatprep.subr.bf16.mxu0 0
      %462 = vmatpush1.bf16.msra.mxu0 0
      %463 = vmatprep.subr.bf16.mxu0 0
      %464 = vmatpush1.bf16.msra.mxu0 0
      %465 = vmatprep.subr.bf16.mxu0 0
      %466 = vmatpush1.bf16.msra.mxu0 0
      %467 = vmatprep.mubr.bf16.mxu0 0
      %468 = vmatmul.mubr.bf16.gmra.mrb[0].mxu0 %v419
      %v469 = vpop.f32.mrb[0].mxu0
      %v470 = vadd.f32 0.0, %v469
      %v471 = vpop.f32.mrb[0].mxu0
      %v472 = vpop.f32.mrb[0].mxu0
      %v473 = vadd.f32 0.0, %v472
      %v474 = vpop.f32.mrb[0].mxu0
      %475 = vmatprep.mubr.bf16.mxu0 0
      %476 = vmatmul.mubr.bf16.gmra.mrb[0].mxu0 %v420
      %v477 = vpop.f32.mrb[0].mxu0
      %v478 = vadd.f32 0.0, %v477
      %v479 = vpop.f32.mrb[0].mxu0
      %v480 = vpop.f32.mrb[0].mxu0
      %v481 = vadd.f32 0.0, %v480
      %v482 = vpop.f32.mrb[0].mxu0
      %483 = vmatprep.mubr.bf16.mxu0 0
      %484 = vmatmul.mubr.bf16.gmra.mrb[0].mxu0 %v421
      %v485 = vpop.f32.mrb[0].mxu0
      %v486 = vadd.f32 0.0, %v485
      %v487 = vpop.f32.mrb[0].mxu0
      %v488 = vpop.f32.mrb[0].mxu0
      %v489 = vadd.f32 0.0, %v488
      %v490 = vpop.f32.mrb[0].mxu0
      %491 = vmatprep.mubr.bf16.mxu0 0
      %492 = vmatmul.mubr.bf16.gmra.mrb[0].mxu0 %v422
      %v493 = vpop.f32.mrb[0].mxu0
      %v494 = vadd.f32 0.0, %v493
      %v495 = vpop.f32.mrb[0].mxu0
      %v496 = vpop.f32.mrb[0].mxu0
      %v497 = vadd.f32 0.0, %v496
      %v498 = vpop.f32.mrb[0].mxu0
      %499 = vmatprep.mubr.bf16.mxu0 0
      %500 = vmatmul.mubr.bf16.gmra.mrb[0].mxu0 %v423
      %v501 = vpop.f32.mrb[0].mxu0
      %v502 = vadd.f32 0.0, %v501
      %v503 = vpop.f32.mrb[0].mxu0
      %v504 = vpop.f32.mrb[0].mxu0
      %v505 = vadd.f32 0.0, %v504
      %v506 = vpop.f32.mrb[0].mxu0
      %507 = vmatprep.mubr.bf16.mxu0 0
      %508 = vmatmul.mubr.bf16.gmra.mrb[0].mxu0 %v424
      %v509 = vpop.f32.mrb[0].mxu0
      %v510 = vadd.f32 0.0, %v509
      %v511 = vpop.f32.mrb[0].mxu0
      %v512 = vpop.f32.mrb[0].mxu0
      %v513 = vadd.f32 0.0, %v512
      %v514 = vpop.f32.mrb[0].mxu0
      %515 = vmatprep.mubr.bf16.mxu0 0
      %516 = vmatmul.mubr.bf16.gmra.mrb[0].mxu0 %v425
      %v517 = vpop.f32.mrb[0].mxu0
      %v518 = vadd.f32 0.0, %v517
      %v519 = vpop.f32.mrb[0].mxu0
      %v520 = vpop.f32.mrb[0].mxu0
      %v521 = vadd.f32 0.0, %v520
      %v522 = vpop.f32.mrb[0].mxu0
      %523 = vmatprep.mubr.bf16.mxu0 0
      %524 = vmatmul.mubr.bf16.gmra.mrb[0].mxu0 %v426
      %v525 = vpop.f32.mrb[0].mxu0
      %v526 = vadd.f32 0.0, %v525
      %v527 = vpop.f32.mrb[0].mxu0
      %v528 = vpop.f32.mrb[0].mxu0
      %v529 = vadd.f32 0.0, %v528
      %v530 = vpop.f32.mrb[0].mxu0
      %531 = vdwg.mxu0
      %vm532 = vcmp.gt.f32.partialorder %v470, 0.0
      %vm533 = vcmp.gt.f32.partialorder %v473, 0.0
      %vm534 = vcmp.gt.f32.partialorder %v478, 0.0
      %vm535 = vcmp.gt.f32.partialorder %v481, 0.0
      %vm536 = vcmp.gt.f32.partialorder %v486, 0.0
      %vm537 = vcmp.gt.f32.partialorder %v489, 0.0
      %vm538 = vcmp.gt.f32.partialorder %v494, 0.0
      %vm539 = vcmp.gt.f32.partialorder %v497, 0.0
      %vm540 = vcmp.gt.f32.partialorder %v502, 0.0
      %vm541 = vcmp.gt.f32.partialorder %v505, 0.0
      %vm542 = vcmp.gt.f32.partialorder %v510, 0.0
      %vm543 = vcmp.gt.f32.partialorder %v513, 0.0
      %vm544 = vcmp.gt.f32.partialorder %v518, 0.0
      %vm545 = vcmp.gt.f32.partialorder %v521, 0.0
      %vm546 = vcmp.gt.f32.partialorder %v526, 0.0
      %vm547 = vcmp.gt.f32.partialorder %v529, 0.0
      %v548 = vmax.f32 %v470, 1.0
      %v549 = vmax.f32 %v473, 1.0
      %v550 = vmax.f32 %v478, 1.0
      %v551 = vmax.f32 %v481, 1.0
      %v552 = vmax.f32 %v486, 1.0
      %v553 = vmax.f32 %v489, 1.0
      %v554 = vmax.f32 %v494, 1.0
      %v555 = vmax.f32 %v497, 1.0
      %v556 = vmax.f32 %v502, 1.0
      %v557 = vmax.f32 %v505, 1.0
      %v558 = vmax.f32 %v510, 1.0
      %v559 = vmax.f32 %v513, 1.0
      %v560 = vmax.f32 %v518, 1.0
      %v561 = vmax.f32 %v521, 1.0
      %v562 = vmax.f32 %v526, 1.0
      %v563 = vmax.f32 %v529, 1.0
      %v564 = vrcp.pop %v548
      %v565 = vrcp.pop %v549
      %v566 = vrcp.pop %v550
      %v567 = vrcp.pop %v551
      %v568 = vrcp.pop %v552
      %v569 = vrcp.pop %v553
      %v570 = vrcp.pop %v554
      %v571 = vrcp.pop %v555
      %v572 = vrcp.pop %v556
      %v573 = vrcp.pop %v557
      %v574 = vrcp.pop %v558
      %v575 = vrcp.pop %v559
      %v576 = vrcp.pop %v560
      %v577 = vrcp.pop %v561
      %v578 = vrcp.pop %v562
      %v579 = vrcp.pop %v563
      %v580 = vsel %vm532, %v564, 0.0
      %v581 = vsel %vm533, %v565, 0.0
      %v582 = vsel %vm534, %v566, 0.0
      %v583 = vsel %vm535, %v567, 0.0
      %v584 = vsel %vm536, %v568, 0.0
      %v585 = vsel %vm537, %v569, 0.0
      %v586 = vsel %vm538, %v570, 0.0
      %v587 = vsel %vm539, %v571, 0.0
      %v588 = vsel %vm540, %v572, 0.0
      %v589 = vsel %vm541, %v573, 0.0
      %v590 = vsel %vm542, %v574, 0.0
      %v591 = vsel %vm543, %v575, 0.0
      %v592 = vsel %vm544, %v576, 0.0
      %v593 = vsel %vm545, %v577, 0.0
      %v594 = vsel %vm546, %v578, 0.0
      %v595 = vsel %vm547, %v579, 0.0
      %p596 = scmp.eq.s32.totalorder %s24, 0
      %p597 = scmp.eq.s32.totalorder %s25, 0
      %p598 = pnand %p596, %p597
      %p599 = pneg %p598
      // Predicated region
      $region57: #{tpu_custom_call.1} parent=55 // pred_check
        _
      $region58: #{tpu_custom_call.1} parent=55 // pred_check_branch
        %601 = sbr.rel (%p598) target = $region60
      $region59: #{tpu_custom_call.1} parent=55 // pred_region
        %v602 = vld [vmem:[%s0] sm:$0xff]
        %v603 = vld [vmem:[%s0 + $0x8] sm:$0xff]
        %v604 = vld [vmem:[%s0 + $0x10] sm:$0xff]
        %v605 = vld [vmem:[%s0 + $0x18] sm:$0xff]
        %v606 = vld [vmem:[%s0 + $0x20] sm:$0xff]
        %v607 = vld [vmem:[%s0 + $0x28] sm:$0xff]
        %v608 = vld [vmem:[%s0 + $0x30] sm:$0xff]
        %v609 = vld [vmem:[%s0 + $0x38] sm:$0xff]
        %v610 = vld [vmem:[%s0 + $0x40] sm:$0xff]
        %v611 = vld [vmem:[%s0 + $0x48] sm:$0xff]
        %v612 = vld [vmem:[%s0 + $0x50] sm:$0xff]
        %v613 = vld [vmem:[%s0 + $0x58] sm:$0xff]
        %v614 = vld [vmem:[%s0 + $0x60] sm:$0xff]
        %v615 = vld [vmem:[%s0 + $0x68] sm:$0xff]
        %v616 = vld [vmem:[%s0 + $0x70] sm:$0xff]
        %v617 = vld [vmem:[%s0 + $0x78] sm:$0xff]
        %v618 = vld [vmem:[%s5] sm:$0xff]
        %v619 = vld [vmem:[%s5 + $0x8] sm:$0xff]
        %vm620 = vcmask 130048
        %v622 = vsel %vm620, %v602, 0
        %v625 = vsel %vm620, %v603, 0
        %v628 = vsel %vm620, %v604, 0
        %v631 = vsel %vm620, %v605, 0
        %v634 = vsel %vm620, %v606, 0
        %v637 = vsel %vm620, %v607, 0
        %v640 = vsel %vm620, %v608, 0
        %v643 = vsel %vm620, %v609, 0
        %v646 = vsel %vm620, %v610, 0
        %v649 = vsel %vm620, %v611, 0
        %v652 = vsel %vm620, %v612, 0
        %v655 = vsel %vm620, %v613, 0
        %v658 = vsel %vm620, %v614, 0
        %v661 = vsel %vm620, %v615, 0
        %v664 = vsel %vm620, %v616, 0
        %v667 = vsel %vm620, %v617, 0
        %669 = vmatprep.subr.mxu0 0.0
        %670 = vmatpush1.msra.mxu0 %v618
        %671 = vmatprep.subr.mxu0 0.0
        %672 = vmatpush1.msra.mxu0 %v619
        %673 = vmatprep.subr.mxu0 0.0
        %674 = vmatpush1.msra.mxu0 0.0
        %675 = vmatprep.subr.mxu0 0.0
        %676 = vmatpush1.msra.mxu0 0.0
        %677 = vmatprep.subr.mxu0 0.0
        %678 = vmatpush1.msra.mxu0 0.0
        %679 = vmatprep.subr.mxu0 0.0
        %680 = vmatpush1.msra.mxu0 0.0
        %681 = vmatprep.subr.mxu0 0.0
        %682 = vmatpush1.msra.mxu0 0.0
        %683 = vmatprep.subr.mxu0 0.0
        %684 = vmatpush1.msra.mxu0 0.0
        %685 = vmatprep.subr.mxu0 0.0
        %686 = vmatpush1.msra.mxu0 0.0
        %687 = vmatprep.subr.mxu0 0.0
        %688 = vmatpush1.msra.mxu0 0.0
        %689 = vmatprep.subr.mxu0 0.0
        %690 = vmatpush1.msra.mxu0 0.0
        %691 = vmatprep.subr.mxu0 0.0
        %692 = vmatpush1.msra.mxu0 0.0
        %693 = vmatprep.subr.mxu0 0.0
        %694 = vmatpush1.msra.mxu0 0.0
        %695 = vmatprep.subr.mxu0 0.0
        %696 = vmatpush1.msra.mxu0 0.0
        %697 = vmatprep.subr.mxu0 0.0
        %698 = vmatpush1.msra.mxu0 0.0
        %699 = vmatprep.subr.mxu0 0.0
        %700 = vmatpush1.msra.mxu0 0.0
        %701 = vmatprep.subr.mxu0 0.0
        %702 = vmatpush1.msra.mxu0 0.0
        %703 = vmatprep.subr.mxu0 0.0
        %704 = vmatpush1.msra.mxu0 0.0
        %705 = vmatprep.subr.mxu0 0.0
        %706 = vmatpush1.msra.mxu0 0.0
        %707 = vmatprep.subr.mxu0 0.0
        %708 = vmatpush1.msra.mxu0 0.0
        %709 = vmatprep.subr.mxu0 0.0
        %710 = vmatpush1.msra.mxu0 0.0
        %711 = vmatprep.subr.mxu0 0.0
        %712 = vmatpush1.msra.mxu0 0.0
        %713 = vmatprep.subr.mxu0 0.0
        %714 = vmatpush1.msra.mxu0 0.0
        %715 = vmatprep.subr.mxu0 0.0
        %716 = vmatpush1.msra.mxu0 0.0
        %717 = vmatprep.subr.mxu0 0.0
        %718 = vmatpush1.msra.mxu0 0.0
        %719 = vmatprep.subr.mxu0 0.0
        %720 = vmatpush1.msra.mxu0 0.0
        %721 = vmatprep.subr.mxu0 0.0
        %722 = vmatpush1.msra.mxu0 0.0
        %723 = vmatprep.subr.mxu0 0.0
        %724 = vmatpush1.msra.mxu0 0.0
        %725 = vmatprep.subr.mxu0 0.0
        %726 = vmatpush1.msra.mxu0 0.0
        %727 = vmatprep.subr.mxu0 0.0
        %728 = vmatpush1.msra.mxu0 0.0
        %729 = vmatprep.subr.mxu0 0.0
        %730 = vmatpush1.msra.mxu0 0.0
        %731 = vmatprep.subr.mxu0 0.0
        %732 = vmatpush1.msra.mxu0 0.0
        %733 = vmatprep.mubr.f32.mxu0 0.0
        %734 = vmatmul.mubr.f32.gmra.mrb[0].mxu0 %v622
        %v735 = vpop.f32.mrb[0].mxu0
        %v736 = vadd.f32 0.0, %v735
        %v737 = vpop.f32.mrb[0].mxu0
        %738 = vmatprep.mubr.f32.mxu0 0.0
        %739 = vmatmul.mubr.f32.gmra.mrb[0].mxu0 %v625
        %v740 = vpop.f32.mrb[0].mxu0
        %v741 = vadd.f32 0.0, %v740
        %v742 = vpop.f32.mrb[0].mxu0
        %743 = vmatprep.mubr.f32.mxu0 0.0
        %744 = vmatmul.mubr.f32.gmra.mrb[0].mxu0 %v628
        %v745 = vpop.f32.mrb[0].mxu0
        %v746 = vadd.f32 0.0, %v745
        %v747 = vpop.f32.mrb[0].mxu0
        %748 = vmatprep.mubr.f32.mxu0 0.0
        %749 = vmatmul.mubr.f32.gmra.mrb[0].mxu0 %v631
        %v750 = vpop.f32.mrb[0].mxu0
        %v751 = vadd.f32 0.0, %v750
        %v752 = vpop.f32.mrb[0].mxu0
        %753 = vmatprep.mubr.f32.mxu0 0.0
        %754 = vmatmul.mubr.f32.gmra.mrb[0].mxu0 %v634
        %v755 = vpop.f32.mrb[0].mxu0
        %v756 = vadd.f32 0.0, %v755
        %v757 = vpop.f32.mrb[0].mxu0
        %758 = vmatprep.mubr.f32.mxu0 0.0
        %759 = vmatmul.mubr.f32.gmra.mrb[0].mxu0 %v637
        %v760 = vpop.f32.mrb[0].mxu0
        %v761 = vadd.f32 0.0, %v760
        %v762 = vpop.f32.mrb[0].mxu0
        %763 = vmatprep.mubr.f32.mxu0 0.0
        %764 = vmatmul.mubr.f32.gmra.mrb[0].mxu0 %v640
        %v765 = vpop.f32.mrb[0].mxu0
        %v766 = vadd.f32 0.0, %v765
        %v767 = vpop.f32.mrb[0].mxu0
        %768 = vmatprep.mubr.f32.mxu0 0.0
        %769 = vmatmul.mubr.f32.gmra.mrb[0].mxu0 %v643
        %v770 = vpop.f32.mrb[0].mxu0
        %v771 = vadd.f32 0.0, %v770
        %v772 = vpop.f32.mrb[0].mxu0
        %773 = vmatprep.mubr.f32.mxu0 0.0
        %774 = vmatmul.mubr.f32.gmra.mrb[0].mxu0 %v646
        %v775 = vpop.f32.mrb[0].mxu0
        %v776 = vadd.f32 0.0, %v775
        %v777 = vpop.f32.mrb[0].mxu0
        %778 = vmatprep.mubr.f32.mxu0 0.0
        %779 = vmatmul.mubr.f32.gmra.mrb[0].mxu0 %v649
        %v780 = vpop.f32.mrb[0].mxu0
        %v781 = vadd.f32 0.0, %v780
        %v782 = vpop.f32.mrb[0].mxu0
        %783 = vmatprep.mubr.f32.mxu0 0.0
        %784 = vmatmul.mubr.f32.gmra.mrb[0].mxu0 %v652
        %v785 = vpop.f32.mrb[0].mxu0
        %v786 = vadd.f32 0.0, %v785
        %v787 = vpop.f32.mrb[0].mxu0
        %788 = vmatprep.mubr.f32.mxu0 0.0
        %789 = vmatmul.mubr.f32.gmra.mrb[0].mxu0 %v655
        %v790 = vpop.f32.mrb[0].mxu0
        %v791 = vadd.f32 0.0, %v790
        %v792 = vpop.f32.mrb[0].mxu0
        %793 = vmatprep.mubr.f32.mxu0 0.0
        %794 = vmatmul.mubr.f32.gmra.mrb[0].mxu0 %v658
        %v795 = vpop.f32.mrb[0].mxu0
        %v796 = vadd.f32 0.0, %v795
        %v797 = vpop.f32.mrb[0].mxu0
        %798 = vmatprep.mubr.f32.mxu0 0.0
        %799 = vmatmul.mubr.f32.gmra.mrb[0].mxu0 %v661
        %v800 = vpop.f32.mrb[0].mxu0
        %v801 = vadd.f32 0.0, %v800
        %v802 = vpop.f32.mrb[0].mxu0
        %803 = vmatprep.mubr.f32.mxu0 0.0
        %804 = vmatmul.mubr.f32.gmra.mrb[0].mxu0 %v664
        %v805 = vpop.f32.mrb[0].mxu0
        %v806 = vadd.f32 0.0, %v805
        %v807 = vpop.f32.mrb[0].mxu0
        %808 = vmatprep.mubr.f32.mxu0 0.0
        %809 = vmatmul.mubr.f32.gmra.mrb[0].mxu0 %v667
        %v810 = vpop.f32.mrb[0].mxu0
        %v811 = vadd.f32 0.0, %v810
        %v812 = vpop.f32.mrb[0].mxu0
        %813 = vdwg.mxu0
        %v814 = vpack.c.bf16 %v741, %v736
        %v815 = vpack.c.bf16 %v751, %v746
        %v816 = vpack.c.bf16 %v761, %v756
        %v817 = vpack.c.bf16 %v771, %v766
        %v818 = vpack.c.bf16 %v781, %v776
        %v819 = vpack.c.bf16 %v791, %v786
        %v820 = vpack.c.bf16 %v801, %v796
        %v821 = vpack.c.bf16 %v811, %v806
        %vm822 = vcmask 261120
        %823 = vst.msk [vmem:[#allocation2] sm:$0xff] %vm822, %v814
        %824 = vst.msk [vmem:[#allocation2 + $0x8] sm:$0xff] %vm822, %v815
        %825 = vst.msk [vmem:[#allocation2 + $0x10] sm:$0xff] %vm822, %v816
        %826 = vst.msk [vmem:[#allocation2 + $0x18] sm:$0xff] %vm822, %v817
        %827 = vst.msk [vmem:[#allocation2 + $0x20] sm:$0xff] %vm822, %v818
        %828 = vst.msk [vmem:[#allocation2 + $0x28] sm:$0xff] %vm822, %v819
        %829 = vst.msk [vmem:[#allocation2 + $0x30] sm:$0xff] %vm822, %v820
        %830 = vst.msk [vmem:[#allocation2 + $0x38] sm:$0xff] %vm822, %v821
        %s831 = scalar_lea.vmem %s5, 16
        %v832 = vld [vmem:[%s831] sm:$0xff]
        %v833 = vld [vmem:[%s831 + $0x8] sm:$0xff]
        %834 = vmatprep.subr.mxu0 0.0
        %835 = vmatpush1.msra.mxu0 %v832
        %836 = vmatprep.subr.mxu0 0.0
        %837 = vmatpush1.msra.mxu0 %v833
        %838 = vmatprep.subr.mxu0 0.0
        %839 = vmatpush1.msra.mxu0 0.0
        %840 = vmatprep.subr.mxu0 0.0
        %841 = vmatpush1.msra.mxu0 0.0
        %842 = vmatprep.subr.mxu0 0.0
        %843 = vmatpush1.msra.mxu0 0.0
        %844 = vmatprep.subr.mxu0 0.0
        %845 = vmatpush1.msra.mxu0 0.0
        %846 = vmatprep.subr.mxu0 0.0
        %847 = vmatpush1.msra.mxu0 0.0
        %848 = vmatprep.subr.mxu0 0.0
        %849 = vmatpush1.msra.mxu0 0.0
        %850 = vmatprep.subr.mxu0 0.0
        %851 = vmatpush1.msra.mxu0 0.0
        %852 = vmatprep.subr.mxu0 0.0
        %853 = vmatpush1.msra.mxu0 0.0
        %854 = vmatprep.subr.mxu0 0.0
        %855 = vmatpush1.msra.mxu0 0.0
        %856 = vmatprep.subr.mxu0 0.0
        %857 = vmatpush1.msra.mxu0 0.0
        %858 = vmatprep.subr.mxu0 0.0
        %859 = vmatpush1.msra.mxu0 0.0
        %860 = vmatprep.subr.mxu0 0.0
        %861 = vmatpush1.msra.mxu0 0.0
        %862 = vmatprep.subr.mxu0 0.0
        %863 = vmatpush1.msra.mxu0 0.0
        %864 = vmatprep.subr.mxu0 0.0
        %865 = vmatpush1.msra.mxu0 0.0
        %866 = vmatprep.subr.mxu0 0.0
        %867 = vmatpush1.msra.mxu0 0.0
        %868 = vmatprep.subr.mxu0 0.0
        %869 = vmatpush1.msra.mxu0 0.0
        %870 = vmatprep.subr.mxu0 0.0
        %871 = vmatpush1.msra.mxu0 0.0
        %872 = vmatprep.subr.mxu0 0.0
        %873 = vmatpush1.msra.mxu0 0.0
        %874 = vmatprep.subr.mxu0 0.0
        %875 = vmatpush1.msra.mxu0 0.0
        %876 = vmatprep.subr.mxu0 0.0
        %877 = vmatpush1.msra.mxu0 0.0
        %878 = vmatprep.subr.mxu0 0.0
        %879 = vmatpush1.msra.mxu0 0.0
        %880 = vmatprep.subr.mxu0 0.0
        %881 = vmatpush1.msra.mxu0 0.0
        %882 = vmatprep.subr.mxu0 0.0
        %883 = vmatpush1.msra.mxu0 0.0
        %884 = vmatprep.subr.mxu0 0.0
        %885 = vmatpush1.msra.mxu0 0.0
        %886 = vmatprep.subr.mxu0 0.0
        %887 = vmatpush1.msra.mxu0 0.0
        %888 = vmatprep.subr.mxu0 0.0
        %889 = vmatpush1.msra.mxu0 0.0
        %890 = vmatprep.subr.mxu0 0.0
        %891 = vmatpush1.msra.mxu0 0.0
        %892 = vmatprep.subr.mxu0 0.0
        %893 = vmatpush1.msra.mxu0 0.0
        %894 = vmatprep.subr.mxu0 0.0
        %895 = vmatpush1.msra.mxu0 0.0
        %896 = vmatprep.subr.mxu0 0.0
        %897 = vmatpush1.msra.mxu0 0.0
        %898 = vmatprep.mubr.f32.mxu0 0.0
        %899 = vmatmul.mubr.f32.gmra.mrb[0].mxu0 %v622
        %v900 = vpop.f32.mrb[0].mxu0
        %v901 = vadd.f32 0.0, %v900
        %v902 = vpop.f32.mrb[0].mxu0
        %903 = vmatprep.mubr.f32.mxu0 0.0
        %904 = vmatmul.mubr.f32.gmra.mrb[0].mxu0 %v625
        %v905 = vpop.f32.mrb[0].mxu0
        %v906 = vadd.f32 0.0, %v905
        %v907 = vpop.f32.mrb[0].mxu0
        %908 = vmatprep.mubr.f32.mxu0 0.0
        %909 = vmatmul.mubr.f32.gmra.mrb[0].mxu0 %v628
        %v910 = vpop.f32.mrb[0].mxu0
        %v911 = vadd.f32 0.0, %v910
        %v912 = vpop.f32.mrb[0].mxu0
        %913 = vmatprep.mubr.f32.mxu0 0.0
        %914 = vmatmul.mubr.f32.gmra.mrb[0].mxu0 %v631
        %v915 = vpop.f32.mrb[0].mxu0
        %v916 = vadd.f32 0.0, %v915
        %v917 = vpop.f32.mrb[0].mxu0
        %918 = vmatprep.mubr.f32.mxu0 0.0
        %919 = vmatmul.mubr.f32.gmra.mrb[0].mxu0 %v634
        %v920 = vpop.f32.mrb[0].mxu0
        %v921 = vadd.f32 0.0, %v920
        %v922 = vpop.f32.mrb[0].mxu0
        %923 = vmatprep.mubr.f32.mxu0 0.0
        %924 = vmatmul.mubr.f32.gmra.mrb[0].mxu0 %v637
        %v925 = vpop.f32.mrb[0].mxu0
        %v926 = vadd.f32 0.0, %v925
        %v927 = vpop.f32.mrb[0].mxu0
        %928 = vmatprep.mubr.f32.mxu0 0.0
        %929 = vmatmul.mubr.f32.gmra.mrb[0].mxu0 %v640
        %v930 = vpop.f32.mrb[0].mxu0
        %v931 = vadd.f32 0.0, %v930
        %v932 = vpop.f32.mrb[0].mxu0
        %933 = vmatprep.mubr.f32.mxu0 0.0
        %934 = vmatmul.mubr.f32.gmra.mrb[0].mxu0 %v643
        %v935 = vpop.f32.mrb[0].mxu0
        %v936 = vadd.f32 0.0, %v935
        %v937 = vpop.f32.mrb[0].mxu0
        %938 = vmatprep.mubr.f32.mxu0 0.0
        %939 = vmatmul.mubr.f32.gmra.mrb[0].mxu0 %v646
        %v940 = vpop.f32.mrb[0].mxu0
        %v941 = vadd.f32 0.0, %v940
        %v942 = vpop.f32.mrb[0].mxu0
        %943 = vmatprep.mubr.f32.mxu0 0.0
        %944 = vmatmul.mubr.f32.gmra.mrb[0].mxu0 %v649
        %v945 = vpop.f32.mrb[0].mxu0
        %v946 = vadd.f32 0.0, %v945
        %v947 = vpop.f32.mrb[0].mxu0
        %948 = vmatprep.mubr.f32.mxu0 0.0
        %949 = vmatmul.mubr.f32.gmra.mrb[0].mxu0 %v652
        %v950 = vpop.f32.mrb[0].mxu0
        %v951 = vadd.f32 0.0, %v950
        %v952 = vpop.f32.mrb[0].mxu0
        %953 = vmatprep.mubr.f32.mxu0 0.0
        %954 = vmatmul.mubr.f32.gmra.mrb[0].mxu0 %v655
        %v955 = vpop.f32.mrb[0].mxu0
        %v956 = vadd.f32 0.0, %v955
        %v957 = vpop.f32.mrb[0].mxu0
        %958 = vmatprep.mubr.f32.mxu0 0.0
        %959 = vmatmul.mubr.f32.gmra.mrb[0].mxu0 %v658
        %v960 = vpop.f32.mrb[0].mxu0
        %v961 = vadd.f32 0.0, %v960
        %v962 = vpop.f32.mrb[0].mxu0
        %963 = vmatprep.mubr.f32.mxu0 0.0
        %964 = vmatmul.mubr.f32.gmra.mrb[0].mxu0 %v661
        %v965 = vpop.f32.mrb[0].mxu0
        %v966 = vadd.f32 0.0, %v965
        %v967 = vpop.f32.mrb[0].mxu0
        %968 = vmatprep.mubr.f32.mxu0 0.0
        %969 = vmatmul.mubr.f32.gmra.mrb[0].mxu0 %v664
        %v970 = vpop.f32.mrb[0].mxu0
        %v971 = vadd.f32 0.0, %v970
        %v972 = vpop.f32.mrb[0].mxu0
        %973 = vmatprep.mubr.f32.mxu0 0.0
        %974 = vmatmul.mubr.f32.gmra.mrb[0].mxu0 %v667
        %v975 = vpop.f32.mrb[0].mxu0
        %v976 = vadd.f32 0.0, %v975
        %v977 = vpop.f32.mrb[0].mxu0
        %978 = vdwg.mxu0
        %v979 = vpack.c.bf16 %v906, %v901
        %v980 = vpack.c.bf16 %v916, %v911
        %v981 = vpack.c.bf16 %v926, %v921
        %v982 = vpack.c.bf16 %v936, %v931
        %v983 = vpack.c.bf16 %v946, %v941
        %v984 = vpack.c.bf16 %v956, %v951
        %v985 = vpack.c.bf16 %v966, %v961
        %v986 = vpack.c.bf16 %v976, %v971
        %s987 = scalar_lea.vmem [#allocation2], 64
        %988 = vst.msk [vmem:[%s987] sm:$0xff] %vm822, %v979
        %989 = vst.msk [vmem:[%s987 + $0x8] sm:$0xff] %vm822, %v980
        %990 = vst.msk [vmem:[%s987 + $0x10] sm:$0xff] %vm822, %v981
        %991 = vst.msk [vmem:[%s987 + $0x18] sm:$0xff] %vm822, %v982
        %992 = vst.msk [vmem:[%s987 + $0x20] sm:$0xff] %vm822, %v983
        %993 = vst.msk [vmem:[%s987 + $0x28] sm:$0xff] %vm822, %v984
        %994 = vst.msk [vmem:[%s987 + $0x30] sm:$0xff] %vm822, %v985
        %995 = vst.msk [vmem:[%s987 + $0x38] sm:$0xff] %vm822, %v986
        %996 = vst [vmem:[#allocation3] sm:$0xff] 0.0
        %997 = vst [vmem:[#allocation3 + $0x8] sm:$0xff] 0.0
        %998 = vst [vmem:[#allocation3 + $0x10] sm:$0xff] 0.0
        %999 = vst [vmem:[#allocation3 + $0x18] sm:$0xff] 0.0
        %1000 = vst [vmem:[#allocation3 + $0x20] sm:$0xff] 0.0
        %1001 = vst [vmem:[#allocation3 + $0x28] sm:$0xff] 0.0
        %1002 = vst [vmem:[#allocation3 + $0x30] sm:$0xff] 0.0
        %1003 = vst [vmem:[#allocation3 + $0x38] sm:$0xff] 0.0
        %1004 = vst [vmem:[#allocation4] sm:$0x1] 0.0
      $region60: #{tpu_custom_call.1} parent=55 // pred_fallthru
        _
      // Predicated region
      $region61: #{tpu_custom_call.1} parent=55 // pred_check
        %p1005 = pneg %p596
      $region62: #{tpu_custom_call.1} parent=55 // pred_check_branch
        %1007 = sbr.rel (%p1005) target = $region64
      $region63: #{tpu_custom_call.1} parent=55 // pred_region
        %v1008 = vld [vmem:[#allocation4] sm:$0x1]
        %1009 = vmatprep.subr.bf16.mxu0 0
        %1010 = vmatpush1.bf16.msra.mxu0 %v419
        %1011 = vmatprep.subr.bf16.mxu0 0
        %1012 = vmatpush1.bf16.msra.mxu0 %v420
        %1013 = vmatprep.subr.bf16.mxu0 0
        %1014 = vmatpush1.bf16.msra.mxu0 %v421
        %1015 = vmatprep.subr.bf16.mxu0 0
        %1016 = vmatpush1.bf16.msra.mxu0 %v422
        %1017 = vmatprep.subr.bf16.mxu0 0
        %1018 = vmatpush1.bf16.msra.mxu0 %v423
        %1019 = vmatprep.subr.bf16.mxu0 0
        %1020 = vmatpush1.bf16.msra.mxu0 %v424
        %1021 = vmatprep.subr.bf16.mxu0 0
        %1022 = vmatpush1.bf16.msra.mxu0 %v425
        %1023 = vmatprep.subr.bf16.mxu0 0
        %1024 = vmatpush1.bf16.msra.mxu0 %v426
        %1025 = vmatprep.subr.bf16.mxu0 0
        %1026 = vmatpush1.bf16.msra.mxu0 0
        %1027 = vmatprep.subr.bf16.mxu0 0
        %1028 = vmatpush1.bf16.msra.mxu0 0
        %1029 = vmatprep.subr.bf16.mxu0 0
        %1030 = vmatpush1.bf16.msra.mxu0 0
        %1031 = vmatprep.subr.bf16.mxu0 0
        %1032 = vmatpush1.bf16.msra.mxu0 0
        %1033 = vmatprep.subr.bf16.mxu0 0
        %1034 = vmatpush1.bf16.msra.mxu0 0
        %1035 = vmatprep.subr.bf16.mxu0 0
        %1036 = vmatpush1.bf16.msra.mxu0 0
        %1037 = vmatprep.subr.bf16.mxu0 0
        %1038 = vmatpush1.bf16.msra.mxu0 0
        %1039 = vmatprep.subr.bf16.mxu0 0
        %1040 = vmatpush1.bf16.msra.mxu0 0
        %1041 = vmatprep.mubr.bf16.mxu0 0
        %1042 = vmatmul.mubr.bf16.gmra.mrb[0].mxu0 1065369472
        %v1043 = vpop.f32.mrb[0].mxu0
        %v1044 = vadd.f32 0.0, %v1043
        %v1045 = vpop.f32.mrb[0].mxu0
        %v1046 = vpop.f32.mrb[0].mxu0
        %v1047 = vpop.f32.mrb[0].mxu0
        %1048 = vdwg.mxu0
        %v1049 = vadd.f32 %v1008, %v1044
        %1050 = vst [vmem:[#allocation4] sm:$0x1] %v1049
        %v1051 = vsub.bf16 %v371, 1065369472
        %v1052 = vsub.bf16 %v372, 1065369472
        %v1053 = vsub.bf16 %v373, 1065369472
        %v1054 = vsub.bf16 %v374, 1065369472
        %v1055 = vsub.bf16 %v375, 1065369472
        %v1056 = vsub.bf16 %v376, 1065369472
        %v1057 = vsub.bf16 %v377, 1065369472
        %v1058 = vsub.bf16 %v378, 1065369472
        %v1059 = vsub.bf16 %v379, 1065369472
        %v1060 = vsub.bf16 %v380, 1065369472
        %v1061 = vsub.bf16 %v381, 1065369472
        %v1062 = vsub.bf16 %v382, 1065369472
        %v1063 = vsub.bf16 %v383, 1065369472
        %v1064 = vsub.bf16 %v384, 1065369472
        %v1065 = vsub.bf16 %v385, 1065369472
        %v1066 = vsub.bf16 %v386, 1065369472
        %v1067 = vmul.bf16 %v1051, 1900704074
        %v1068 = vmul.bf16 %v1052, 1900704074
        %v1069 = vmul.bf16 %v1053, 1900704074
        %v1070 = vmul.bf16 %v1054, 1900704074
        %v1071 = vmul.bf16 %v1055, 1900704074
        %v1072 = vmul.bf16 %v1056, 1900704074
        %v1073 = vmul.bf16 %v1057, 1900704074
        %v1074 = vmul.bf16 %v1058, 1900704074
        %v1075 = vmul.bf16 %v1059, 1900704074
        %v1076 = vmul.bf16 %v1060, 1900704074
        %v1077 = vmul.bf16 %v1061, 1900704074
        %v1078 = vmul.bf16 %v1062, 1900704074
        %v1079 = vmul.bf16 %v1063, 1900704074
        %v1080 = vmul.bf16 %v1064, 1900704074
        %v1081 = vmul.bf16 %v1065, 1900704074
        %v1082 = vmul.bf16 %v1066, 1900704074
        %v1083 = vld [vmem:[%s358] sm:$0xff]
        %v1084 = vld [vmem:[%s358 + $0x8] sm:$0xff]
        %v1085 = vld [vmem:[%s358 + $0x10] sm:$0xff]
        %v1086 = vld [vmem:[%s358 + $0x18] sm:$0xff]
        %v1087 = vld [vmem:[%s358 + $0x20] sm:$0xff]
        %v1088 = vld [vmem:[%s358 + $0x28] sm:$0xff]
        %v1089 = vld [vmem:[%s358 + $0x30] sm:$0xff]
        %v1090 = vld [vmem:[%s358 + $0x38] sm:$0xff]
        %v1091 = vld [vmem:[%s358 + $0x40] sm:$0xff]
        %v1092 = vld [vmem:[%s358 + $0x48] sm:$0xff]
        %v1093 = vld [vmem:[%s358 + $0x50] sm:$0xff]
        %v1094 = vld [vmem:[%s358 + $0x58] sm:$0xff]
        %v1095 = vld [vmem:[%s358 + $0x60] sm:$0xff]
        %v1096 = vld [vmem:[%s358 + $0x68] sm:$0xff]
        %v1097 = vld [vmem:[%s358 + $0x70] sm:$0xff]
        %v1098 = vld [vmem:[%s358 + $0x78] sm:$0xff]
        %v1099 = vld [vmem:[%s1] sm:$0x1]
        %1101 = vset.pattern.permute.xlu0 0
        %1102 = vperm.xlu0 %1101, %v1083
        %v1103 = vpop.permute.xlu0 %1102
        %1106 = vset.pattern.permute.xlu0 0
        %1107 = vperm.xlu0 %1106, %v1084
        %v1108 = vpop.permute.xlu0 %1107
        %1111 = vset.pattern.permute.xlu0 0
        %1112 = vperm.xlu0 %1111, %v1085
        %v1113 = vpop.permute.xlu0 %1112
        %1116 = vset.pattern.permute.xlu0 0
        %1117 = vperm.xlu0 %1116, %v1086
        %v1118 = vpop.permute.xlu0 %1117
        %1121 = vset.pattern.permute.xlu0 0
        %1122 = vperm.xlu0 %1121, %v1087
        %v1123 = vpop.permute.xlu0 %1122
        %1126 = vset.pattern.permute.xlu0 0
        %1127 = vperm.xlu0 %1126, %v1088
        %v1128 = vpop.permute.xlu0 %1127
        %1131 = vset.pattern.permute.xlu0 0
        %1132 = vperm.xlu0 %1131, %v1089
        %v1133 = vpop.permute.xlu0 %1132
        %1136 = vset.pattern.permute.xlu0 0
        %1137 = vperm.xlu0 %1136, %v1090
        %v1138 = vpop.permute.xlu0 %1137
        %1141 = vset.pattern.permute.xlu0 0
        %1142 = vperm.xlu0 %1141, %v1091
        %v1143 = vpop.permute.xlu0 %1142
        %1146 = vset.pattern.permute.xlu0 0
        %1147 = vperm.xlu0 %1146, %v1092
        %v1148 = vpop.permute.xlu0 %1147
        %1151 = vset.pattern.permute.xlu0 0
        %1152 = vperm.xlu0 %1151, %v1093
        %v1153 = vpop.permute.xlu0 %1152
        %1156 = vset.pattern.permute.xlu0 0
        %1157 = vperm.xlu0 %1156, %v1094
        %v1158 = vpop.permute.xlu0 %1157
        %1161 = vset.pattern.permute.xlu0 0
        %1162 = vperm.xlu0 %1161, %v1095
        %v1163 = vpop.permute.xlu0 %1162
        %1166 = vset.pattern.permute.xlu0 0
        %1167 = vperm.xlu0 %1166, %v1096
        %v1168 = vpop.permute.xlu0 %1167
        %1171 = vset.pattern.permute.xlu0 0
        %1172 = vperm.xlu0 %1171, %v1097
        %v1173 = vpop.permute.xlu0 %1172
        %1176 = vset.pattern.permute.xlu0 0
        %1177 = vperm.xlu0 %1176, %v1098
        %v1178 = vpop.permute.xlu0 %1177
        %v1180 = vlaneseq
        %v1181 = vshrl.u32 %v1180, 7
        %v1182 = vsub.s32 0, %v1181
        %v1183 = vrot.slane %v1099, %v1182
        %v1184 = vadd.f32 %v1103, %v1183
        %v1185 = vadd.f32 %v1108, %v1183
        %v1186 = vadd.f32 %v1113, %v1183
        %v1187 = vadd.f32 %v1118, %v1183
        %v1188 = vadd.f32 %v1123, %v1183
        %v1189 = vadd.f32 %v1128, %v1183
        %v1190 = vadd.f32 %v1133, %v1183
        %v1191 = vadd.f32 %v1138, %v1183
        %v1192 = vadd.f32 %v1143, %v1183
        %v1193 = vadd.f32 %v1148, %v1183
        %v1194 = vadd.f32 %v1153, %v1183
        %v1195 = vadd.f32 %v1158, %v1183
        %v1196 = vadd.f32 %v1163, %v1183
        %v1197 = vadd.f32 %v1168, %v1183
        %v1198 = vadd.f32 %v1173, %v1183
        %v1199 = vadd.f32 %v1178, %v1183
        %v1200 = vmul.f32 %v1184, 0.2
        %v1201 = vmul.f32 %v1185, 0.2
        %v1202 = vmul.f32 %v1186, 0.2
        %v1203 = vmul.f32 %v1187, 0.2
        %v1204 = vmul.f32 %v1188, 0.2
        %v1205 = vmul.f32 %v1189, 0.2
        %v1206 = vmul.f32 %v1190, 0.2
        %v1207 = vmul.f32 %v1191, 0.2
        %v1208 = vmul.f32 %v1192, 0.2
        %v1209 = vmul.f32 %v1193, 0.2
        %v1210 = vmul.f32 %v1194, 0.2
        %v1211 = vmul.f32 %v1195, 0.2
        %v1212 = vmul.f32 %v1196, 0.2
        %v1213 = vmul.f32 %v1197, 0.2
        %v1214 = vmul.f32 %v1198, 0.2
        %v1215 = vmul.f32 %v1199, 0.2
        %v1216 = vmax.f32 %v1184, %v1200
        %v1217 = vmax.f32 %v1185, %v1201
        %v1218 = vmax.f32 %v1186, %v1202
        %v1219 = vmax.f32 %v1187, %v1203
        %v1220 = vmax.f32 %v1188, %v1204
        %v1221 = vmax.f32 %v1189, %v1205
        %v1222 = vmax.f32 %v1190, %v1206
        %v1223 = vmax.f32 %v1191, %v1207
        %v1224 = vmax.f32 %v1192, %v1208
        %v1225 = vmax.f32 %v1193, %v1209
        %v1226 = vmax.f32 %v1194, %v1210
        %v1227 = vmax.f32 %v1195, %v1211
        %v1228 = vmax.f32 %v1196, %v1212
        %v1229 = vmax.f32 %v1197, %v1213
        %v1230 = vmax.f32 %v1198, %v1214
        %v1231 = vmax.f32 %v1199, %v1215
        %v1232 = vunpack.c.l.bf16 %v1067
        %v1233 = vunpack.c.l.bf16 %v1068
        %v1234 = vunpack.c.l.bf16 %v1069
        %v1235 = vunpack.c.l.bf16 %v1070
        %v1236 = vunpack.c.l.bf16 %v1071
        %v1237 = vunpack.c.l.bf16 %v1072
        %v1238 = vunpack.c.l.bf16 %v1073
        %v1239 = vunpack.c.l.bf16 %v1074
        %v1240 = vunpack.c.l.bf16 %v1075
        %v1241 = vunpack.c.l.bf16 %v1076
        %v1242 = vunpack.c.l.bf16 %v1077
        %v1243 = vunpack.c.l.bf16 %v1078
        %v1244 = vunpack.c.l.bf16 %v1079
        %v1245 = vunpack.c.l.bf16 %v1080
        %v1246 = vunpack.c.l.bf16 %v1081
        %v1247 = vunpack.c.l.bf16 %v1082
        %v1248 = vadd.f32 %v1216, %v1232
        %v1249 = vadd.f32 %v1217, %v1233
        %v1250 = vadd.f32 %v1218, %v1234
        %v1251 = vadd.f32 %v1219, %v1235
        %v1252 = vadd.f32 %v1220, %v1236
        %v1253 = vadd.f32 %v1221, %v1237
        %v1254 = vadd.f32 %v1222, %v1238
        %v1255 = vadd.f32 %v1223, %v1239
        %v1256 = vadd.f32 %v1224, %v1240
        %v1257 = vadd.f32 %v1225, %v1241
        %v1258 = vadd.f32 %v1226, %v1242
        %v1259 = vadd.f32 %v1227, %v1243
        %v1260 = vadd.f32 %v1228, %v1244
        %v1261 = vadd.f32 %v1229, %v1245
        %v1262 = vadd.f32 %v1230, %v1246
        %v1263 = vadd.f32 %v1231, %v1247
        %1264 = vmax.xlane.f32.xlu0 %v1248
        %v1265 = vpop.xlane.xlu0 %1264
        %1266 = vmax.xlane.f32.xlu0 %v1249
        %v1267 = vpop.xlane.xlu0 %1266
        %1268 = vmax.xlane.f32.xlu0 %v1250
        %v1269 = vpop.xlane.xlu0 %1268
        %1270 = vmax.xlane.f32.xlu0 %v1251
        %v1271 = vpop.xlane.xlu0 %1270
        %1272 = vmax.xlane.f32.xlu0 %v1252
        %v1273 = vpop.xlane.xlu0 %1272
        %1274 = vmax.xlane.f32.xlu0 %v1253
        %v1275 = vpop.xlane.xlu0 %1274
        %1276 = vmax.xlane.f32.xlu0 %v1254
        %v1277 = vpop.xlane.xlu0 %1276
        %1278 = vmax.xlane.f32.xlu0 %v1255
        %v1279 = vpop.xlane.xlu0 %1278
        %1280 = vmax.xlane.f32.xlu0 %v1256
        %v1281 = vpop.xlane.xlu0 %1280
        %1282 = vmax.xlane.f32.xlu0 %v1257
        %v1283 = vpop.xlane.xlu0 %1282
        %1284 = vmax.xlane.f32.xlu0 %v1258
        %v1285 = vpop.xlane.xlu0 %1284
        %1286 = vmax.xlane.f32.xlu0 %v1259
        %v1287 = vpop.xlane.xlu0 %1286
        %1288 = vmax.xlane.f32.xlu0 %v1260
        %v1289 = vpop.xlane.xlu0 %1288
        %1290 = vmax.xlane.f32.xlu0 %v1261
        %v1291 = vpop.xlane.xlu0 %1290
        %1292 = vmax.xlane.f32.xlu0 %v1262
        %v1293 = vpop.xlane.xlu0 %1292
        %1294 = vmax.xlane.f32.xlu0 %v1263
        %v1295 = vpop.xlane.xlu0 %1294
        %v1296 = vsub.f32 %v1248, %v1265
        %v1297 = vsub.f32 %v1249, %v1267
        %v1298 = vsub.f32 %v1250, %v1269
        %v1299 = vsub.f32 %v1251, %v1271
        %v1300 = vsub.f32 %v1252, %v1273
        %v1301 = vsub.f32 %v1253, %v1275
        %v1302 = vsub.f32 %v1254, %v1277
        %v1303 = vsub.f32 %v1255, %v1279
        %v1304 = vsub.f32 %v1256, %v1281
        %v1305 = vsub.f32 %v1257, %v1283
        %v1306 = vsub.f32 %v1258, %v1285
        %v1307 = vsub.f32 %v1259, %v1287
        %v1308 = vsub.f32 %v1260, %v1289
        %v1309 = vsub.f32 %v1261, %v1291
        %v1310 = vsub.f32 %v1262, %v1293
        %v1311 = vsub.f32 %v1263, %v1295
        %v1312 = vmul.f32 %v1296, 1.442695
        %v1313 = vpow.pop %v1312
        %v1314 = vmul.f32 %v1297, 1.442695
        %v1315 = vpow.pop %v1314
        %v1316 = vmul.f32 %v1298, 1.442695
        %v1317 = vpow.pop %v1316
        %v1318 = vmul.f32 %v1299, 1.442695
        %v1319 = vpow.pop %v1318
        %v1320 = vmul.f32 %v1300, 1.442695
        %v1321 = vpow.pop %v1320
        %v1322 = vmul.f32 %v1301, 1.442695
        %v1323 = vpow.pop %v1322
        %v1324 = vmul.f32 %v1302, 1.442695
        %v1325 = vpow.pop %v1324
        %v1326 = vmul.f32 %v1303, 1.442695
        %v1327 = vpow.pop %v1326
        %v1328 = vmul.f32 %v1304, 1.442695
        %v1329 = vpow.pop %v1328
        %v1330 = vmul.f32 %v1305, 1.442695
        %v1331 = vpow.pop %v1330
        %v1332 = vmul.f32 %v1306, 1.442695
        %v1333 = vpow.pop %v1332
        %v1334 = vmul.f32 %v1307, 1.442695
        %v1335 = vpow.pop %v1334
        %v1336 = vmul.f32 %v1308, 1.442695
        %v1337 = vpow.pop %v1336
        %v1338 = vmul.f32 %v1309, 1.442695
        %v1339 = vpow.pop %v1338
        %v1340 = vmul.f32 %v1310, 1.442695
        %v1341 = vpow.pop %v1340
        %v1342 = vmul.f32 %v1311, 1.442695
        %v1343 = vpow.pop %v1342
        %1344 = vadd.xlane.f32.xlu0 %v1313
        %v1345 = vpop.xlane.xlu0 %1344
        %1346 = vadd.xlane.f32.xlu0 %v1315
        %v1347 = vpop.xlane.xlu0 %1346
        %1348 = vadd.xlane.f32.xlu0 %v1317
        %v1349 = vpop.xlane.xlu0 %1348
        %1350 = vadd.xlane.f32.xlu0 %v1319
        %v1351 = vpop.xlane.xlu0 %1350
        %1352 = vadd.xlane.f32.xlu0 %v1321
        %v1353 = vpop.xlane.xlu0 %1352
        %1354 = vadd.xlane.f32.xlu0 %v1323
        %v1355 = vpop.xlane.xlu0 %1354
        %1356 = vadd.xlane.f32.xlu0 %v1325
        %v1357 = vpop.xlane.xlu0 %1356
        %1358 = vadd.xlane.f32.xlu0 %v1327
        %v1359 = vpop.xlane.xlu0 %1358
        %1360 = vadd.xlane.f32.xlu0 %v1329
        %v1361 = vpop.xlane.xlu0 %1360
        %1362 = vadd.xlane.f32.xlu0 %v1331
        %v1363 = vpop.xlane.xlu0 %1362
        %1364 = vadd.xlane.f32.xlu0 %v1333
        %v1365 = vpop.xlane.xlu0 %1364
        %1366 = vadd.xlane.f32.xlu0 %v1335
        %v1367 = vpop.xlane.xlu0 %1366
        %1368 = vadd.xlane.f32.xlu0 %v1337
        %v1369 = vpop.xlane.xlu0 %1368
        %1370 = vadd.xlane.f32.xlu0 %v1339
        %v1371 = vpop.xlane.xlu0 %1370
        %1372 = vadd.xlane.f32.xlu0 %v1341
        %v1373 = vpop.xlane.xlu0 %1372
        %1374 = vadd.xlane.f32.xlu0 %v1343
        %v1375 = vpop.xlane.xlu0 %1374
        %v1376 = vrcp.pop %v1345
        %v1377 = vrcp.pop %v1347
        %v1378 = vrcp.pop %v1349
        %v1379 = vrcp.pop %v1351
        %v1380 = vrcp.pop %v1353
        %v1381 = vrcp.pop %v1355
        %v1382 = vrcp.pop %v1357
        %v1383 = vrcp.pop %v1359
        %v1384 = vrcp.pop %v1361
        %v1385 = vrcp.pop %v1363
        %v1386 = vrcp.pop %v1365
        %v1387 = vrcp.pop %v1367
        %v1388 = vrcp.pop %v1369
        %v1389 = vrcp.pop %v1371
        %v1390 = vrcp.pop %v1373
        %v1391 = vrcp.pop %v1375
        %v1392 = vpack.c.bf16 %v1315, %v1313
        %v1393 = vpack.c.bf16 %v1319, %v1317
        %v1394 = vpack.c.bf16 %v1323, %v1321
        %v1395 = vpack.c.bf16 %v1327, %v1325
        %v1396 = vpack.c.bf16 %v1331, %v1329
        %v1397 = vpack.c.bf16 %v1335, %v1333
        %v1398 = vpack.c.bf16 %v1339, %v1337
        %v1399 = vpack.c.bf16 %v1343, %v1341
        %v1400 = vld [vmem:[#allocation2] sm:$0xff]
        %v1401 = vld [vmem:[#allocation2 + $0x8] sm:$0xff]
        %v1402 = vld [vmem:[#allocation2 + $0x10] sm:$0xff]
        %v1403 = vld [vmem:[#allocation2 + $0x18] sm:$0xff]
        %v1404 = vld [vmem:[#allocation2 + $0x20] sm:$0xff]
        %v1405 = vld [vmem:[#allocation2 + $0x28] sm:$0xff]
        %v1406 = vld [vmem:[#allocation2 + $0x30] sm:$0xff]
        %v1407 = vld [vmem:[#allocation2 + $0x38] sm:$0xff]
        %1408 = vmatprep.subr.bf16.mxu0 0
        %1409 = vmatpush1.bf16.msra.mxu0 %v1400
        %1410 = vmatprep.subr.bf16.mxu0 0
        %1411 = vmatpush1.bf16.msra.mxu0 %v1401
        %1412 = vmatprep.subr.bf16.mxu0 0
        %1413 = vmatpush1.bf16.msra.mxu0 %v1402
        %1414 = vmatprep.subr.bf16.mxu0 0
        %1415 = vmatpush1.bf16.msra.mxu0 %v1403
        %1416 = vmatprep.subr.bf16.mxu0 0
        %1417 = vmatpush1.bf16.msra.mxu0 %v1404
        %1418 = vmatprep.subr.bf16.mxu0 0
        %1419 = vmatpush1.bf16.msra.mxu0 %v1405
        %1420 = vmatprep.subr.bf16.mxu0 0
        %1421 = vmatpush1.bf16.msra.mxu0 %v1406
        %1422 = vmatprep.subr.bf16.mxu0 0
        %1423 = vmatpush1.bf16.msra.mxu0 %v1407
        %1424 = vmatprep.subr.bf16.mxu0 0
        %1425 = vmatpush1.bf16.msra.mxu0 0
        %1426 = vmatprep.subr.bf16.mxu0 0
        %1427 = vmatpush1.bf16.msra.mxu0 0
        %1428 = vmatprep.subr.bf16.mxu0 0
        %1429 = vmatpush1.bf16.msra.mxu0 0
        %1430 = vmatprep.subr.bf16.mxu0 0
        %1431 = vmatpush1.bf16.msra.mxu0 0
        %1432 = vmatprep.subr.bf16.mxu0 0
        %1433 = vmatpush1.bf16.msra.mxu0 0
        %1434 = vmatprep.subr.bf16.mxu0 0
        %1435 = vmatpush1.bf16.msra.mxu0 0
        %1436 = vmatprep.subr.bf16.mxu0 0
        %1437 = vmatpush1.bf16.msra.mxu0 0
        %1438 = vmatprep.subr.bf16.mxu0 0
        %1439 = vmatpush1.bf16.msra.mxu0 0
        %1440 = vmatprep.mubr.bf16.mxu0 0
        %1441 = vmatmul.mubr.bf16.gmra.mrb[0].mxu0 %v1392
        %v1442 = vpop.f32.mrb[0].mxu0
        %v1443 = vadd.f32 0.0, %v1442
        %v1444 = vpop.f32.mrb[0].mxu0
        %v1445 = vpop.f32.mrb[0].mxu0
        %v1446 = vadd.f32 0.0, %v1445
        %v1447 = vpop.f32.mrb[0].mxu0
        %1448 = vmatprep.mubr.bf16.mxu0 0
        %1449 = vmatmul.mubr.bf16.gmra.mrb[0].mxu0 %v1393
        %v1450 = vpop.f32.mrb[0].mxu0
        %v1451 = vadd.f32 0.0, %v1450
        %v1452 = vpop.f32.mrb[0].mxu0
        %v1453 = vpop.f32.mrb[0].mxu0
        %v1454 = vadd.f32 0.0, %v1453
        %v1455 = vpop.f32.mrb[0].mxu0
        %1456 = vmatprep.mubr.bf16.mxu0 0
        %1457 = vmatmul.mubr.bf16.gmra.mrb[0].mxu0 %v1394
        %v1458 = vpop.f32.mrb[0].mxu0
        %v1459 = vadd.f32 0.0, %v1458
        %v1460 = vpop.f32.mrb[0].mxu0
        %v1461 = vpop.f32.mrb[0].mxu0
        %v1462 = vadd.f32 0.0, %v1461
        %v1463 = vpop.f32.mrb[0].mxu0
        %1464 = vmatprep.mubr.bf16.mxu0 0
        %1465 = vmatmul.mubr.bf16.gmra.mrb[0].mxu0 %v1395
        %v1466 = vpop.f32.mrb[0].mxu0
        %v1467 = vadd.f32 0.0, %v1466
        %v1468 = vpop.f32.mrb[0].mxu0
        %v1469 = vpop.f32.mrb[0].mxu0
        %v1470 = vadd.f32 0.0, %v1469
        %v1471 = vpop.f32.mrb[0].mxu0
        %1472 = vmatprep.mubr.bf16.mxu0 0
        %1473 = vmatmul.mubr.bf16.gmra.mrb[0].mxu0 %v1396
        %v1474 = vpop.f32.mrb[0].mxu0
        %v1475 = vadd.f32 0.0, %v1474
        %v1476 = vpop.f32.mrb[0].mxu0
        %v1477 = vpop.f32.mrb[0].mxu0
        %v1478 = vadd.f32 0.0, %v1477
        %v1479 = vpop.f32.mrb[0].mxu0
        %1480 = vmatprep.mubr.bf16.mxu0 0
        %1481 = vmatmul.mubr.bf16.gmra.mrb[0].mxu0 %v1397
        %v1482 = vpop.f32.mrb[0].mxu0
        %v1483 = vadd.f32 0.0, %v1482
        %v1484 = vpop.f32.mrb[0].mxu0
        %v1485 = vpop.f32.mrb[0].mxu0
        %v1486 = vadd.f32 0.0, %v1485
        %v1487 = vpop.f32.mrb[0].mxu0
        %1488 = vmatprep.mubr.bf16.mxu0 0
        %1489 = vmatmul.mubr.bf16.gmra.mrb[0].mxu0 %v1398
        %v1490 = vpop.f32.mrb[0].mxu0
        %v1491 = vadd.f32 0.0, %v1490
        %v1492 = vpop.f32.mrb[0].mxu0
        %v1493 = vpop.f32.mrb[0].mxu0
        %v1494 = vadd.f32 0.0, %v1493
        %v1495 = vpop.f32.mrb[0].mxu0
        %1496 = vmatprep.mubr.bf16.mxu0 0
        %1497 = vmatmul.mubr.bf16.gmra.mrb[0].mxu0 %v1399
        %v1498 = vpop.f32.mrb[0].mxu0
        %v1499 = vadd.f32 0.0, %v1498
        %v1500 = vpop.f32.mrb[0].mxu0
        %v1501 = vpop.f32.mrb[0].mxu0
        %v1502 = vadd.f32 0.0, %v1501
        %v1503 = vpop.f32.mrb[0].mxu0
        %1504 = vdwg.mxu0
        %v1505 = vmul.f32 %v580, %v1376
        %v1506 = vmul.f32 %v581, %v1377
        %v1507 = vmul.f32 %v582, %v1378
        %v1508 = vmul.f32 %v583, %v1379
        %v1509 = vmul.f32 %v584, %v1380
        %v1510 = vmul.f32 %v585, %v1381
        %v1511 = vmul.f32 %v586, %v1382
        %v1512 = vmul.f32 %v587, %v1383
        %v1513 = vmul.f32 %v588, %v1384
        %v1514 = vmul.f32 %v589, %v1385
        %v1515 = vmul.f32 %v590, %v1386
        %v1516 = vmul.f32 %v591, %v1387
        %v1517 = vmul.f32 %v592, %v1388
        %v1518 = vmul.f32 %v593, %v1389
        %v1519 = vmul.f32 %v594, %v1390
        %v1520 = vmul.f32 %v595, %v1391
        %v1521 = vmul.f32 %v1505, %v1376
        %v1522 = vmul.f32 %v1506, %v1377
        %v1523 = vmul.f32 %v1507, %v1378
        %v1524 = vmul.f32 %v1508, %v1379
        %v1525 = vmul.f32 %v1509, %v1380
        %v1526 = vmul.f32 %v1510, %v1381
        %v1527 = vmul.f32 %v1511, %v1382
        %v1528 = vmul.f32 %v1512, %v1383
        %v1529 = vmul.f32 %v1513, %v1384
        %v1530 = vmul.f32 %v1514, %v1385
        %v1531 = vmul.f32 %v1515, %v1386
        %v1532 = vmul.f32 %v1516, %v1387
        %v1533 = vmul.f32 %v1517, %v1388
        %v1534 = vmul.f32 %v1518, %v1389
        %v1535 = vmul.f32 %v1519, %v1390
        %v1536 = vmul.f32 %v1520, %v1391
        %1538 = vset.pattern.permute.xlu0 0
        %1539 = vperm.xlu0 %1538, %v1521
        %v1540 = vpop.permute.xlu0 %1539
        %1543 = vset.pattern.permute.xlu0 0
        %1544 = vperm.xlu0 %1543, %v1522
        %v1545 = vpop.permute.xlu0 %1544
        %1548 = vset.pattern.permute.xlu0 0
        %1549 = vperm.xlu0 %1548, %v1523
        %v1550 = vpop.permute.xlu0 %1549
        %1553 = vset.pattern.permute.xlu0 0
        %1554 = vperm.xlu0 %1553, %v1524
        %v1555 = vpop.permute.xlu0 %1554
        %1558 = vset.pattern.permute.xlu0 0
        %1559 = vperm.xlu0 %1558, %v1525
        %v1560 = vpop.permute.xlu0 %1559
        %1563 = vset.pattern.permute.xlu0 0
        %1564 = vperm.xlu0 %1563, %v1526
        %v1565 = vpop.permute.xlu0 %1564
        %1568 = vset.pattern.permute.xlu0 0
        %1569 = vperm.xlu0 %1568, %v1527
        %v1570 = vpop.permute.xlu0 %1569
        %1573 = vset.pattern.permute.xlu0 0
        %1574 = vperm.xlu0 %1573, %v1528
        %v1575 = vpop.permute.xlu0 %1574
        %1578 = vset.pattern.permute.xlu0 0
        %1579 = vperm.xlu0 %1578, %v1529
        %v1580 = vpop.permute.xlu0 %1579
        %1583 = vset.pattern.permute.xlu0 0
        %1584 = vperm.xlu0 %1583, %v1530
        %v1585 = vpop.permute.xlu0 %1584
        %1588 = vset.pattern.permute.xlu0 0
        %1589 = vperm.xlu0 %1588, %v1531
        %v1590 = vpop.permute.xlu0 %1589
        %1593 = vset.pattern.permute.xlu0 0
        %1594 = vperm.xlu0 %1593, %v1532
        %v1595 = vpop.permute.xlu0 %1594
        %1598 = vset.pattern.permute.xlu0 0
        %1599 = vperm.xlu0 %1598, %v1533
        %v1600 = vpop.permute.xlu0 %1599
        %1603 = vset.pattern.permute.xlu0 0
        %1604 = vperm.xlu0 %1603, %v1534
        %v1605 = vpop.permute.xlu0 %1604
        %1608 = vset.pattern.permute.xlu0 0
        %1609 = vperm.xlu0 %1608, %v1535
        %v1610 = vpop.permute.xlu0 %1609
        %1613 = vset.pattern.permute.xlu0 0
        %1614 = vperm.xlu0 %1613, %v1536
        %v1615 = vpop.permute.xlu0 %1614
        %v1617 = vmul.f32 %v1443, %v1540
        %v1618 = vmul.f32 %v1446, %v1545
        %v1619 = vmul.f32 %v1451, %v1550
        %v1620 = vmul.f32 %v1454, %v1555
        %v1621 = vmul.f32 %v1459, %v1560
        %v1622 = vmul.f32 %v1462, %v1565
        %v1623 = vmul.f32 %v1467, %v1570
        %v1624 = vmul.f32 %v1470, %v1575
        %v1625 = vmul.f32 %v1475, %v1580
        %v1626 = vmul.f32 %v1478, %v1585
        %v1627 = vmul.f32 %v1483, %v1590
        %v1628 = vmul.f32 %v1486, %v1595
        %v1629 = vmul.f32 %v1491, %v1600
        %v1630 = vmul.f32 %v1494, %v1605
        %v1631 = vmul.f32 %v1499, %v1610
        %v1632 = vmul.f32 %v1502, %v1615
        %v1633 = vpack.c.bf16 %v1618, %v1617
        %v1634 = vpack.c.bf16 %v1620, %v1619
        %v1635 = vpack.c.bf16 %v1622, %v1621
        %v1636 = vpack.c.bf16 %v1624, %v1623
        %v1637 = vpack.c.bf16 %v1626, %v1625
        %v1638 = vpack.c.bf16 %v1628, %v1627
        %v1639 = vpack.c.bf16 %v1630, %v1629
        %v1640 = vpack.c.bf16 %v1632, %v1631
        %v1641 = vld [vmem:[#allocation3] sm:$0xff]
        %v1642 = vld [vmem:[#allocation3 + $0x8] sm:$0xff]
        %v1643 = vld [vmem:[#allocation3 + $0x10] sm:$0xff]
        %v1644 = vld [vmem:[#allocation3 + $0x18] sm:$0xff]
        %1645 = vxpose.xlu0.c.b16.start [1/8] %v1633, 128
        %1646 = vxpose.xlu0.c.b16.cont [2/8] %v1634, 128
        %1647 = vxpose.xlu0.c.b16.cont [3/8] %v1635, 128
        %1648 = vxpose.xlu0.c.b16.cont [4/8] %v1636, 128
        %1649 = vxpose.xlu0.c.b16.cont [5/8] %v1637, 128
        %1650 = vxpose.xlu0.c.b16.cont [6/8] %v1638, 128
        %1651 = vxpose.xlu0.c.b16.cont [7/8] %v1639, 128
        %1652 = vxpose.xlu0.c.b16.end [8/8] %v1640, 128
        %v1653 = vpop.trf.xlu0
        %v1654 = vpop.trf.xlu0
        %v1655 = vpop.trf.xlu0
        %v1656 = vpop.trf.xlu0
        %v1657 = vpop.trf.xlu0
        %v1658 = vpop.trf.xlu0
        %v1659 = vpop.trf.xlu0
        %v1660 = vpop.trf.xlu0
        %1661 = vmatprep.subr.bf16.mxu0 0
        %1662 = vmatpush1.bf16.msra.mxu0 %v1392
        %1663 = vmatprep.subr.bf16.mxu0 0
        %1664 = vmatpush1.bf16.msra.mxu0 %v1393
        %1665 = vmatprep.subr.bf16.mxu0 0
        %1666 = vmatpush1.bf16.msra.mxu0 %v1394
        %1667 = vmatprep.subr.bf16.mxu0 0
        %1668 = vmatpush1.bf16.msra.mxu0 %v1395
        %1669 = vmatprep.subr.bf16.mxu0 0
        %1670 = vmatpush1.bf16.msra.mxu0 %v1396
        %1671 = vmatprep.subr.bf16.mxu0 0
        %1672 = vmatpush1.bf16.msra.mxu0 %v1397
        %1673 = vmatprep.subr.bf16.mxu0 0
        %1674 = vmatpush1.bf16.msra.mxu0 %v1398
        %1675 = vmatprep.subr.bf16.mxu0 0
        %1676 = vmatpush1.bf16.msra.mxu0 %v1399
        %1677 = vmatprep.subr.bf16.mxu0 0
        %1678 = vmatpush1.bf16.msra.mxu0 0
        %1679 = vmatprep.subr.bf16.mxu0 0
        %1680 = vmatpush1.bf16.msra.mxu0 0
        %1681 = vmatprep.subr.bf16.mxu0 0
        %1682 = vmatpush1.bf16.msra.mxu0 0
        %1683 = vmatprep.subr.bf16.mxu0 0
        %1684 = vmatpush1.bf16.msra.mxu0 0
        %1685 = vmatprep.subr.bf16.mxu0 0
        %1686 = vmatpush1.bf16.msra.mxu0 0
        %1687 = vmatprep.subr.bf16.mxu0 0
        %1688 = vmatpush1.bf16.msra.mxu0 0
        %1689 = vmatprep.subr.bf16.mxu0 0
        %1690 = vmatpush1.bf16.msra.mxu0 0
        %1691 = vmatprep.subr.bf16.mxu0 0
        %1692 = vmatpush1.bf16.msra.mxu0 0
        %1693 = vmatprep.mubr.bf16.mxu0 0
        %1694 = vmatmul.mubr.bf16.gmra.mrb[0].mxu0 %v1653
        %v1695 = vpop.f32.mrb[0].mxu0
        %v1696 = vadd.f32 0.0, %v1695
        %v1697 = vpop.f32.mrb[0].mxu0
        %v1698 = vpop.f32.mrb[0].mxu0
        %v1699 = vadd.f32 0.0, %v1698
        %v1700 = vpop.f32.mrb[0].mxu0
        %1701 = vmatprep.mubr.bf16.mxu0 0
        %1702 = vmatmul.mubr.bf16.gmra.mrb[0].mxu0 %v1654
        %v1703 = vpop.f32.mrb[0].mxu0
        %v1704 = vadd.f32 0.0, %v1703
        %v1705 = vpop.f32.mrb[0].mxu0
        %v1706 = vpop.f32.mrb[0].mxu0
        %v1707 = vadd.f32 0.0, %v1706
        %v1708 = vpop.f32.mrb[0].mxu0
        %1709 = vdwg.mxu0
        %v1710 = vadd.f32 %v1641, %v1696
        %v1711 = vadd.f32 %v1642, %v1699
        %v1712 = vadd.f32 %v1643, %v1704
        %v1713 = vadd.f32 %v1644, %v1707
        %1714 = vst [vmem:[#allocation3] sm:$0xff] %v1710
        %1715 = vst [vmem:[#allocation3 + $0x8] sm:$0xff] %v1711
        %1716 = vst [vmem:[#allocation3 + $0x10] sm:$0xff] %v1712
        %1717 = vst [vmem:[#allocation3 + $0x18] sm:$0xff] %v1713
        %v1718 = vld [vmem:[%s1 + $0x1] sm:$0x1]
        %1719 = vset.pattern.permute.xlu0 1
        %1720 = vperm.xlu0 %1719, %v1083
        %v1721 = vpop.permute.xlu0 %1720
        %1723 = vset.pattern.permute.xlu0 1
        %1724 = vperm.xlu0 %1723, %v1084
        %v1725 = vpop.permute.xlu0 %1724
        %1727 = vset.pattern.permute.xlu0 1
        %1728 = vperm.xlu0 %1727, %v1085
        %v1729 = vpop.permute.xlu0 %1728
        %1731 = vset.pattern.permute.xlu0 1
        %1732 = vperm.xlu0 %1731, %v1086
        %v1733 = vpop.permute.xlu0 %1732
        %1735 = vset.pattern.permute.xlu0 1
        %1736 = vperm.xlu0 %1735, %v1087
        %v1737 = vpop.permute.xlu0 %1736
        %1739 = vset.pattern.permute.xlu0 1
        %1740 = vperm.xlu0 %1739, %v1088
        %v1741 = vpop.permute.xlu0 %1740
        %1743 = vset.pattern.permute.xlu0 1
        %1744 = vperm.xlu0 %1743, %v1089
        %v1745 = vpop.permute.xlu0 %1744
        %1747 = vset.pattern.permute.xlu0 1
        %1748 = vperm.xlu0 %1747, %v1090
        %v1749 = vpop.permute.xlu0 %1748
        %1751 = vset.pattern.permute.xlu0 1
        %1752 = vperm.xlu0 %1751, %v1091
        %v1753 = vpop.permute.xlu0 %1752
        %1755 = vset.pattern.permute.xlu0 1
        %1756 = vperm.xlu0 %1755, %v1092
        %v1757 = vpop.permute.xlu0 %1756
        %1759 = vset.pattern.permute.xlu0 1
        %1760 = vperm.xlu0 %1759, %v1093
        %v1761 = vpop.permute.xlu0 %1760
        %1763 = vset.pattern.permute.xlu0 1
        %1764 = vperm.xlu0 %1763, %v1094
        %v1765 = vpop.permute.xlu0 %1764
        %1767 = vset.pattern.permute.xlu0 1
        %1768 = vperm.xlu0 %1767, %v1095
        %v1769 = vpop.permute.xlu0 %1768
        %1771 = vset.pattern.permute.xlu0 1
        %1772 = vperm.xlu0 %1771, %v1096
        %v1773 = vpop.permute.xlu0 %1772
        %1775 = vset.pattern.permute.xlu0 1
        %1776 = vperm.xlu0 %1775, %v1097
        %v1777 = vpop.permute.xlu0 %1776
        %1779 = vset.pattern.permute.xlu0 1
        %1780 = vperm.xlu0 %1779, %v1098
        %v1781 = vpop.permute.xlu0 %1780
        %v1783 = vlaneseq
        %v1784 = vshrl.u32 %v1783, 7
        %v1785 = vsub.s32 0, %v1784
        %v1786 = vrot.slane %v1718, %v1785
        %v1787 = vadd.f32 %v1721, %v1786
        %v1788 = vadd.f32 %v1725, %v1786
        %v1789 = vadd.f32 %v1729, %v1786
        %v1790 = vadd.f32 %v1733, %v1786
        %v1791 = vadd.f32 %v1737, %v1786
        %v1792 = vadd.f32 %v1741, %v1786
        %v1793 = vadd.f32 %v1745, %v1786
        %v1794 = vadd.f32 %v1749, %v1786
        %v1795 = vadd.f32 %v1753, %v1786
        %v1796 = vadd.f32 %v1757, %v1786
        %v1797 = vadd.f32 %v1761, %v1786
        %v1798 = vadd.f32 %v1765, %v1786
        %v1799 = vadd.f32 %v1769, %v1786
        %v1800 = vadd.f32 %v1773, %v1786
        %v1801 = vadd.f32 %v1777, %v1786
        %v1802 = vadd.f32 %v1781, %v1786
        %v1803 = vmul.f32 %v1787, 0.2
        %v1804 = vmul.f32 %v1788, 0.2
        %v1805 = vmul.f32 %v1789, 0.2
        %v1806 = vmul.f32 %v1790, 0.2
        %v1807 = vmul.f32 %v1791, 0.2
        %v1808 = vmul.f32 %v1792, 0.2
        %v1809 = vmul.f32 %v1793, 0.2
        %v1810 = vmul.f32 %v1794, 0.2
        %v1811 = vmul.f32 %v1795, 0.2
        %v1812 = vmul.f32 %v1796, 0.2
        %v1813 = vmul.f32 %v1797, 0.2
        %v1814 = vmul.f32 %v1798, 0.2
        %v1815 = vmul.f32 %v1799, 0.2
        %v1816 = vmul.f32 %v1800, 0.2
        %v1817 = vmul.f32 %v1801, 0.2
        %v1818 = vmul.f32 %v1802, 0.2
        %v1819 = vmax.f32 %v1787, %v1803
        %v1820 = vmax.f32 %v1788, %v1804
        %v1821 = vmax.f32 %v1789, %v1805
        %v1822 = vmax.f32 %v1790, %v1806
        %v1823 = vmax.f32 %v1791, %v1807
        %v1824 = vmax.f32 %v1792, %v1808
        %v1825 = vmax.f32 %v1793, %v1809
        %v1826 = vmax.f32 %v1794, %v1810
        %v1827 = vmax.f32 %v1795, %v1811
        %v1828 = vmax.f32 %v1796, %v1812
        %v1829 = vmax.f32 %v1797, %v1813
        %v1830 = vmax.f32 %v1798, %v1814
        %v1831 = vmax.f32 %v1799, %v1815
        %v1832 = vmax.f32 %v1800, %v1816
        %v1833 = vmax.f32 %v1801, %v1817
        %v1834 = vmax.f32 %v1802, %v1818
        %v1835 = vadd.f32 %v1819, %v1232
        %v1836 = vadd.f32 %v1820, %v1233
        %v1837 = vadd.f32 %v1821, %v1234
        %v1838 = vadd.f32 %v1822, %v1235
        %v1839 = vadd.f32 %v1823, %v1236
        %v1840 = vadd.f32 %v1824, %v1237
        %v1841 = vadd.f32 %v1825, %v1238
        %v1842 = vadd.f32 %v1826, %v1239
        %v1843 = vadd.f32 %v1827, %v1240
        %v1844 = vadd.f32 %v1828, %v1241
        %v1845 = vadd.f32 %v1829, %v1242
        %v1846 = vadd.f32 %v1830, %v1243
        %v1847 = vadd.f32 %v1831, %v1244
        %v1848 = vadd.f32 %v1832, %v1245
        %v1849 = vadd.f32 %v1833, %v1246
        %v1850 = vadd.f32 %v1834, %v1247
        %1851 = vmax.xlane.f32.xlu0 %v1835
        %v1852 = vpop.xlane.xlu0 %1851
        %1853 = vmax.xlane.f32.xlu0 %v1836
        %v1854 = vpop.xlane.xlu0 %1853
        %1855 = vmax.xlane.f32.xlu0 %v1837
        %v1856 = vpop.xlane.xlu0 %1855
        %1857 = vmax.xlane.f32.xlu0 %v1838
        %v1858 = vpop.xlane.xlu0 %1857
        %1859 = vmax.xlane.f32.xlu0 %v1839
        %v1860 = vpop.xlane.xlu0 %1859
        %1861 = vmax.xlane.f32.xlu0 %v1840
        %v1862 = vpop.xlane.xlu0 %1861
        %1863 = vmax.xlane.f32.xlu0 %v1841
        %v1864 = vpop.xlane.xlu0 %1863
        %1865 = vmax.xlane.f32.xlu0 %v1842
        %v1866 = vpop.xlane.xlu0 %1865
        %1867 = vmax.xlane.f32.xlu0 %v1843
        %v1868 = vpop.xlane.xlu0 %1867
        %1869 = vmax.xlane.f32.xlu0 %v1844
        %v1870 = vpop.xlane.xlu0 %1869
        %1871 = vmax.xlane.f32.xlu0 %v1845
        %v1872 = vpop.xlane.xlu0 %1871
        %1873 = vmax.xlane.f32.xlu0 %v1846
        %v1874 = vpop.xlane.xlu0 %1873
        %1875 = vmax.xlane.f32.xlu0 %v1847
        %v1876 = vpop.xlane.xlu0 %1875
        %1877 = vmax.xlane.f32.xlu0 %v1848
        %v1878 = vpop.xlane.xlu0 %1877
        %1879 = vmax.xlane.f32.xlu0 %v1849
        %v1880 = vpop.xlane.xlu0 %1879
        %1881 = vmax.xlane.f32.xlu0 %v1850
        %v1882 = vpop.xlane.xlu0 %1881
        %v1883 = vsub.f32 %v1835, %v1852
        %v1884 = vsub.f32 %v1836, %v1854
        %v1885 = vsub.f32 %v1837, %v1856
        %v1886 = vsub.f32 %v1838, %v1858
        %v1887 = vsub.f32 %v1839, %v1860
        %v1888 = vsub.f32 %v1840, %v1862
        %v1889 = vsub.f32 %v1841, %v1864
        %v1890 = vsub.f32 %v1842, %v1866
        %v1891 = vsub.f32 %v1843, %v1868
        %v1892 = vsub.f32 %v1844, %v1870
        %v1893 = vsub.f32 %v1845, %v1872
        %v1894 = vsub.f32 %v1846, %v1874
        %v1895 = vsub.f32 %v1847, %v1876
        %v1896 = vsub.f32 %v1848, %v1878
        %v1897 = vsub.f32 %v1849, %v1880
        %v1898 = vsub.f32 %v1850, %v1882
        %v1899 = vmul.f32 %v1883, 1.442695
        %v1900 = vpow.pop %v1899
        %v1901 = vmul.f32 %v1884, 1.442695
        %v1902 = vpow.pop %v1901
        %v1903 = vmul.f32 %v1885, 1.442695
        %v1904 = vpow.pop %v1903
        %v1905 = vmul.f32 %v1886, 1.442695
        %v1906 = vpow.pop %v1905
        %v1907 = vmul.f32 %v1887, 1.442695
        %v1908 = vpow.pop %v1907
        %v1909 = vmul.f32 %v1888, 1.442695
        %v1910 = vpow.pop %v1909
        %v1911 = vmul.f32 %v1889, 1.442695
        %v1912 = vpow.pop %v1911
        %v1913 = vmul.f32 %v1890, 1.442695
        %v1914 = vpow.pop %v1913
        %v1915 = vmul.f32 %v1891, 1.442695
        %v1916 = vpow.pop %v1915
        %v1917 = vmul.f32 %v1892, 1.442695
        %v1918 = vpow.pop %v1917
        %v1919 = vmul.f32 %v1893, 1.442695
        %v1920 = vpow.pop %v1919
        %v1921 = vmul.f32 %v1894, 1.442695
        %v1922 = vpow.pop %v1921
        %v1923 = vmul.f32 %v1895, 1.442695
        %v1924 = vpow.pop %v1923
        %v1925 = vmul.f32 %v1896, 1.442695
        %v1926 = vpow.pop %v1925
        %v1927 = vmul.f32 %v1897, 1.442695
        %v1928 = vpow.pop %v1927
        %v1929 = vmul.f32 %v1898, 1.442695
        %v1930 = vpow.pop %v1929
        %1931 = vadd.xlane.f32.xlu0 %v1900
        %v1932 = vpop.xlane.xlu0 %1931
        %1933 = vadd.xlane.f32.xlu0 %v1902
        %v1934 = vpop.xlane.xlu0 %1933
        %1935 = vadd.xlane.f32.xlu0 %v1904
        %v1936 = vpop.xlane.xlu0 %1935
        %1937 = vadd.xlane.f32.xlu0 %v1906
        %v1938 = vpop.xlane.xlu0 %1937
        %1939 = vadd.xlane.f32.xlu0 %v1908
        %v1940 = vpop.xlane.xlu0 %1939
        %1941 = vadd.xlane.f32.xlu0 %v1910
        %v1942 = vpop.xlane.xlu0 %1941
        %1943 = vadd.xlane.f32.xlu0 %v1912
        %v1944 = vpop.xlane.xlu0 %1943
        %1945 = vadd.xlane.f32.xlu0 %v1914
        %v1946 = vpop.xlane.xlu0 %1945
        %1947 = vadd.xlane.f32.xlu0 %v1916
        %v1948 = vpop.xlane.xlu0 %1947
        %1949 = vadd.xlane.f32.xlu0 %v1918
        %v1950 = vpop.xlane.xlu0 %1949
        %1951 = vadd.xlane.f32.xlu0 %v1920
        %v1952 = vpop.xlane.xlu0 %1951
        %1953 = vadd.xlane.f32.xlu0 %v1922
        %v1954 = vpop.xlane.xlu0 %1953
        %1955 = vadd.xlane.f32.xlu0 %v1924
        %v1956 = vpop.xlane.xlu0 %1955
        %1957 = vadd.xlane.f32.xlu0 %v1926
        %v1958 = vpop.xlane.xlu0 %1957
        %1959 = vadd.xlane.f32.xlu0 %v1928
        %v1960 = vpop.xlane.xlu0 %1959
        %1961 = vadd.xlane.f32.xlu0 %v1930
        %v1962 = vpop.xlane.xlu0 %1961
        %v1963 = vrcp.pop %v1932
        %v1964 = vrcp.pop %v1934
        %v1965 = vrcp.pop %v1936
        %v1966 = vrcp.pop %v1938
        %v1967 = vrcp.pop %v1940
        %v1968 = vrcp.pop %v1942
        %v1969 = vrcp.pop %v1944
        %v1970 = vrcp.pop %v1946
        %v1971 = vrcp.pop %v1948
        %v1972 = vrcp.pop %v1950
        %v1973 = vrcp.pop %v1952
        %v1974 = vrcp.pop %v1954
        %v1975 = vrcp.pop %v1956
        %v1976 = vrcp.pop %v1958
        %v1977 = vrcp.pop %v1960
        %v1978 = vrcp.pop %v1962
        %v1979 = vpack.c.bf16 %v1902, %v1900
        %v1980 = vpack.c.bf16 %v1906, %v1904
        %v1981 = vpack.c.bf16 %v1910, %v1908
        %v1982 = vpack.c.bf16 %v1914, %v1912
        %v1983 = vpack.c.bf16 %v1918, %v1916
        %v1984 = vpack.c.bf16 %v1922, %v1920
        %v1985 = vpack.c.bf16 %v1926, %v1924
        %v1986 = vpack.c.bf16 %v1930, %v1928
        %s1987 = scalar_lea.vmem [#allocation2], 64
        %v1988 = vld [vmem:[%s1987] sm:$0xff]
        %v1989 = vld [vmem:[%s1987 + $0x8] sm:$0xff]
        %v1990 = vld [vmem:[%s1987 + $0x10] sm:$0xff]
        %v1991 = vld [vmem:[%s1987 + $0x18] sm:$0xff]
        %v1992 = vld [vmem:[%s1987 + $0x20] sm:$0xff]
        %v1993 = vld [vmem:[%s1987 + $0x28] sm:$0xff]
        %v1994 = vld [vmem:[%s1987 + $0x30] sm:$0xff]
        %v1995 = vld [vmem:[%s1987 + $0x38] sm:$0xff]
        %1996 = vmatprep.subr.bf16.mxu0 0
        %1997 = vmatpush1.bf16.msra.mxu0 %v1988
        %1998 = vmatprep.subr.bf16.mxu0 0
        %1999 = vmatpush1.bf16.msra.mxu0 %v1989
        %2000 = vmatprep.subr.bf16.mxu0 0
        %2001 = vmatpush1.bf16.msra.mxu0 %v1990
        %2002 = vmatprep.subr.bf16.mxu0 0
        %2003 = vmatpush1.bf16.msra.mxu0 %v1991
        %2004 = vmatprep.subr.bf16.mxu0 0
        %2005 = vmatpush1.bf16.msra.mxu0 %v1992
        %2006 = vmatprep.subr.bf16.mxu0 0
        %2007 = vmatpush1.bf16.msra.mxu0 %v1993
        %2008 = vmatprep.subr.bf16.mxu0 0
        %2009 = vmatpush1.bf16.msra.mxu0 %v1994
        %2010 = vmatprep.subr.bf16.mxu0 0
        %2011 = vmatpush1.bf16.msra.mxu0 %v1995
        %2012 = vmatprep.subr.bf16.mxu0 0
        %2013 = vmatpush1.bf16.msra.mxu0 0
        %2014 = vmatprep.subr.bf16.mxu0 0
        %2015 = vmatpush1.bf16.msra.mxu0 0
        %2016 = vmatprep.subr.bf16.mxu0 0
        %2017 = vmatpush1.bf16.msra.mxu0 0
        %2018 = vmatprep.subr.bf16.mxu0 0
        %2019 = vmatpush1.bf16.msra.mxu0 0
        %2020 = vmatprep.subr.bf16.mxu0 0
        %2021 = vmatpush1.bf16.msra.mxu0 0
        %2022 = vmatprep.subr.bf16.mxu0 0
        %2023 = vmatpush1.bf16.msra.mxu0 0
        %2024 = vmatprep.subr.bf16.mxu0 0
        %2025 = vmatpush1.bf16.msra.mxu0 0
        %2026 = vmatprep.subr.bf16.mxu0 0
        %2027 = vmatpush1.bf16.msra.mxu0 0
        %2028 = vmatprep.mubr.bf16.mxu0 0
        %2029 = vmatmul.mubr.bf16.gmra.mrb[0].mxu0 %v1979
        %v2030 = vpop.f32.mrb[0].mxu0
        %v2031 = vadd.f32 0.0, %v2030
        %v2032 = vpop.f32.mrb[0].mxu0
        %v2033 = vpop.f32.mrb[0].mxu0
        %v2034 = vadd.f32 0.0, %v2033
        %v2035 = vpop.f32.mrb[0].mxu0
        %2036 = vmatprep.mubr.bf16.mxu0 0
        %2037 = vmatmul.mubr.bf16.gmra.mrb[0].mxu0 %v1980
        %v2038 = vpop.f32.mrb[0].mxu0
        %v2039 = vadd.f32 0.0, %v2038
        %v2040 = vpop.f32.mrb[0].mxu0
        %v2041 = vpop.f32.mrb[0].mxu0
        %v2042 = vadd.f32 0.0, %v2041
        %v2043 = vpop.f32.mrb[0].mxu0
        %2044 = vmatprep.mubr.bf16.mxu0 0
        %2045 = vmatmul.mubr.bf16.gmra.mrb[0].mxu0 %v1981
        %v2046 = vpop.f32.mrb[0].mxu0
        %v2047 = vadd.f32 0.0, %v2046
        %v2048 = vpop.f32.mrb[0].mxu0
        %v2049 = vpop.f32.mrb[0].mxu0
        %v2050 = vadd.f32 0.0, %v2049
        %v2051 = vpop.f32.mrb[0].mxu0
        %2052 = vmatprep.mubr.bf16.mxu0 0
        %2053 = vmatmul.mubr.bf16.gmra.mrb[0].mxu0 %v1982
        %v2054 = vpop.f32.mrb[0].mxu0
        %v2055 = vadd.f32 0.0, %v2054
        %v2056 = vpop.f32.mrb[0].mxu0
        %v2057 = vpop.f32.mrb[0].mxu0
        %v2058 = vadd.f32 0.0, %v2057
        %v2059 = vpop.f32.mrb[0].mxu0
        %2060 = vmatprep.mubr.bf16.mxu0 0
        %2061 = vmatmul.mubr.bf16.gmra.mrb[0].mxu0 %v1983
        %v2062 = vpop.f32.mrb[0].mxu0
        %v2063 = vadd.f32 0.0, %v2062
        %v2064 = vpop.f32.mrb[0].mxu0
        %v2065 = vpop.f32.mrb[0].mxu0
        %v2066 = vadd.f32 0.0, %v2065
        %v2067 = vpop.f32.mrb[0].mxu0
        %2068 = vmatprep.mubr.bf16.mxu0 0
        %2069 = vmatmul.mubr.bf16.gmra.mrb[0].mxu0 %v1984
        %v2070 = vpop.f32.mrb[0].mxu0
        %v2071 = vadd.f32 0.0, %v2070
        %v2072 = vpop.f32.mrb[0].mxu0
        %v2073 = vpop.f32.mrb[0].mxu0
        %v2074 = vadd.f32 0.0, %v2073
        %v2075 = vpop.f32.mrb[0].mxu0
        %2076 = vmatprep.mubr.bf16.mxu0 0
        %2077 = vmatmul.mubr.bf16.gmra.mrb[0].mxu0 %v1985
        %v2078 = vpop.f32.mrb[0].mxu0
        %v2079 = vadd.f32 0.0, %v2078
        %v2080 = vpop.f32.mrb[0].mxu0
        %v2081 = vpop.f32.mrb[0].mxu0
        %v2082 = vadd.f32 0.0, %v2081
        %v2083 = vpop.f32.mrb[0].mxu0
        %2084 = vmatprep.mubr.bf16.mxu0 0
        %2085 = vmatmul.mubr.bf16.gmra.mrb[0].mxu0 %v1986
        %v2086 = vpop.f32.mrb[0].mxu0
        %v2087 = vadd.f32 0.0, %v2086
        %v2088 = vpop.f32.mrb[0].mxu0
        %v2089 = vpop.f32.mrb[0].mxu0
        %v2090 = vadd.f32 0.0, %v2089
        %v2091 = vpop.f32.mrb[0].mxu0
        %2092 = vdwg.mxu0
        %v2093 = vmul.f32 %v580, %v1963
        %v2094 = vmul.f32 %v581, %v1964
        %v2095 = vmul.f32 %v582, %v1965
        %v2096 = vmul.f32 %v583, %v1966
        %v2097 = vmul.f32 %v584, %v1967
        %v2098 = vmul.f32 %v585, %v1968
        %v2099 = vmul.f32 %v586, %v1969
        %v2100 = vmul.f32 %v587, %v1970
        %v2101 = vmul.f32 %v588, %v1971
        %v2102 = vmul.f32 %v589, %v1972
        %v2103 = vmul.f32 %v590, %v1973
        %v2104 = vmul.f32 %v591, %v1974
        %v2105 = vmul.f32 %v592, %v1975
        %v2106 = vmul.f32 %v593, %v1976
        %v2107 = vmul.f32 %v594, %v1977
        %v2108 = vmul.f32 %v595, %v1978
        %v2109 = vmul.f32 %v2093, %v1963
        %v2110 = vmul.f32 %v2094, %v1964
        %v2111 = vmul.f32 %v2095, %v1965
        %v2112 = vmul.f32 %v2096, %v1966
        %v2113 = vmul.f32 %v2097, %v1967
        %v2114 = vmul.f32 %v2098, %v1968
        %v2115 = vmul.f32 %v2099, %v1969
        %v2116 = vmul.f32 %v2100, %v1970
        %v2117 = vmul.f32 %v2101, %v1971
        %v2118 = vmul.f32 %v2102, %v1972
        %v2119 = vmul.f32 %v2103, %v1973
        %v2120 = vmul.f32 %v2104, %v1974
        %v2121 = vmul.f32 %v2105, %v1975
        %v2122 = vmul.f32 %v2106, %v1976
        %v2123 = vmul.f32 %v2107, %v1977
        %v2124 = vmul.f32 %v2108, %v1978
        %2126 = vset.pattern.permute.xlu0 0
        %2127 = vperm.xlu0 %2126, %v2109
        %v2128 = vpop.permute.xlu0 %2127
        %2131 = vset.pattern.permute.xlu0 0
        %2132 = vperm.xlu0 %2131, %v2110
        %v2133 = vpop.permute.xlu0 %2132
        %2136 = vset.pattern.permute.xlu0 0
        %2137 = vperm.xlu0 %2136, %v2111
        %v2138 = vpop.permute.xlu0 %2137
        %2141 = vset.pattern.permute.xlu0 0
        %2142 = vperm.xlu0 %2141, %v2112
        %v2143 = vpop.permute.xlu0 %2142
        %2146 = vset.pattern.permute.xlu0 0
        %2147 = vperm.xlu0 %2146, %v2113
        %v2148 = vpop.permute.xlu0 %2147
        %2151 = vset.pattern.permute.xlu0 0
        %2152 = vperm.xlu0 %2151, %v2114
        %v2153 = vpop.permute.xlu0 %2152
        %2156 = vset.pattern.permute.xlu0 0
        %2157 = vperm.xlu0 %2156, %v2115
        %v2158 = vpop.permute.xlu0 %2157
        %2161 = vset.pattern.permute.xlu0 0
        %2162 = vperm.xlu0 %2161, %v2116
        %v2163 = vpop.permute.xlu0 %2162
        %2166 = vset.pattern.permute.xlu0 0
        %2167 = vperm.xlu0 %2166, %v2117
        %v2168 = vpop.permute.xlu0 %2167
        %2171 = vset.pattern.permute.xlu0 0
        %2172 = vperm.xlu0 %2171, %v2118
        %v2173 = vpop.permute.xlu0 %2172
        %2176 = vset.pattern.permute.xlu0 0
        %2177 = vperm.xlu0 %2176, %v2119
        %v2178 = vpop.permute.xlu0 %2177
        %2181 = vset.pattern.permute.xlu0 0
        %2182 = vperm.xlu0 %2181, %v2120
        %v2183 = vpop.permute.xlu0 %2182
        %2186 = vset.pattern.permute.xlu0 0
        %2187 = vperm.xlu0 %2186, %v2121
        %v2188 = vpop.permute.xlu0 %2187
        %2191 = vset.pattern.permute.xlu0 0
        %2192 = vperm.xlu0 %2191, %v2122
        %v2193 = vpop.permute.xlu0 %2192
        %2196 = vset.pattern.permute.xlu0 0
        %2197 = vperm.xlu0 %2196, %v2123
        %v2198 = vpop.permute.xlu0 %2197
        %2201 = vset.pattern.permute.xlu0 0
        %2202 = vperm.xlu0 %2201, %v2124
        %v2203 = vpop.permute.xlu0 %2202
        %v2205 = vmul.f32 %v2031, %v2128
        %v2206 = vmul.f32 %v2034, %v2133
        %v2207 = vmul.f32 %v2039, %v2138
        %v2208 = vmul.f32 %v2042, %v2143
        %v2209 = vmul.f32 %v2047, %v2148
        %v2210 = vmul.f32 %v2050, %v2153
        %v2211 = vmul.f32 %v2055, %v2158
        %v2212 = vmul.f32 %v2058, %v2163
        %v2213 = vmul.f32 %v2063, %v2168
        %v2214 = vmul.f32 %v2066, %v2173
        %v2215 = vmul.f32 %v2071, %v2178
        %v2216 = vmul.f32 %v2074, %v2183
        %v2217 = vmul.f32 %v2079, %v2188
        %v2218 = vmul.f32 %v2082, %v2193
        %v2219 = vmul.f32 %v2087, %v2198
        %v2220 = vmul.f32 %v2090, %v2203
        %v2221 = vpack.c.bf16 %v2206, %v2205
        %v2222 = vpack.c.bf16 %v2208, %v2207
        %v2223 = vpack.c.bf16 %v2210, %v2209
        %v2224 = vpack.c.bf16 %v2212, %v2211
        %v2225 = vpack.c.bf16 %v2214, %v2213
        %v2226 = vpack.c.bf16 %v2216, %v2215
        %v2227 = vpack.c.bf16 %v2218, %v2217
        %v2228 = vpack.c.bf16 %v2220, %v2219
        %s2229 = scalar_lea.vmem [#allocation3], 32
        %v2230 = vld [vmem:[%s2229] sm:$0xff]
        %v2231 = vld [vmem:[%s2229 + $0x8] sm:$0xff]
        %v2232 = vld [vmem:[%s2229 + $0x10] sm:$0xff]
        %v2233 = vld [vmem:[%s2229 + $0x18] sm:$0xff]
        %2234 = vxpose.xlu0.c.b16.start [1/8] %v2221, 128
        %2235 = vxpose.xlu0.c.b16.cont [2/8] %v2222, 128
        %2236 = vxpose.xlu0.c.b16.cont [3/8] %v2223, 128
        %2237 = vxpose.xlu0.c.b16.cont [4/8] %v2224, 128
        %2238 = vxpose.xlu0.c.b16.cont [5/8] %v2225, 128
        %2239 = vxpose.xlu0.c.b16.cont [6/8] %v2226, 128
        %2240 = vxpose.xlu0.c.b16.cont [7/8] %v2227, 128
        %2241 = vxpose.xlu0.c.b16.end [8/8] %v2228, 128
        %v2242 = vpop.trf.xlu0
        %v2243 = vpop.trf.xlu0
        %v2244 = vpop.trf.xlu0
        %v2245 = vpop.trf.xlu0
        %v2246 = vpop.trf.xlu0
        %v2247 = vpop.trf.xlu0
        %v2248 = vpop.trf.xlu0
        %v2249 = vpop.trf.xlu0
        %2250 = vmatprep.subr.bf16.mxu0 0
        %2251 = vmatpush1.bf16.msra.mxu0 %v1979
        %2252 = vmatprep.subr.bf16.mxu0 0
        %2253 = vmatpush1.bf16.msra.mxu0 %v1980
        %2254 = vmatprep.subr.bf16.mxu0 0
        %2255 = vmatpush1.bf16.msra.mxu0 %v1981
        %2256 = vmatprep.subr.bf16.mxu0 0
        %2257 = vmatpush1.bf16.msra.mxu0 %v1982
        %2258 = vmatprep.subr.bf16.mxu0 0
        %2259 = vmatpush1.bf16.msra.mxu0 %v1983
        %2260 = vmatprep.subr.bf16.mxu0 0
        %2261 = vmatpush1.bf16.msra.mxu0 %v1984
        %2262 = vmatprep.subr.bf16.mxu0 0
        %2263 = vmatpush1.bf16.msra.mxu0 %v1985
        %2264 = vmatprep.subr.bf16.mxu0 0
        %2265 = vmatpush1.bf16.msra.mxu0 %v1986
        %2266 = vmatprep.subr.bf16.mxu0 0
        %2267 = vmatpush1.bf16.msra.mxu0 0
        %2268 = vmatprep.subr.bf16.mxu0 0
        %2269 = vmatpush1.bf16.msra.mxu0 0
        %2270 = vmatprep.subr.bf16.mxu0 0
        %2271 = vmatpush1.bf16.msra.mxu0 0
        %2272 = vmatprep.subr.bf16.mxu0 0
        %2273 = vmatpush1.bf16.msra.mxu0 0
        %2274 = vmatprep.subr.bf16.mxu0 0
        %2275 = vmatpush1.bf16.msra.mxu0 0
        %2276 = vmatprep.subr.bf16.mxu0 0
        %2277 = vmatpush1.bf16.msra.mxu0 0
        %2278 = vmatprep.subr.bf16.mxu0 0
        %2279 = vmatpush1.bf16.msra.mxu0 0
        %2280 = vmatprep.subr.bf16.mxu0 0
        %2281 = vmatpush1.bf16.msra.mxu0 0
        %2282 = vmatprep.mubr.bf16.mxu0 0
        %2283 = vmatmul.mubr.bf16.gmra.mrb[0].mxu0 %v2242
        %v2284 = vpop.f32.mrb[0].mxu0
        %v2285 = vadd.f32 0.0, %v2284
        %v2286 = vpop.f32.mrb[0].mxu0
        %v2287 = vpop.f32.mrb[0].mxu0
        %v2288 = vadd.f32 0.0, %v2287
        %v2289 = vpop.f32.mrb[0].mxu0
        %2290 = vmatprep.mubr.bf16.mxu0 0
        %2291 = vmatmul.mubr.bf16.gmra.mrb[0].mxu0 %v2243
        %v2292 = vpop.f32.mrb[0].mxu0
        %v2293 = vadd.f32 0.0, %v2292
        %v2294 = vpop.f32.mrb[0].mxu0
        %v2295 = vpop.f32.mrb[0].mxu0
        %v2296 = vadd.f32 0.0, %v2295
        %v2297 = vpop.f32.mrb[0].mxu0
        %2298 = vdwg.mxu0
        %v2299 = vadd.f32 %v2230, %v2285
        %v2300 = vadd.f32 %v2231, %v2288
        %v2301 = vadd.f32 %v2232, %v2293
        %v2302 = vadd.f32 %v2233, %v2296
        %2303 = vst [vmem:[%s2229] sm:$0xff] %v2299
        %2304 = vst [vmem:[%s2229 + $0x8] sm:$0xff] %v2300
        %2305 = vst [vmem:[%s2229 + $0x10] sm:$0xff] %v2301
        %2306 = vst [vmem:[%s2229 + $0x18] sm:$0xff] %v2302
      $region64: #{tpu_custom_call.1} parent=55 // pred_fallthru
        _
      // Predicated region
      $region65: #{tpu_custom_call.1} parent=55 // pred_check
        _
      $region66: #{tpu_custom_call.1} parent=55 // pred_check_branch
        %2308 = sbr.rel (%p598) target = $region68
      $region67: #{tpu_custom_call.1} parent=55 // pred_region
        %v2309 = vld [vmem:[#allocation4] sm:$0x1]
        %vm2310 = vcmp.gt.f32.partialorder %v2309, 0.0
        %v2311 = vmax.f32 %v2309, 1.0
        %v2312 = vrcp.pop %v2311
        %v2313 = vsel %vm2310, %v2312, 0.0
        %v2314 = vld [vmem:[#allocation3] sm:$0xff]
        %v2315 = vld [vmem:[#allocation3 + $0x8] sm:$0xff]
        %v2316 = vld [vmem:[#allocation3 + $0x10] sm:$0xff]
        %v2317 = vld [vmem:[#allocation3 + $0x18] sm:$0xff]
        %v2319 = vlaneseq
        %v2320 = vshrl.u32 %v2319, 7
        %v2321 = vsub.s32 0, %v2320
        %v2322 = vrot.slane %v2313, %v2321
        %v2324 = vmul.f32 %v2314, %v2322
        %v2325 = vmul.f32 %v2315, %v2322
        %v2326 = vmul.f32 %v2316, %v2322
        %v2327 = vmul.f32 %v2317, %v2322
        %v2328 = vld [vmem:[%s6] sm:$0xff]
        %v2329 = vld [vmem:[%s6 + $0x8] sm:$0xff]
        %v2330 = vld [vmem:[%s6 + $0x10] sm:$0xff]
        %v2331 = vld [vmem:[%s6 + $0x18] sm:$0xff]
        %2333 = vset.pattern.permute.xlu0 0
        %2334 = vperm.xlu0 %2333, %v2328
        %v2335 = vpop.permute.xlu0 %2334
        %2338 = vset.pattern.permute.xlu0 0
        %2339 = vperm.xlu0 %2338, %v2329
        %v2340 = vpop.permute.xlu0 %2339
        %2343 = vset.pattern.permute.xlu0 0
        %2344 = vperm.xlu0 %2343, %v2330
        %v2345 = vpop.permute.xlu0 %2344
        %2348 = vset.pattern.permute.xlu0 0
        %2349 = vperm.xlu0 %2348, %v2331
        %v2350 = vpop.permute.xlu0 %2349
        %v2352 = vadd.f32 %v2324, %v2335
        %v2353 = vadd.f32 %v2325, %v2340
        %v2354 = vadd.f32 %v2326, %v2345
        %v2355 = vadd.f32 %v2327, %v2350
        %v2356 = vmax.f32 %v2352, 0.0
        %v2357 = vmax.f32 %v2353, 0.0
        %v2358 = vmax.f32 %v2354, 0.0
        %v2359 = vmax.f32 %v2355, 0.0
        %v2360 = vld [vmem:[%s7] sm:$0xff]
        %v2361 = vld [vmem:[%s7 + $0x8] sm:$0xff]
        %s2362 = scalar_lea.vmem [#allocation3], 32
        %v2363 = vld [vmem:[%s2362] sm:$0xff]
        %v2364 = vld [vmem:[%s2362 + $0x8] sm:$0xff]
        %v2365 = vld [vmem:[%s2362 + $0x10] sm:$0xff]
        %v2366 = vld [vmem:[%s2362 + $0x18] sm:$0xff]
        %v2367 = vmul.f32 %v2363, %v2322
        %v2368 = vmul.f32 %v2364, %v2322
        %v2369 = vmul.f32 %v2365, %v2322
        %v2370 = vmul.f32 %v2366, %v2322
        %s2371 = scalar_lea.vmem %s6, 32
        %v2372 = vld [vmem:[%s2371] sm:$0xff]
        %v2373 = vld [vmem:[%s2371 + $0x8] sm:$0xff]
        %v2374 = vld [vmem:[%s2371 + $0x10] sm:$0xff]
        %v2375 = vld [vmem:[%s2371 + $0x18] sm:$0xff]
        %2377 = vset.pattern.permute.xlu0 0
        %2378 = vperm.xlu0 %2377, %v2372
        %v2379 = vpop.permute.xlu0 %2378
        %2382 = vset.pattern.permute.xlu0 0
        %2383 = vperm.xlu0 %2382, %v2373
        %v2384 = vpop.permute.xlu0 %2383
        %2387 = vset.pattern.permute.xlu0 0
        %2388 = vperm.xlu0 %2387, %v2374
        %v2389 = vpop.permute.xlu0 %2388
        %2392 = vset.pattern.permute.xlu0 0
        %2393 = vperm.xlu0 %2392, %v2375
        %v2394 = vpop.permute.xlu0 %2393
        %v2396 = vadd.f32 %v2367, %v2379
        %v2397 = vadd.f32 %v2368, %v2384
        %v2398 = vadd.f32 %v2369, %v2389
        %v2399 = vadd.f32 %v2370, %v2394
        %v2400 = vmax.f32 %v2396, 0.0
        %v2401 = vmax.f32 %v2397, 0.0
        %v2402 = vmax.f32 %v2398, 0.0
        %v2403 = vmax.f32 %v2399, 0.0
        %s2404 = scalar_lea.vmem %s7, 16
        %v2405 = vld [vmem:[%s2404] sm:$0xff]
        %v2406 = vld [vmem:[%s2404 + $0x8] sm:$0xff]
        %vm2407 = vcmask 261120
        %v2409 = vsel %vm2407, %v2405, 0
        %v2412 = vsel %vm2407, %v2406, 0
        %2414 = vmatprep.subr.mxu0 0.0
        %2415 = vmatpush1.msra.mxu0 %v2400
        %2416 = vmatprep.subr.mxu0 0.0
        %2417 = vmatpush1.msra.mxu0 %v2401
        %2418 = vmatprep.subr.mxu0 0.0
        %2419 = vmatpush1.msra.mxu0 %v2402
        %2420 = vmatprep.subr.mxu0 0.0
        %2421 = vmatpush1.msra.mxu0 %v2403
        %2422 = vmatprep.subr.mxu0 0.0
        %2423 = vmatpush1.msra.mxu0 0.0
        %2424 = vmatprep.subr.mxu0 0.0
        %2425 = vmatpush1.msra.mxu0 0.0
        %2426 = vmatprep.subr.mxu0 0.0
        %2427 = vmatpush1.msra.mxu0 0.0
        %2428 = vmatprep.subr.mxu0 0.0
        %2429 = vmatpush1.msra.mxu0 0.0
        %2430 = vmatprep.subr.mxu0 0.0
        %2431 = vmatpush1.msra.mxu0 0.0
        %2432 = vmatprep.subr.mxu0 0.0
        %2433 = vmatpush1.msra.mxu0 0.0
        %2434 = vmatprep.subr.mxu0 0.0
        %2435 = vmatpush1.msra.mxu0 0.0
        %2436 = vmatprep.subr.mxu0 0.0
        %2437 = vmatpush1.msra.mxu0 0.0
        %2438 = vmatprep.subr.mxu0 0.0
        %2439 = vmatpush1.msra.mxu0 0.0
        %2440 = vmatprep.subr.mxu0 0.0
        %2441 = vmatpush1.msra.mxu0 0.0
        %2442 = vmatprep.subr.mxu0 0.0
        %2443 = vmatpush1.msra.mxu0 0.0
        %2444 = vmatprep.subr.mxu0 0.0
        %2445 = vmatpush1.msra.mxu0 0.0
        %2446 = vmatprep.subr.mxu0 0.0
        %2447 = vmatpush1.msra.mxu0 0.0
        %2448 = vmatprep.subr.mxu0 0.0
        %2449 = vmatpush1.msra.mxu0 0.0
        %2450 = vmatprep.subr.mxu0 0.0
        %2451 = vmatpush1.msra.mxu0 0.0
        %2452 = vmatprep.subr.mxu0 0.0
        %2453 = vmatpush1.msra.mxu0 0.0
        %2454 = vmatprep.subr.mxu0 0.0
        %2455 = vmatpush1.msra.mxu0 0.0
        %2456 = vmatprep.subr.mxu0 0.0
        %2457 = vmatpush1.msra.mxu0 0.0
        %2458 = vmatprep.subr.mxu0 0.0
        %2459 = vmatpush1.msra.mxu0 0.0
        %2460 = vmatprep.subr.mxu0 0.0
        %2461 = vmatpush1.msra.mxu0 0.0
        %2462 = vmatprep.subr.mxu0 0.0
        %2463 = vmatpush1.msra.mxu0 0.0
        %2464 = vmatprep.subr.mxu0 0.0
        %2465 = vmatpush1.msra.mxu0 0.0
        %2466 = vmatprep.subr.mxu0 0.0
        %2467 = vmatpush1.msra.mxu0 0.0
        %2468 = vmatprep.subr.mxu0 0.0
        %2469 = vmatpush1.msra.mxu0 0.0
        %2470 = vmatprep.subr.mxu0 0.0
        %2471 = vmatpush1.msra.mxu0 0.0
        %2472 = vmatprep.subr.mxu0 0.0
        %2473 = vmatpush1.msra.mxu0 0.0
        %2474 = vmatprep.subr.mxu0 0.0
        %2475 = vmatpush1.msra.mxu0 0.0
        %2476 = vmatprep.subr.mxu0 0.0
        %2477 = vmatpush1.msra.mxu0 0.0
        %2478 = vmatprep.mubr.f32.mxu0 0.0
        %2479 = vmatmul.mubr.f32.gmra.mrb[0].mxu0 %v2409
        %v2480 = vpop.f32.mrb[0].mxu0
        %v2481 = vadd.f32 0.0, %v2480
        %v2482 = vpop.f32.mrb[0].mxu0
        %2483 = vmatprep.mubr.f32.mxu0 0.0
        %2484 = vmatmul.mubr.f32.gmra.mrb[0].mxu0 %v2412
        %v2485 = vpop.f32.mrb[0].mxu0
        %v2486 = vadd.f32 0.0, %v2485
        %v2487 = vpop.f32.mrb[0].mxu0
        %2488 = vdwg.mxu0
        %v2490 = vsel %vm2407, %v2360, 0
        %v2493 = vsel %vm2407, %v2361, 0
        %2495 = vmatprep.subr.mxu0 0.0
        %2496 = vmatpush1.msra.mxu0 %v2356
        %2497 = vmatprep.subr.mxu0 0.0
        %2498 = vmatpush1.msra.mxu0 %v2357
        %2499 = vmatprep.subr.mxu0 0.0
        %2500 = vmatpush1.msra.mxu0 %v2358
        %2501 = vmatprep.subr.mxu0 0.0
        %2502 = vmatpush1.msra.mxu0 %v2359
        %2503 = vmatprep.subr.mxu0 0.0
        %2504 = vmatpush1.msra.mxu0 0.0
        %2505 = vmatprep.subr.mxu0 0.0
        %2506 = vmatpush1.msra.mxu0 0.0
        %2507 = vmatprep.subr.mxu0 0.0
        %2508 = vmatpush1.msra.mxu0 0.0
        %2509 = vmatprep.subr.mxu0 0.0
        %2510 = vmatpush1.msra.mxu0 0.0
        %2511 = vmatprep.subr.mxu0 0.0
        %2512 = vmatpush1.msra.mxu0 0.0
        %2513 = vmatprep.subr.mxu0 0.0
        %2514 = vmatpush1.msra.mxu0 0.0
        %2515 = vmatprep.subr.mxu0 0.0
        %2516 = vmatpush1.msra.mxu0 0.0
        %2517 = vmatprep.subr.mxu0 0.0
        %2518 = vmatpush1.msra.mxu0 0.0
        %2519 = vmatprep.subr.mxu0 0.0
        %2520 = vmatpush1.msra.mxu0 0.0
        %2521 = vmatprep.subr.mxu0 0.0
        %2522 = vmatpush1.msra.mxu0 0.0
        %2523 = vmatprep.subr.mxu0 0.0
        %2524 = vmatpush1.msra.mxu0 0.0
        %2525 = vmatprep.subr.mxu0 0.0
        %2526 = vmatpush1.msra.mxu0 0.0
        %2527 = vmatprep.subr.mxu0 0.0
        %2528 = vmatpush1.msra.mxu0 0.0
        %2529 = vmatprep.subr.mxu0 0.0
        %2530 = vmatpush1.msra.mxu0 0.0
        %2531 = vmatprep.subr.mxu0 0.0
        %2532 = vmatpush1.msra.mxu0 0.0
        %2533 = vmatprep.subr.mxu0 0.0
        %2534 = vmatpush1.msra.mxu0 0.0
        %2535 = vmatprep.subr.mxu0 0.0
        %2536 = vmatpush1.msra.mxu0 0.0
        %2537 = vmatprep.subr.mxu0 0.0
        %2538 = vmatpush1.msra.mxu0 0.0
        %2539 = vmatprep.subr.mxu0 0.0
        %2540 = vmatpush1.msra.mxu0 0.0
        %2541 = vmatprep.subr.mxu0 0.0
        %2542 = vmatpush1.msra.mxu0 0.0
        %2543 = vmatprep.subr.mxu0 0.0
        %2544 = vmatpush1.msra.mxu0 0.0
        %2545 = vmatprep.subr.mxu0 0.0
        %2546 = vmatpush1.msra.mxu0 0.0
        %2547 = vmatprep.subr.mxu0 0.0
        %2548 = vmatpush1.msra.mxu0 0.0
        %2549 = vmatprep.subr.mxu0 0.0
        %2550 = vmatpush1.msra.mxu0 0.0
        %2551 = vmatprep.subr.mxu0 0.0
        %2552 = vmatpush1.msra.mxu0 0.0
        %2553 = vmatprep.subr.mxu0 0.0
        %2554 = vmatpush1.msra.mxu0 0.0
        %2555 = vmatprep.subr.mxu0 0.0
        %2556 = vmatpush1.msra.mxu0 0.0
        %2557 = vmatprep.subr.mxu0 0.0
        %2558 = vmatpush1.msra.mxu0 0.0
        %2559 = vmatprep.mubr.f32.mxu0 0.0
        %2560 = vmatmul.mubr.f32.gmra.mrb[0].mxu0 %v2490
        %v2561 = vpop.f32.mrb[0].mxu0
        %v2562 = vadd.f32 %v2481, %v2561
        %v2563 = vpop.f32.mrb[0].mxu0
        %2564 = vmatprep.mubr.f32.mxu0 0.0
        %2565 = vmatmul.mubr.f32.gmra.mrb[0].mxu0 %v2493
        %v2566 = vpop.f32.mrb[0].mxu0
        %v2567 = vadd.f32 %v2486, %v2566
        %v2568 = vpop.f32.mrb[0].mxu0
        %2569 = vdwg.mxu0
        %2570 = vxpose.xlu0.b32.start [1/16] %v2562, 128
        %2571 = vxpose.xlu0.b32.cont [2/16] %v2567, 128
        %2572 = vxpose.xlu0.b32.cont [3/16] 0.0, 128
        %2573 = vxpose.xlu0.b32.cont [4/16] 0.0, 128
        %2574 = vxpose.xlu0.b32.cont [5/16] 0.0, 128
        %2575 = vxpose.xlu0.b32.cont [6/16] 0.0, 128
        %2576 = vxpose.xlu0.b32.cont [7/16] 0.0, 128
        %2577 = vxpose.xlu0.b32.cont [8/16] 0.0, 128
        %2578 = vxpose.xlu0.b32.cont [9/16] 0.0, 128
        %2579 = vxpose.xlu0.b32.cont [10/16] 0.0, 128
        %2580 = vxpose.xlu0.b32.cont [11/16] 0.0, 128
        %2581 = vxpose.xlu0.b32.cont [12/16] 0.0, 128
        %2582 = vxpose.xlu0.b32.cont [13/16] 0.0, 128
        %2583 = vxpose.xlu0.b32.cont [14/16] 0.0, 128
        %2584 = vxpose.xlu0.b32.cont [15/16] 0.0, 128
        %2585 = vxpose.xlu0.b32.end [16/16] 0.0, 128
        %v2586 = vpop.trf.xlu0
        %v2587 = vpop.trf.xlu0
        %v2588 = vpop.trf.xlu0
        %v2589 = vpop.trf.xlu0
        %v2590 = vpop.trf.xlu0
        %v2591 = vpop.trf.xlu0
        %v2592 = vpop.trf.xlu0
        %v2593 = vpop.trf.xlu0
        %v2594 = vpop.trf.xlu0
        %v2595 = vpop.trf.xlu0
        %v2596 = vpop.trf.xlu0
        %v2597 = vpop.trf.xlu0
        %v2598 = vpop.trf.xlu0
        %v2599 = vpop.trf.xlu0
        %v2600 = vpop.trf.xlu0
        %v2601 = vpop.trf.xlu0
        %v2602 = vpack.c.bf16 %v2587, %v2586
        %v2603 = vpack.c.bf16 %v2589, %v2588
        %v2604 = vpack.c.bf16 %v2591, %v2590
        %v2605 = vpack.c.bf16 %v2593, %v2592
        %v2606 = vpack.c.bf16 %v2595, %v2594
        %v2607 = vpack.c.bf16 %v2597, %v2596
        %v2608 = vpack.c.bf16 %v2599, %v2598
        %v2609 = vpack.c.bf16 %v2601, %v2600
        %vm2610 = vcmask 130048
        %2611 = vst.msk [vmem:[#allocation5] sm:$0xff] %vm2610, %v2602
        %2612 = vst.msk [vmem:[#allocation5 + $0x8] sm:$0xff] %vm2610, %v2603
        %2613 = vst.msk [vmem:[#allocation5 + $0x10] sm:$0xff] %vm2610, %v2604
        %2614 = vst.msk [vmem:[#allocation5 + $0x18] sm:$0xff] %vm2610, %v2605
        %2615 = vst.msk [vmem:[#allocation5 + $0x20] sm:$0xff] %vm2610, %v2606
        %2616 = vst.msk [vmem:[#allocation5 + $0x28] sm:$0xff] %vm2610, %v2607
        %2617 = vst.msk [vmem:[#allocation5 + $0x30] sm:$0xff] %vm2610, %v2608
        %2618 = vst.msk [vmem:[#allocation5 + $0x38] sm:$0xff] %vm2610, %v2609
        %2619 = vst [vmem:[#allocation6] sm:$0xff] 0.0
        %2620 = vst [vmem:[#allocation6 + $0x8] sm:$0xff] 0.0
      $region68: #{tpu_custom_call.1} parent=55 // pred_fallthru
        _
      %p2621 = scmp.eq.s32.totalorder %s24, 1
      // Predicated region
      $region69: #{tpu_custom_call.1} parent=55 // pred_check
        %p2622 = pneg %p2621
      $region70: #{tpu_custom_call.1} parent=55 // pred_check_branch
        %2624 = sbr.rel (%p2622) target = $region72
      $region71: #{tpu_custom_call.1} parent=55 // pred_region
        %v2625 = vld [vmem:[#allocation5] sm:$0xff]
        %v2626 = vld [vmem:[#allocation5 + $0x8] sm:$0xff]
        %v2627 = vld [vmem:[#allocation5 + $0x10] sm:$0xff]
        %v2628 = vld [vmem:[#allocation5 + $0x18] sm:$0xff]
        %v2629 = vld [vmem:[#allocation5 + $0x20] sm:$0xff]
        %v2630 = vld [vmem:[#allocation5 + $0x28] sm:$0xff]
        %v2631 = vld [vmem:[#allocation5 + $0x30] sm:$0xff]
        %v2632 = vld [vmem:[#allocation5 + $0x38] sm:$0xff]
        %2633 = vmatprep.subr.bf16.mxu0 0
        %2634 = vmatpush1.bf16.msra.mxu0 %v2625
        %2635 = vmatprep.subr.bf16.mxu0 0
        %2636 = vmatpush1.bf16.msra.mxu0 %v2626
        %2637 = vmatprep.subr.bf16.mxu0 0
        %2638 = vmatpush1.bf16.msra.mxu0 %v2627
        %2639 = vmatprep.subr.bf16.mxu0 0
        %2640 = vmatpush1.bf16.msra.mxu0 %v2628
        %2641 = vmatprep.subr.bf16.mxu0 0
        %2642 = vmatpush1.bf16.msra.mxu0 %v2629
        %2643 = vmatprep.subr.bf16.mxu0 0
        %2644 = vmatpush1.bf16.msra.mxu0 %v2630
        %2645 = vmatprep.subr.bf16.mxu0 0
        %2646 = vmatpush1.bf16.msra.mxu0 %v2631
        %2647 = vmatprep.subr.bf16.mxu0 0
        %2648 = vmatpush1.bf16.msra.mxu0 %v2632
        %2649 = vmatprep.subr.bf16.mxu0 0
        %2650 = vmatpush1.bf16.msra.mxu0 0
        %2651 = vmatprep.subr.bf16.mxu0 0
        %2652 = vmatpush1.bf16.msra.mxu0 0
        %2653 = vmatprep.subr.bf16.mxu0 0
        %2654 = vmatpush1.bf16.msra.mxu0 0
        %2655 = vmatprep.subr.bf16.mxu0 0
        %2656 = vmatpush1.bf16.msra.mxu0 0
        %2657 = vmatprep.subr.bf16.mxu0 0
        %2658 = vmatpush1.bf16.msra.mxu0 0
        %2659 = vmatprep.subr.bf16.mxu0 0
        %2660 = vmatpush1.bf16.msra.mxu0 0
        %2661 = vmatprep.subr.bf16.mxu0 0
        %2662 = vmatpush1.bf16.msra.mxu0 0
        %2663 = vmatprep.subr.bf16.mxu0 0
        %2664 = vmatpush1.bf16.msra.mxu0 0
        %2665 = vmatprep.mubr.bf16.mxu0 0
        %2666 = vmatmul.mubr.bf16.gmra.mrb[0].mxu0 %v419
        %v2667 = vpop.f32.mrb[0].mxu0
        %v2668 = vadd.f32 0.0, %v2667
        %v2669 = vpop.f32.mrb[0].mxu0
        %v2670 = vpop.f32.mrb[0].mxu0
        %v2671 = vadd.f32 0.0, %v2670
        %v2672 = vpop.f32.mrb[0].mxu0
        %2673 = vmatprep.mubr.bf16.mxu0 0
        %2674 = vmatmul.mubr.bf16.gmra.mrb[0].mxu0 %v420
        %v2675 = vpop.f32.mrb[0].mxu0
        %v2676 = vadd.f32 0.0, %v2675
        %v2677 = vpop.f32.mrb[0].mxu0
        %v2678 = vpop.f32.mrb[0].mxu0
        %v2679 = vadd.f32 0.0, %v2678
        %v2680 = vpop.f32.mrb[0].mxu0
        %2681 = vmatprep.mubr.bf16.mxu0 0
        %2682 = vmatmul.mubr.bf16.gmra.mrb[0].mxu0 %v421
        %v2683 = vpop.f32.mrb[0].mxu0
        %v2684 = vadd.f32 0.0, %v2683
        %v2685 = vpop.f32.mrb[0].mxu0
        %v2686 = vpop.f32.mrb[0].mxu0
        %v2687 = vadd.f32 0.0, %v2686
        %v2688 = vpop.f32.mrb[0].mxu0
        %2689 = vmatprep.mubr.bf16.mxu0 0
        %2690 = vmatmul.mubr.bf16.gmra.mrb[0].mxu0 %v422
        %v2691 = vpop.f32.mrb[0].mxu0
        %v2692 = vadd.f32 0.0, %v2691
        %v2693 = vpop.f32.mrb[0].mxu0
        %v2694 = vpop.f32.mrb[0].mxu0
        %v2695 = vadd.f32 0.0, %v2694
        %v2696 = vpop.f32.mrb[0].mxu0
        %2697 = vmatprep.mubr.bf16.mxu0 0
        %2698 = vmatmul.mubr.bf16.gmra.mrb[0].mxu0 %v423
        %v2699 = vpop.f32.mrb[0].mxu0
        %v2700 = vadd.f32 0.0, %v2699
        %v2701 = vpop.f32.mrb[0].mxu0
        %v2702 = vpop.f32.mrb[0].mxu0
        %v2703 = vadd.f32 0.0, %v2702
        %v2704 = vpop.f32.mrb[0].mxu0
        %2705 = vmatprep.mubr.bf16.mxu0 0
        %2706 = vmatmul.mubr.bf16.gmra.mrb[0].mxu0 %v424
        %v2707 = vpop.f32.mrb[0].mxu0
        %v2708 = vadd.f32 0.0, %v2707
        %v2709 = vpop.f32.mrb[0].mxu0
        %v2710 = vpop.f32.mrb[0].mxu0
        %v2711 = vadd.f32 0.0, %v2710
        %v2712 = vpop.f32.mrb[0].mxu0
        %2713 = vmatprep.mubr.bf16.mxu0 0
        %2714 = vmatmul.mubr.bf16.gmra.mrb[0].mxu0 %v425
        %v2715 = vpop.f32.mrb[0].mxu0
        %v2716 = vadd.f32 0.0, %v2715
        %v2717 = vpop.f32.mrb[0].mxu0
        %v2718 = vpop.f32.mrb[0].mxu0
        %v2719 = vadd.f32 0.0, %v2718
        %v2720 = vpop.f32.mrb[0].mxu0
        %2721 = vmatprep.mubr.bf16.mxu0 0
        %2722 = vmatmul.mubr.bf16.gmra.mrb[0].mxu0 %v426
        %v2723 = vpop.f32.mrb[0].mxu0
        %v2724 = vadd.f32 0.0, %v2723
        %v2725 = vpop.f32.mrb[0].mxu0
        %v2726 = vpop.f32.mrb[0].mxu0
        %v2727 = vadd.f32 0.0, %v2726
        %v2728 = vpop.f32.mrb[0].mxu0
        %2729 = vdwg.mxu0
        %2731 = vset.pattern.permute.xlu0 0
        %2732 = vperm.xlu0 %2731, %v580
        %v2733 = vpop.permute.xlu0 %2732
        %2736 = vset.pattern.permute.xlu0 0
        %2737 = vperm.xlu0 %2736, %v581
        %v2738 = vpop.permute.xlu0 %2737
        %2741 = vset.pattern.permute.xlu0 0
        %2742 = vperm.xlu0 %2741, %v582
        %v2743 = vpop.permute.xlu0 %2742
        %2746 = vset.pattern.permute.xlu0 0
        %2747 = vperm.xlu0 %2746, %v583
        %v2748 = vpop.permute.xlu0 %2747
        %2751 = vset.pattern.permute.xlu0 0
        %2752 = vperm.xlu0 %2751, %v584
        %v2753 = vpop.permute.xlu0 %2752
        %2756 = vset.pattern.permute.xlu0 0
        %2757 = vperm.xlu0 %2756, %v585
        %v2758 = vpop.permute.xlu0 %2757
        %2761 = vset.pattern.permute.xlu0 0
        %2762 = vperm.xlu0 %2761, %v586
        %v2763 = vpop.permute.xlu0 %2762
        %2766 = vset.pattern.permute.xlu0 0
        %2767 = vperm.xlu0 %2766, %v587
        %v2768 = vpop.permute.xlu0 %2767
        %2771 = vset.pattern.permute.xlu0 0
        %2772 = vperm.xlu0 %2771, %v588
        %v2773 = vpop.permute.xlu0 %2772
        %2776 = vset.pattern.permute.xlu0 0
        %2777 = vperm.xlu0 %2776, %v589
        %v2778 = vpop.permute.xlu0 %2777
        %2781 = vset.pattern.permute.xlu0 0
        %2782 = vperm.xlu0 %2781, %v590
        %v2783 = vpop.permute.xlu0 %2782
        %2786 = vset.pattern.permute.xlu0 0
        %2787 = vperm.xlu0 %2786, %v591
        %v2788 = vpop.permute.xlu0 %2787
        %2791 = vset.pattern.permute.xlu0 0
        %2792 = vperm.xlu0 %2791, %v592
        %v2793 = vpop.permute.xlu0 %2792
        %2796 = vset.pattern.permute.xlu0 0
        %2797 = vperm.xlu0 %2796, %v593
        %v2798 = vpop.permute.xlu0 %2797
        %2801 = vset.pattern.permute.xlu0 0
        %2802 = vperm.xlu0 %2801, %v594
        %v2803 = vpop.permute.xlu0 %2802
        %2806 = vset.pattern.permute.xlu0 0
        %2807 = vperm.xlu0 %2806, %v595
        %v2808 = vpop.permute.xlu0 %2807
        %v2810 = vmul.f32 %v2668, %v2733
        %v2811 = vmul.f32 %v2671, %v2738
        %v2812 = vmul.f32 %v2676, %v2743
        %v2813 = vmul.f32 %v2679, %v2748
        %v2814 = vmul.f32 %v2684, %v2753
        %v2815 = vmul.f32 %v2687, %v2758
        %v2816 = vmul.f32 %v2692, %v2763
        %v2817 = vmul.f32 %v2695, %v2768
        %v2818 = vmul.f32 %v2700, %v2773
        %v2819 = vmul.f32 %v2703, %v2778
        %v2820 = vmul.f32 %v2708, %v2783
        %v2821 = vmul.f32 %v2711, %v2788
        %v2822 = vmul.f32 %v2716, %v2793
        %v2823 = vmul.f32 %v2719, %v2798
        %v2824 = vmul.f32 %v2724, %v2803
        %v2825 = vmul.f32 %v2727, %v2808
        %v2826 = vpack.c.bf16 %v2811, %v2810
        %v2827 = vpack.c.bf16 %v2813, %v2812
        %v2828 = vpack.c.bf16 %v2815, %v2814
        %v2829 = vpack.c.bf16 %v2817, %v2816
        %v2830 = vpack.c.bf16 %v2819, %v2818
        %v2831 = vpack.c.bf16 %v2821, %v2820
        %v2832 = vpack.c.bf16 %v2823, %v2822
        %v2833 = vpack.c.bf16 %v2825, %v2824
        %v2834 = vld [vmem:[#allocation6] sm:$0xff]
        %v2835 = vld [vmem:[#allocation6 + $0x8] sm:$0xff]
        %2836 = vxpose.xlu0.c.b16.start [1/8] %v2826, 128
        %2837 = vxpose.xlu0.c.b16.cont [2/8] %v2827, 128
        %2838 = vxpose.xlu0.c.b16.cont [3/8] %v2828, 128
        %2839 = vxpose.xlu0.c.b16.cont [4/8] %v2829, 128
        %2840 = vxpose.xlu0.c.b16.cont [5/8] %v2830, 128
        %2841 = vxpose.xlu0.c.b16.cont [6/8] %v2831, 128
        %2842 = vxpose.xlu0.c.b16.cont [7/8] %v2832, 128
        %2843 = vxpose.xlu0.c.b16.end [8/8] %v2833, 128
        %v2844 = vpop.trf.xlu0
        %v2845 = vpop.trf.xlu0
        %v2846 = vpop.trf.xlu0
        %v2847 = vpop.trf.xlu0
        %v2848 = vpop.trf.xlu0
        %v2849 = vpop.trf.xlu0
        %v2850 = vpop.trf.xlu0
        %v2851 = vpop.trf.xlu0
        %2852 = vmatprep.subr.bf16.mxu0 0
        %2853 = vmatpush1.bf16.msra.mxu0 %v419
        %2854 = vmatprep.subr.bf16.mxu0 0
        %2855 = vmatpush1.bf16.msra.mxu0 %v420
        %2856 = vmatprep.subr.bf16.mxu0 0
        %2857 = vmatpush1.bf16.msra.mxu0 %v421
        %2858 = vmatprep.subr.bf16.mxu0 0
        %2859 = vmatpush1.bf16.msra.mxu0 %v422
        %2860 = vmatprep.subr.bf16.mxu0 0
        %2861 = vmatpush1.bf16.msra.mxu0 %v423
        %2862 = vmatprep.subr.bf16.mxu0 0
        %2863 = vmatpush1.bf16.msra.mxu0 %v424
        %2864 = vmatprep.subr.bf16.mxu0 0
        %2865 = vmatpush1.bf16.msra.mxu0 %v425
        %2866 = vmatprep.subr.bf16.mxu0 0
        %2867 = vmatpush1.bf16.msra.mxu0 %v426
        %2868 = vmatprep.subr.bf16.mxu0 0
        %2869 = vmatpush1.bf16.msra.mxu0 0
        %2870 = vmatprep.subr.bf16.mxu0 0
        %2871 = vmatpush1.bf16.msra.mxu0 0
        %2872 = vmatprep.subr.bf16.mxu0 0
        %2873 = vmatpush1.bf16.msra.mxu0 0
        %2874 = vmatprep.subr.bf16.mxu0 0
        %2875 = vmatpush1.bf16.msra.mxu0 0
        %2876 = vmatprep.subr.bf16.mxu0 0
        %2877 = vmatpush1.bf16.msra.mxu0 0
        %2878 = vmatprep.subr.bf16.mxu0 0
        %2879 = vmatpush1.bf16.msra.mxu0 0
        %2880 = vmatprep.subr.bf16.mxu0 0
        %2881 = vmatpush1.bf16.msra.mxu0 0
        %2882 = vmatprep.subr.bf16.mxu0 0
        %2883 = vmatpush1.bf16.msra.mxu0 0
        %2884 = vmatprep.mubr.bf16.mxu0 0
        %2885 = vmatmul.mubr.bf16.gmra.mrb[0].mxu0 %v2844
        %v2886 = vpop.f32.mrb[0].mxu0
        %v2887 = vadd.f32 0.0, %v2886
        %v2888 = vpop.f32.mrb[0].mxu0
        %v2889 = vpop.f32.mrb[0].mxu0
        %v2890 = vadd.f32 0.0, %v2889
        %v2891 = vpop.f32.mrb[0].mxu0
        %2892 = vdwg.mxu0
        %v2893 = vadd.f32 %v2834, %v2887
        %v2894 = vadd.f32 %v2835, %v2890
        %2895 = vst [vmem:[#allocation6] sm:$0xff] %v2893
        %2896 = vst [vmem:[#allocation6 + $0x8] sm:$0xff] %v2894
      $region72: #{tpu_custom_call.1} parent=55 // pred_fallthru
        _
      %p2897 = pnand %p2621, %p597
      %p2898 = pneg %p2897
      // Predicated region
      $region73: #{tpu_custom_call.1} parent=55 // pred_check
        _
      $region74: #{tpu_custom_call.1} parent=55 // pred_check_branch
        %2900 = sbr.rel (%p2897) target = $region76
      $region75: #{tpu_custom_call.1} parent=55 // pred_region
        %v2901 = vld [vmem:[#allocation4] sm:$0x1]
        %vm2902 = vcmp.gt.f32.partialorder %v2901, 0.0
        %v2903 = vmax.f32 %v2901, 1.0
        %v2904 = vrcp.pop %v2903
        %v2905 = vsel %vm2902, %v2904, 0.0
        %v2906 = vld [vmem:[#allocation6] sm:$0xff]
        %v2907 = vld [vmem:[#allocation6 + $0x8] sm:$0xff]
        %v2909 = vlaneseq
        %v2910 = vshrl.u32 %v2909, 7
        %v2911 = vsub.s32 0, %v2910
        %v2912 = vrot.slane %v2905, %v2911
        %v2914 = vmul.f32 %v2906, %v2912
        %v2915 = vmul.f32 %v2907, %v2912
        %v2916 = vld [vmem:[%s8] sm:$0xff]
        %v2917 = vld [vmem:[%s8 + $0x8] sm:$0xff]
        %2919 = vset.pattern.permute.xlu0 0
        %2920 = vperm.xlu0 %2919, %v2916
        %v2921 = vpop.permute.xlu0 %2920
        %2924 = vset.pattern.permute.xlu0 0
        %2925 = vperm.xlu0 %2924, %v2917
        %v2926 = vpop.permute.xlu0 %2925
        %v2928 = vadd.f32 %v2914, %v2921
        %v2929 = vadd.f32 %v2915, %v2926
        %v2930 = vld [vmem:[%s4] sm:$0x1]
        %v2932 = vlaneseq
        %v2933 = vshrl.u32 %v2932, 7
        %v2934 = vsub.s32 0, %v2933
        %v2935 = vrot.slane %v2930, %v2934
        %v2937 = vmul.f32 %v2928, %v2935
        %v2938 = vmul.f32 %v2929, %v2935
        %2939 = vadd.xlane.f32.xlu0 %v2937
        %v2940 = vpop.xlane.xlu0 %2939
        %2941 = vadd.xlane.f32.xlu0 %v2938
        %v2942 = vpop.xlane.xlu0 %2941
        %vm2943 = vcmask 7168
        %2944 = vst.msk [vmem:[%s9] sm:$0xff] %vm2943, %v2940
        %2945 = vst.msk [vmem:[%s9 + $0x8] sm:$0xff] %vm2943, %v2942
      $region76: #{tpu_custom_call.1} parent=55 // pred_fallthru
        _
      // Predicated region
      $region77: #{tpu_custom_call.1} parent=55 // pred_check
        %p2946 = pneg %p248
      $region78: #{tpu_custom_call.1} parent=55 // pred_check_branch
        %2948 = sbr.rel (%p2946) target = $region80
      $region79: #{tpu_custom_call.1} parent=55 // pred_region
        _
      $region80: #{tpu_custom_call.1} parent=55 // pred_fallthru
        _
      // Predicated region
      $region81: #{tpu_custom_call.1} parent=55 // pred_check
        %p2949 = pneg %p248
      $region82: #{tpu_custom_call.1} parent=55 // pred_check_branch
        %2951 = sbr.rel (%p2949) target = $region84
      $region83: #{tpu_custom_call.1} parent=55 // pred_region
        _
      $region84: #{tpu_custom_call.1} parent=55 // pred_fallthru
        _
    $region56: #{tpu_custom_call.1} parent=5 // pred_fallthru
      _
    %p2952 = scmp.le.s32.totalorder 2, %s15
    // Predicated region
    $region85: #{tpu_custom_call.1} parent=5 // pred_check
      %p2953 = pneg %p2952
    $region86: #{tpu_custom_call.1} parent=5 // pred_check_branch
      %2955 = sbr.rel (%p2953) target = $region88
    $region87: #{tpu_custom_call.1} parent=5 // pred_region
      %s2956 = ssub.s32 %s15, 2
    $region88: #{tpu_custom_call.1} parent=5 // pred_fallthru
      _
  $region6: #{tpu_custom_call.1} parent=0 // loop_footer
    %s19 = sadd.s32 1, %s15
  $region7: #{tpu_custom_call.1} parent=0 // loop_footer_branch
    %14 = sbr.rel target = $region3
  $region8: #{tpu_custom_call.1} parent=0 // loop_exit
    _

</llo_original>
